<compile_context>
chip_gen: v7x
topology: tpu7x:2x2x1
jax: 0.10.0
libtpu: 0.0.40
codegen_flags: <defaults>
</compile_context>

<pallas_src>
import functools

import jax
import jax.numpy as jnp
from jax import lax
from jax.experimental import pallas as pl
from jax.experimental.pallas import tpu as pltpu

NUM_LABELS = 3
HIDDEN = 1024
NPAD = 128                              # lane-padded label dimension (MXU N=128)
DROPOUT_P = 0.8
KEEP_PROB = 1.0 - DROPOUT_P
KEEP_THRESH = int(KEEP_PROB * (1 << 32))  # raw-uint32 dropout threshold
NEG_BIG = -1e30


def fused_head_kernel(seed_ref, cls_ref, wp_ref, bp_ref, wc_ref, bc_ref, lbl_ref,
                      logits_ref, loss_ref, *, deterministic):
    """[simulated bert pooler] -> dropout -> linear -> cross-entropy."""
    # ---- simulated bert pooler, fused here so the MXU has real work and the
    # ~0.35us per-call overhead is amortized (bf16 operands -> single-pass MXU).
    pooled = jnp.tanh(
        jnp.dot(cls_ref[...], wp_ref[...], preferred_element_type=jnp.float32)
        + bp_ref[...])                                         # (B, H) f32

    # ---- dropout(p=0.8): compare raw PRNG bits against a uint32 threshold
    # (no shift / int->float convert); 1/keep_prob rescale is folded into the
    # much smaller (B, NPAD) logits product below.
    if not deterministic:
        pltpu.prng_seed(seed_ref[0])
        bits = pltpu.bitcast(pltpu.prng_random_bits(pooled.shape), jnp.uint32)
        pooled = jnp.where(bits < jnp.uint32(KEEP_THRESH), pooled, 0.0)

    # ---- classifier: logits = x @ Wc + bc  (bf16 MXU, f32 accumulate).
    # Padded bias columns are -1e30, so exp(pad - m) underflows to exactly 0 in
    # the softmax: no iota/validity mask needed in-kernel.
    prod = jnp.dot(pooled.astype(jnp.bfloat16), wc_ref[...],
                   preferred_element_type=jnp.float32)         # (B, NPAD)
    if not deterministic:
        prod = prod * jnp.float32(1.0 / KEEP_PROB)
    logits = prod + bc_ref[...]
    logits_ref[...] = logits

    # ---- CrossEntropyLoss(mean): mean_b( logsumexp(logits_b) - logits_b[label_b] )
    m = jnp.max(logits, axis=-1, keepdims=True)
    lse = m + jnp.log(jnp.sum(jnp.exp(logits - m), axis=-1, keepdims=True))
    col = lax.broadcasted_iota(jnp.int32, logits.shape, 1)
    target = jnp.sum(jnp.where(col == lbl_ref[...], logits, 0.0),
                     axis=-1, keepdims=True)
    b = logits.shape[0]
    loss_ref[0, 0] = jnp.sum(lse - target) / jnp.float32(b)


def classifier_forward(cls_bf16, wp_bf16, bp, wc_pad, bc_pad, labels, seed,
                       *, deterministic=True):
    """Pallas-call wrapper. Returns (loss scalar, logits[B, NUM_LABELS])."""
    B = cls_bf16.shape[0]
    labels2d = labels.astype(jnp.int32).reshape(B, 1)
    kernel = functools.partial(fused_head_kernel, deterministic=deterministic)
    logits_pad, loss = pl.pallas_call(
        kernel,
        out_shape=(jax.ShapeDtypeStruct((B, NPAD), jnp.float32),
                   jax.ShapeDtypeStruct((1, 1), jnp.float32)),
        in_specs=[
            pl.BlockSpec(memory_space=pltpu.MemorySpace.SMEM),   # seed (1,) i32
            pl.BlockSpec(memory_space=pltpu.MemorySpace.VMEM),   # cls   (B, H)   bf16
            pl.BlockSpec(memory_space=pltpu.MemorySpace.VMEM),   # Wp    (H, H)   bf16
            pl.BlockSpec(memory_space=pltpu.MemorySpace.VMEM),   # bp    (1, H)   f32
            pl.BlockSpec(memory_space=pltpu.MemorySpace.VMEM),   # Wc    (H,NPAD) bf16
            pl.BlockSpec(memory_space=pltpu.MemorySpace.VMEM),   # bc    (1,NPAD) f32
            pl.BlockSpec(memory_space=pltpu.MemorySpace.VMEM),   # label (B, 1)   i32
        ],
        out_specs=(pl.BlockSpec(memory_space=pltpu.MemorySpace.VMEM),
                   pl.BlockSpec(memory_space=pltpu.MemorySpace.SMEM)),
    )(seed, cls_bf16, wp_bf16, bp, wc_pad, bc_pad, labels2d)
    return loss[0, 0], logits_pad[:, :NUM_LABELS]


if __name__ == "__main__":
    B, SEQ, VOCAB = 8, 8, 100

    key = jax.random.PRNGKey(0)
    k_emb, k_wp, k_wc, k_ids, k_lab = jax.random.split(key, 5)

    # ---- module parameters: classifier Linear(1024,3), xavier_uniform W, bias 0
    bound = (6.0 / (HIDDEN + NUM_LABELS)) ** 0.5
    Wc = jax.random.uniform(k_wc, (NUM_LABELS, HIDDEN), jnp.float32, -bound, bound)
    Wc_bf16 = Wc.astype(jnp.bfloat16)
    wc_pad = jnp.zeros((HIDDEN, NPAD), jnp.bfloat16).at[:, :NUM_LABELS].set(Wc_bf16.T)
    bc_pad = jnp.full((1, NPAD), NEG_BIG, jnp.float32).at[0, :NUM_LABELS].set(0.0)

    # ---- inputs consistent with the forward signature
    input_ids = jax.random.randint(k_ids, (B, SEQ), 0, VOCAB)
    labels = jax.random.randint(k_lab, (B,), 0, NUM_LABELS)

    # TODO(synk): `self.bert` is an externally injected encoder (not defined in
    # this module); simulate outputs[1] (pooled_output) with an embedding lookup
    # + [CLS] pooler, whose matmul is fused into the Pallas kernel above.
    emb_table = jax.random.normal(k_emb, (VOCAB, HIDDEN), jnp.float32) * 0.02
    Wp = jax.random.normal(k_wp, (HIDDEN, HIDDEN), jnp.float32) * 0.02
    bp = jnp.zeros((1, HIDDEN), jnp.float32)
    cls = emb_table[input_ids][:, 0, :]                        # (B, H) [CLS] token
    cls_bf16 = cls.astype(jnp.bfloat16)
    wp_bf16 = Wp.astype(jnp.bfloat16)

    seed = jnp.array([0], dtype=jnp.int32)
    # eval mode (dropout = identity) for the deterministic check; pass
    # deterministic=False (with a fresh seed each step) to exercise PRNG dropout.
    loss, logits = classifier_forward(cls_bf16, wp_bf16, bp, wc_pad, bc_pad,
                                      labels, seed, deterministic=True)
    jax.block_until_ready((loss, logits))

    # ---- pure-JAX reference (eval mode) for a sanity check
    pooled_r = jnp.tanh(cls_bf16.astype(jnp.float32) @ wp_bf16.astype(jnp.float32) + bp)
    logits_r = pooled_r @ Wc_bf16.astype(jnp.float32).T
    logp_r = jax.nn.log_softmax(logits_r, axis=-1)
    loss_r = -jnp.mean(logp_r[jnp.arange(B), labels])

    assert logits.shape == (B, NUM_LABELS) and loss.shape == ()
    assert bool(jnp.allclose(logits, logits_r, atol=5e-2, rtol=5e-2))
    assert bool(jnp.allclose(loss, loss_r, atol=5e-2, rtol=5e-2))
    print("KERNEL_OK")
</pallas_src>

<mosaic_0001>
module attributes {stable_mosaic.version = 11 : i64} {
  func.func @fused_head_kernel(%arg0: memref<1xi32, #tpu.memory_space<smem>>, %arg1: memref<8x1024xbf16, #tpu.memory_space<vmem>>, %arg2: memref<1024x1024xbf16, #tpu.memory_space<vmem>>, %arg3: memref<1x1024xf32, #tpu.memory_space<vmem>>, %arg4: memref<1024x128xbf16, #tpu.memory_space<vmem>>, %arg5: memref<1x128xf32, #tpu.memory_space<vmem>>, %arg6: memref<8x1xi32, #tpu.memory_space<vmem>>, %arg7: memref<8x128xf32, #tpu.memory_space<vmem>>, %arg8: memref<1x1xf32, #tpu.memory_space<smem>>) attributes {dimension_semantics = [], scalar_prefetch = 0 : i64, scratch_operands = 0 : i64, tpu.core_type = #tpu.core_type<tc>} {
    %c0 = arith.constant 0 : index
    %c0_0 = arith.constant 0 : index
    %0 = vector.load %arg1[%c0, %c0_0] : memref<8x1024xbf16, #tpu.memory_space<vmem>>, vector<8x1024xbf16>
    %c0_1 = arith.constant 0 : index
    %c0_2 = arith.constant 0 : index
    %1 = vector.load %arg2[%c0_1, %c0_2] : memref<1024x1024xbf16, #tpu.memory_space<vmem>>, vector<1024x1024xbf16>
    %cst = arith.constant dense<0.000000e+00> : vector<8x1024xf32>
    %2 = tpu.matmul %0, %1, %cst {dimension_numbers = #tpu.dot_dimension_numbers<[1], [0], [0], [1], [0, 0, 1, 1], [], []>} : vector<8x1024xbf16>, vector<1024x1024xbf16>, vector<8x1024xf32> -> vector<8x1024xf32>
    %c0_3 = arith.constant 0 : index
    %c0_4 = arith.constant 0 : index
    %3 = vector.load %arg3[%c0_3, %c0_4] : memref<1x1024xf32, #tpu.memory_space<vmem>>, vector<1x1024xf32>
    %4 = vector.broadcast %3 : vector<1x1024xf32> to vector<8x1024xf32>
    %5 = arith.addf %2, %4 : vector<8x1024xf32>
    %6 = math.tanh %5 : vector<8x1024xf32>
    %7 = arith.truncf %6 : vector<8x1024xf32> to vector<8x1024xbf16>
    %c0_5 = arith.constant 0 : index
    %c0_6 = arith.constant 0 : index
    %8 = vector.load %arg4[%c0_5, %c0_6] : memref<1024x128xbf16, #tpu.memory_space<vmem>>, vector<1024x128xbf16>
    %cst_7 = arith.constant dense<0.000000e+00> : vector<8x128xf32>
    %9 = tpu.matmul %7, %8, %cst_7 {dimension_numbers = #tpu.dot_dimension_numbers<[1], [0], [0], [1], [0, 0, 1, 1], [], []>} : vector<8x1024xbf16>, vector<1024x128xbf16>, vector<8x128xf32> -> vector<8x128xf32>
    %c0_8 = arith.constant 0 : index
    %c0_9 = arith.constant 0 : index
    %10 = vector.load %arg5[%c0_8, %c0_9] : memref<1x128xf32, #tpu.memory_space<vmem>>, vector<1x128xf32>
    %11 = vector.broadcast %10 : vector<1x128xf32> to vector<8x128xf32>
    %12 = arith.addf %9, %11 : vector<8x128xf32>
    %c0_10 = arith.constant 0 : index
    %c0_11 = arith.constant 0 : index
    %13 = vector.load %arg7[%c0_10, %c0_11] : memref<8x128xf32, #tpu.memory_space<vmem>>, vector<8x128xf32>
    tpu.vector_store %arg7[%c0_10, %c0_11], %12 {strides = array<i32>} : memref<8x128xf32, #tpu.memory_space<vmem>>, vector<8x128xf32>,
    %cst_12 = arith.constant dense<0xFF800000> : vector<8xf32>
    %14 = vector.multi_reduction <maximumf>, %12, %cst_12 [1] : vector<8x128xf32> to vector<8xf32>
    %15 = vector.shape_cast %14 : vector<8xf32> to vector<8x1xf32>
    %16 = vector.broadcast %15 : vector<8x1xf32> to vector<8x128xf32>
    %17 = arith.subf %12, %16 : vector<8x128xf32>
    %18 = math.exp %17 : vector<8x128xf32>
    %cst_13 = arith.constant dense<0.000000e+00> : vector<8xf32>
    %19 = vector.multi_reduction <add>, %18, %cst_13 [1] : vector<8x128xf32> to vector<8xf32>
    %20 = vector.shape_cast %19 : vector<8xf32> to vector<8x1xf32>
    %21 = math.log %20 : vector<8x1xf32>
    %22 = arith.addf %15, %21 : vector<8x1xf32>
    %23 = tpu.iota {dimensions = array<i32: 1>} : vector<8x128xi32>
    %c0_14 = arith.constant 0 : index
    %c0_15 = arith.constant 0 : index
    %24 = vector.load %arg6[%c0_14, %c0_15] : memref<8x1xi32, #tpu.memory_space<vmem>>, vector<8x1xi32>
    %25 = vector.broadcast %24 : vector<8x1xi32> to vector<8x128xi32>
    %26 = arith.cmpi eq, %23, %25 : vector<8x128xi32>
    %cst_16 = arith.constant 0.000000e+00 : f32
    %27 = vector.broadcast %cst_16 : f32 to vector<8x128xf32>
    %28 = arith.select %26, %12, %27 : vector<8x128xi1>, vector<8x128xf32>
    %cst_17 = arith.constant dense<0.000000e+00> : vector<8xf32>
    %29 = vector.multi_reduction <add>, %28, %cst_17 [1] : vector<8x128xf32> to vector<8xf32>
    %30 = vector.shape_cast %29 : vector<8xf32> to vector<8x1xf32>
    %31 = arith.subf %22, %30 : vector<8x1xf32>
    %32 = vector.shape_cast %31 : vector<8x1xf32> to vector<1x8x1xf32>
    %cst_18 = arith.constant dense<0.000000e+00> : vector<1xf32>
    %33 = vector.multi_reduction <add>, %32, %cst_18 [1, 2] : vector<1x8x1xf32> to vector<1xf32>
    %34 = vector.shape_cast %33 : vector<1xf32> to vector<1x1x1xf32>
    %35 = vector.extract %34[0, 0, 0] : f32 from vector<1x1x1xf32>
    %cst_19 = arith.constant 8.000000e+00 : f32
    %36 = arith.divf %35, %cst_19 : f32
    %c0_20 = arith.constant 0 : index
    %c0_21 = arith.constant 0 : index
    %37 = memref.load %arg8[%c0_20, %c0_21] : memref<1x1xf32, #tpu.memory_space<smem>>
    memref.store %36, %arg8[%c0_20, %c0_21] : memref<1x1xf32, #tpu.memory_space<smem>>
    return
  }
}

</mosaic_0001>

<llo_original>
// kernel: tpu_custom_call.1
$region0: #{tpu_custom_call.1}
  #allocation0 [shape = 'u32[]', space=smem, size = 0x4, offset = 0x4, fixed_abs, tag = 'smem constant byte address 0x4 - core index']
  #allocation1 [shape = 'u32[144,128]{1,0:T(1,128)}', space=vmem, size = 0x12000, scoped, tag = 'internal scratch']
  #allocation2 [shape = 's32[1]{0:T(128)S(6)}', space=smem, size = 0x200, scoped, tag = 'scoped memory for tpu_custom_call.1']
  %s0 = inlined_call_operand.<no memory space> [shape: s32[1], index: 0, kind: input, shape index: {}]
  %s1 = inlined_call_operand.hbm [shape: bf16[8,1024], index: 1, kind: input, shape index: {}]
  %s2 = inlined_call_operand.hbm [shape: bf16[1024,1024], index: 2, kind: input, shape index: {}]
  %s3 = inlined_call_operand.hbm [shape: f32[1,1024], index: 3, kind: input, shape index: {}]
  %s4 = inlined_call_operand.hbm [shape: bf16[1024,128], index: 4, kind: input, shape index: {}]
  %s5 = inlined_call_operand.hbm [shape: f32[1,128], index: 5, kind: input, shape index: {}]
  %s6 = inlined_call_operand.vmem [shape: s32[8,1], index: 6, kind: input, shape index: {}]
  %s7 = inlined_call_operand.hbm [shape: f32[8,128], index: 7, kind: output, shape index: {0}]
  %s8 = inlined_call_operand.hbm [shape: f32[1,1], index: 8, kind: output, shape index: {1}]
  %9 = xla_tuple %s7, %s8
  %s10 = sld [smem:[#allocation0]]
  $region66: #{tpu_custom_call.1} parent=0
    _
  %s12 = ssub.s32 1, %s10
  %s13 = scalar_select 0, %s12, %s10
  %14 = sst [smem:[#allocation2]] %s0
  $region1: #{tpu_custom_call.1} parent=0
    #allocation3 [shape = 'u8[16384]{0}', space=vmem, size = 0x4000, scoped, tag = 'input window, operand 1, single buffered']
    #allocation4 [shape = 's32[1]{0}', space=sflag, size = 0x4, scoped, tag = 'scoped memory for tpu_custom_call.1']
    #allocation5 [shape = 's32[1]{0}', space=sflag, size = 0x4, scoped, tag = 'scoped memory for tpu_custom_call.1']
    #allocation6 [shape = 's32[1]{0}', space=sflag, size = 0x4, scoped, tag = 'scoped memory for tpu_custom_call.1']
    #allocation7 [shape = 'u8[2097152]{0}', space=vmem, size = 0x200000, scoped, tag = 'input window, operand 2, single buffered']
    #allocation8 [shape = 's32[1]{0}', space=sflag, size = 0x4, scoped, tag = 'scoped memory for tpu_custom_call.1']
    #allocation9 [shape = 'u8[4096]{0}', space=vmem, size = 0x1000, scoped, tag = 'input window, operand 3, single buffered']
    #allocation10 [shape = 'u8[262144]{0}', space=vmem, size = 0x40000, scoped, tag = 'input window, operand 4, single buffered']
    #allocation11 [shape = 's32[1]{0}', space=sflag, size = 0x4, scoped, tag = 'scoped memory for tpu_custom_call.1']
    #allocation12 [shape = 'u8[512]{0}', space=vmem, size = 0x400, scoped, tag = 'input window, operand 5, single buffered']
    #allocation13 [shape = 'u8[4096]{0}', space=vmem, size = 0x1000, scoped, tag = 'output window, operand 0, single buffered']
    #allocation14 [shape = 'u8[512]{0}', space=smem, size = 0x200, scoped, tag = 'output window, operand 1, single buffered']
    %15 = vsyncpa [#allocation4], 0
    %16 = vsyncpa [#allocation8], 0
    %17 = vsyncpa [#allocation11], 0
    %18 = vsyncpa [#allocation5], 0
    %19 = vsyncpa [#allocation6], 0
    // Predicated region
    $region2: #{tpu_custom_call.1} parent=1 // pred_check
      _
    $region3: #{tpu_custom_call.1} parent=1 // pred_check_branch
      %21 = sbr.rel (0) target = $region5
    $region4: #{tpu_custom_call.1} parent=1 // pred_region
      _
    $region5: #{tpu_custom_call.1} parent=1 // pred_fallthru
      _
    // Predicated region
    $region6: #{tpu_custom_call.1} parent=1 // pred_check
      _
    $region7: #{tpu_custom_call.1} parent=1 // pred_check_branch
      %23 = sbr.rel (0) target = $region9
    $region8: #{tpu_custom_call.1} parent=1 // pred_region
      %s25 = ssub.s32 512, 512
      %26 = vsyncadd [#allocation4], %s25
      %s28 = sshll.u32 [#allocation3], 4
      %s29 = int_to_ptr.vmem [resolvable:$true] %s28
      %31 = dma.hbm_to_vmem [thread:$0]  %s1, 512, %s29, [#allocation4]
    $region9: #{tpu_custom_call.1} parent=1 // pred_fallthru
      _
    // Predicated region
    $region10: #{tpu_custom_call.1} parent=1 // pred_check
      _
    $region11: #{tpu_custom_call.1} parent=1 // pred_check_branch
      %33 = sbr.rel (0) target = $region13
    $region12: #{tpu_custom_call.1} parent=1 // pred_region
      %s35 = ssub.s32 65536, 65536
      %36 = vsyncadd [#allocation8], %s35
      %s37 = sshll.u32 [#allocation7], 4
      %s38 = int_to_ptr.vmem [resolvable:$true] %s37
      %43 = dma.hbm_to_vmem [thread:$0]  %s2, 65536, %s38, [#allocation8], 512, 512, 32
    $region13: #{tpu_custom_call.1} parent=1 // pred_fallthru
      _
    // Predicated region
    $region14: #{tpu_custom_call.1} parent=1 // pred_check
      _
    $region15: #{tpu_custom_call.1} parent=1 // pred_check_branch
      %45 = sbr.rel (0) target = $region17
    $region16: #{tpu_custom_call.1} parent=1 // pred_region
      %s47 = ssub.s32 128, 128
      %48 = vsyncadd [#allocation8], %s47
      %s50 = sshll.u32 [#allocation9], 4
      %s51 = int_to_ptr.vmem [resolvable:$true] %s50
      %53 = dma.hbm_to_vmem [thread:$0]  %s3, 128, %s51, [#allocation8]
    $region17: #{tpu_custom_call.1} parent=1 // pred_fallthru
      _
    // Predicated region
    $region18: #{tpu_custom_call.1} parent=1 // pred_check
      _
    $region19: #{tpu_custom_call.1} parent=1 // pred_check_branch
      %55 = sbr.rel (0) target = $region21
    $region20: #{tpu_custom_call.1} parent=1 // pred_region
      %s57 = ssub.s32 8192, 8192
      %58 = vsyncadd [#allocation11], %s57
      %s59 = sshll.u32 [#allocation10], 4
      %s60 = int_to_ptr.vmem [resolvable:$true] %s59
      %65 = dma.hbm_to_vmem [thread:$0]  %s4, 8192, %s60, [#allocation11], 64, 64, 4
    $region21: #{tpu_custom_call.1} parent=1 // pred_fallthru
      _
    // Predicated region
    $region22: #{tpu_custom_call.1} parent=1 // pred_check
      _
    $region23: #{tpu_custom_call.1} parent=1 // pred_check_branch
      %67 = sbr.rel (0) target = $region25
    $region24: #{tpu_custom_call.1} parent=1 // pred_region
      %s69 = ssub.s32 16, 16
      %70 = vsyncadd [#allocation11], %s69
      %s72 = sshll.u32 [#allocation12], 4
      %s73 = int_to_ptr.vmem [resolvable:$true] %s72
      %75 = dma.hbm_to_vmem [thread:$0]  %s5, 16, %s73, [#allocation11]
    $region25: #{tpu_custom_call.1} parent=1 // pred_fallthru
      _
    // Predicated region
    $region26: #{tpu_custom_call.1} parent=1 // pred_check
      _
    $region27: #{tpu_custom_call.1} parent=1 // pred_check_branch
      %77 = sbr.rel (0) target = $region29
    $region28: #{tpu_custom_call.1} parent=1 // pred_region
      _
    $region29: #{tpu_custom_call.1} parent=1 // pred_fallthru
      _
    // Predicated region
    $region30: #{tpu_custom_call.1} parent=1 // pred_check
      _
    $region31: #{tpu_custom_call.1} parent=1 // pred_check_branch
      %79 = sbr.rel (0) target = $region33
    $region32: #{tpu_custom_call.1} parent=1 // pred_region
      %80 = dma.done [#allocation4], 512
    $region33: #{tpu_custom_call.1} parent=1 // pred_fallthru
      _
    // Predicated region
    $region34: #{tpu_custom_call.1} parent=1 // pred_check
      _
    $region35: #{tpu_custom_call.1} parent=1 // pred_check_branch
      %82 = sbr.rel (0) target = $region37
    $region36: #{tpu_custom_call.1} parent=1 // pred_region
      %83 = dma.done [#allocation8], 65536
    $region37: #{tpu_custom_call.1} parent=1 // pred_fallthru
      _
    // Predicated region
    $region38: #{tpu_custom_call.1} parent=1 // pred_check
      _
    $region39: #{tpu_custom_call.1} parent=1 // pred_check_branch
      %85 = sbr.rel (0) target = $region41
    $region40: #{tpu_custom_call.1} parent=1 // pred_region
      %86 = dma.done [#allocation8], 128
    $region41: #{tpu_custom_call.1} parent=1 // pred_fallthru
      _
    // Predicated region
    $region42: #{tpu_custom_call.1} parent=1 // pred_check
      _
    $region43: #{tpu_custom_call.1} parent=1 // pred_check_branch
      %88 = sbr.rel (0) target = $region45
    $region44: #{tpu_custom_call.1} parent=1 // pred_region
      %89 = dma.done [#allocation11], 8192
    $region45: #{tpu_custom_call.1} parent=1 // pred_fallthru
      _
    // Predicated region
    $region46: #{tpu_custom_call.1} parent=1 // pred_check
      _
    $region47: #{tpu_custom_call.1} parent=1 // pred_check_branch
      %91 = sbr.rel (0) target = $region49
    $region48: #{tpu_custom_call.1} parent=1 // pred_region
      %92 = dma.done [#allocation11], 16
    $region49: #{tpu_custom_call.1} parent=1 // pred_fallthru
      _
    %v94 = vld [vmem:[#allocation3] sm:$0xff]
    %v95 = vld [vmem:[#allocation3 + $0x8] sm:$0xff]
    %v96 = vld [vmem:[#allocation3 + $0x10] sm:$0xff]
    %v97 = vld [vmem:[#allocation3 + $0x18] sm:$0xff]
    %v98 = vld [vmem:[#allocation7] sm:$0xff]
    %v99 = vld [vmem:[#allocation7 + $0x8] sm:$0xff]
    %v100 = vld [vmem:[#allocation7 + $0x10] sm:$0xff]
    %v101 = vld [vmem:[#allocation7 + $0x18] sm:$0xff]
    %v102 = vld [vmem:[#allocation7 + $0x20] sm:$0xff]
    %v103 = vld [vmem:[#allocation7 + $0x28] sm:$0xff]
    %v104 = vld [vmem:[#allocation7 + $0x30] sm:$0xff]
    %v105 = vld [vmem:[#allocation7 + $0x38] sm:$0xff]
    %v106 = vld [vmem:[#allocation7 + $0x40] sm:$0xff]
    %v107 = vld [vmem:[#allocation7 + $0x48] sm:$0xff]
    %v108 = vld [vmem:[#allocation7 + $0x50] sm:$0xff]
    %v109 = vld [vmem:[#allocation7 + $0x58] sm:$0xff]
    %v110 = vld [vmem:[#allocation7 + $0x60] sm:$0xff]
    %v111 = vld [vmem:[#allocation7 + $0x68] sm:$0xff]
    %v112 = vld [vmem:[#allocation7 + $0x70] sm:$0xff]
    %v113 = vld [vmem:[#allocation7 + $0x78] sm:$0xff]
    %v114 = vld [vmem:[#allocation7 + $0x80] sm:$0xff]
    %v115 = vld [vmem:[#allocation7 + $0x88] sm:$0xff]
    %v116 = vld [vmem:[#allocation7 + $0x90] sm:$0xff]
    %v117 = vld [vmem:[#allocation7 + $0x98] sm:$0xff]
    %v118 = vld [vmem:[#allocation7 + $0xa0] sm:$0xff]
    %v119 = vld [vmem:[#allocation7 + $0xa8] sm:$0xff]
    %v120 = vld [vmem:[#allocation7 + $0xb0] sm:$0xff]
    %v121 = vld [vmem:[#allocation7 + $0xb8] sm:$0xff]
    %v122 = vld [vmem:[#allocation7 + $0xc0] sm:$0xff]
    %v123 = vld [vmem:[#allocation7 + $0xc8] sm:$0xff]
    %v124 = vld [vmem:[#allocation7 + $0xd0] sm:$0xff]
    %v125 = vld [vmem:[#allocation7 + $0xd8] sm:$0xff]
    %v126 = vld [vmem:[#allocation7 + $0xe0] sm:$0xff]
    %v127 = vld [vmem:[#allocation7 + $0xe8] sm:$0xff]
    %v128 = vld [vmem:[#allocation7 + $0xf0] sm:$0xff]
    %v129 = vld [vmem:[#allocation7 + $0xf8] sm:$0xff]
    %v130 = vld [vmem:[#allocation7 + $0x100] sm:$0xff]
    %v131 = vld [vmem:[#allocation7 + $0x108] sm:$0xff]
    %v132 = vld [vmem:[#allocation7 + $0x110] sm:$0xff]
    %v133 = vld [vmem:[#allocation7 + $0x118] sm:$0xff]
    %v134 = vld [vmem:[#allocation7 + $0x120] sm:$0xff]
    %v135 = vld [vmem:[#allocation7 + $0x128] sm:$0xff]
    %v136 = vld [vmem:[#allocation7 + $0x130] sm:$0xff]
    %v137 = vld [vmem:[#allocation7 + $0x138] sm:$0xff]
    %v138 = vld [vmem:[#allocation7 + $0x140] sm:$0xff]
    %v139 = vld [vmem:[#allocation7 + $0x148] sm:$0xff]
    %v140 = vld [vmem:[#allocation7 + $0x150] sm:$0xff]
    %v141 = vld [vmem:[#allocation7 + $0x158] sm:$0xff]
    %v142 = vld [vmem:[#allocation7 + $0x160] sm:$0xff]
    %v143 = vld [vmem:[#allocation7 + $0x168] sm:$0xff]
    %v144 = vld [vmem:[#allocation7 + $0x170] sm:$0xff]
    %v145 = vld [vmem:[#allocation7 + $0x178] sm:$0xff]
    %v146 = vld [vmem:[#allocation7 + $0x180] sm:$0xff]
    %v147 = vld [vmem:[#allocation7 + $0x188] sm:$0xff]
    %v148 = vld [vmem:[#allocation7 + $0x190] sm:$0xff]
    %v149 = vld [vmem:[#allocation7 + $0x198] sm:$0xff]
    %v150 = vld [vmem:[#allocation7 + $0x1a0] sm:$0xff]
    %v151 = vld [vmem:[#allocation7 + $0x1a8] sm:$0xff]
    %v152 = vld [vmem:[#allocation7 + $0x1b0] sm:$0xff]
    %v153 = vld [vmem:[#allocation7 + $0x1b8] sm:$0xff]
    %v154 = vld [vmem:[#allocation7 + $0x1c0] sm:$0xff]
    %v155 = vld [vmem:[#allocation7 + $0x1c8] sm:$0xff]
    %v156 = vld [vmem:[#allocation7 + $0x1d0] sm:$0xff]
    %v157 = vld [vmem:[#allocation7 + $0x1d8] sm:$0xff]
    %v158 = vld [vmem:[#allocation7 + $0x1e0] sm:$0xff]
    %v159 = vld [vmem:[#allocation7 + $0x1e8] sm:$0xff]
    %v160 = vld [vmem:[#allocation7 + $0x1f0] sm:$0xff]
    %v161 = vld [vmem:[#allocation7 + $0x1f8] sm:$0xff]
    %v162 = vld [vmem:[#allocation7 + $0x200] sm:$0xff]
    %v163 = vld [vmem:[#allocation7 + $0x208] sm:$0xff]
    %v164 = vld [vmem:[#allocation7 + $0x210] sm:$0xff]
    %v165 = vld [vmem:[#allocation7 + $0x218] sm:$0xff]
    %v166 = vld [vmem:[#allocation7 + $0x220] sm:$0xff]
    %v167 = vld [vmem:[#allocation7 + $0x228] sm:$0xff]
    %v168 = vld [vmem:[#allocation7 + $0x230] sm:$0xff]
    %v169 = vld [vmem:[#allocation7 + $0x238] sm:$0xff]
    %v170 = vld [vmem:[#allocation7 + $0x240] sm:$0xff]
    %v171 = vld [vmem:[#allocation7 + $0x248] sm:$0xff]
    %v172 = vld [vmem:[#allocation7 + $0x250] sm:$0xff]
    %v173 = vld [vmem:[#allocation7 + $0x258] sm:$0xff]
    %v174 = vld [vmem:[#allocation7 + $0x260] sm:$0xff]
    %v175 = vld [vmem:[#allocation7 + $0x268] sm:$0xff]
    %v176 = vld [vmem:[#allocation7 + $0x270] sm:$0xff]
    %v177 = vld [vmem:[#allocation7 + $0x278] sm:$0xff]
    %v178 = vld [vmem:[#allocation7 + $0x280] sm:$0xff]
    %v179 = vld [vmem:[#allocation7 + $0x288] sm:$0xff]
    %v180 = vld [vmem:[#allocation7 + $0x290] sm:$0xff]
    %v181 = vld [vmem:[#allocation7 + $0x298] sm:$0xff]
    %v182 = vld [vmem:[#allocation7 + $0x2a0] sm:$0xff]
    %v183 = vld [vmem:[#allocation7 + $0x2a8] sm:$0xff]
    %v184 = vld [vmem:[#allocation7 + $0x2b0] sm:$0xff]
    %v185 = vld [vmem:[#allocation7 + $0x2b8] sm:$0xff]
    %v186 = vld [vmem:[#allocation7 + $0x2c0] sm:$0xff]
    %v187 = vld [vmem:[#allocation7 + $0x2c8] sm:$0xff]
    %v188 = vld [vmem:[#allocation7 + $0x2d0] sm:$0xff]
    %v189 = vld [vmem:[#allocation7 + $0x2d8] sm:$0xff]
    %v190 = vld [vmem:[#allocation7 + $0x2e0] sm:$0xff]
    %v191 = vld [vmem:[#allocation7 + $0x2e8] sm:$0xff]
    %v192 = vld [vmem:[#allocation7 + $0x2f0] sm:$0xff]
    %v193 = vld [vmem:[#allocation7 + $0x2f8] sm:$0xff]
    %v194 = vld [vmem:[#allocation7 + $0x300] sm:$0xff]
    %v195 = vld [vmem:[#allocation7 + $0x308] sm:$0xff]
    %v196 = vld [vmem:[#allocation7 + $0x310] sm:$0xff]
    %v197 = vld [vmem:[#allocation7 + $0x318] sm:$0xff]
    %v198 = vld [vmem:[#allocation7 + $0x320] sm:$0xff]
    %v199 = vld [vmem:[#allocation7 + $0x328] sm:$0xff]
    %v200 = vld [vmem:[#allocation7 + $0x330] sm:$0xff]
    %v201 = vld [vmem:[#allocation7 + $0x338] sm:$0xff]
    %v202 = vld [vmem:[#allocation7 + $0x340] sm:$0xff]
    %v203 = vld [vmem:[#allocation7 + $0x348] sm:$0xff]
    %v204 = vld [vmem:[#allocation7 + $0x350] sm:$0xff]
    %v205 = vld [vmem:[#allocation7 + $0x358] sm:$0xff]
    %v206 = vld [vmem:[#allocation7 + $0x360] sm:$0xff]
    %v207 = vld [vmem:[#allocation7 + $0x368] sm:$0xff]
    %v208 = vld [vmem:[#allocation7 + $0x370] sm:$0xff]
    %v209 = vld [vmem:[#allocation7 + $0x378] sm:$0xff]
    %v210 = vld [vmem:[#allocation7 + $0x380] sm:$0xff]
    %v211 = vld [vmem:[#allocation7 + $0x388] sm:$0xff]
    %v212 = vld [vmem:[#allocation7 + $0x390] sm:$0xff]
    %v213 = vld [vmem:[#allocation7 + $0x398] sm:$0xff]
    %v214 = vld [vmem:[#allocation7 + $0x3a0] sm:$0xff]
    %v215 = vld [vmem:[#allocation7 + $0x3a8] sm:$0xff]
    %v216 = vld [vmem:[#allocation7 + $0x3b0] sm:$0xff]
    %v217 = vld [vmem:[#allocation7 + $0x3b8] sm:$0xff]
    %v218 = vld [vmem:[#allocation7 + $0x3c0] sm:$0xff]
    %v219 = vld [vmem:[#allocation7 + $0x3c8] sm:$0xff]
    %v220 = vld [vmem:[#allocation7 + $0x3d0] sm:$0xff]
    %v221 = vld [vmem:[#allocation7 + $0x3d8] sm:$0xff]
    %v222 = vld [vmem:[#allocation7 + $0x3e0] sm:$0xff]
    %v223 = vld [vmem:[#allocation7 + $0x3e8] sm:$0xff]
    %v224 = vld [vmem:[#allocation7 + $0x3f0] sm:$0xff]
    %v225 = vld [vmem:[#allocation7 + $0x3f8] sm:$0xff]
    %v226 = vld [vmem:[#allocation7 + $0x400] sm:$0xff]
    %v227 = vld [vmem:[#allocation7 + $0x408] sm:$0xff]
    %v228 = vld [vmem:[#allocation7 + $0x410] sm:$0xff]
    %v229 = vld [vmem:[#allocation7 + $0x418] sm:$0xff]
    %v230 = vld [vmem:[#allocation7 + $0x420] sm:$0xff]
    %v231 = vld [vmem:[#allocation7 + $0x428] sm:$0xff]
    %v232 = vld [vmem:[#allocation7 + $0x430] sm:$0xff]
    %v233 = vld [vmem:[#allocation7 + $0x438] sm:$0xff]
    %v234 = vld [vmem:[#allocation7 + $0x440] sm:$0xff]
    %v235 = vld [vmem:[#allocation7 + $0x448] sm:$0xff]
    %v236 = vld [vmem:[#allocation7 + $0x450] sm:$0xff]
    %v237 = vld [vmem:[#allocation7 + $0x458] sm:$0xff]
    %v238 = vld [vmem:[#allocation7 + $0x460] sm:$0xff]
    %v239 = vld [vmem:[#allocation7 + $0x468] sm:$0xff]
    %v240 = vld [vmem:[#allocation7 + $0x470] sm:$0xff]
    %v241 = vld [vmem:[#allocation7 + $0x478] sm:$0xff]
    %v242 = vld [vmem:[#allocation7 + $0x480] sm:$0xff]
    %v243 = vld [vmem:[#allocation7 + $0x488] sm:$0xff]
    %v244 = vld [vmem:[#allocation7 + $0x490] sm:$0xff]
    %v245 = vld [vmem:[#allocation7 + $0x498] sm:$0xff]
    %v246 = vld [vmem:[#allocation7 + $0x4a0] sm:$0xff]
    %v247 = vld [vmem:[#allocation7 + $0x4a8] sm:$0xff]
    %v248 = vld [vmem:[#allocation7 + $0x4b0] sm:$0xff]
    %v249 = vld [vmem:[#allocation7 + $0x4b8] sm:$0xff]
    %v250 = vld [vmem:[#allocation7 + $0x4c0] sm:$0xff]
    %v251 = vld [vmem:[#allocation7 + $0x4c8] sm:$0xff]
    %v252 = vld [vmem:[#allocation7 + $0x4d0] sm:$0xff]
    %v253 = vld [vmem:[#allocation7 + $0x4d8] sm:$0xff]
    %v254 = vld [vmem:[#allocation7 + $0x4e0] sm:$0xff]
    %v255 = vld [vmem:[#allocation7 + $0x4e8] sm:$0xff]
    %v256 = vld [vmem:[#allocation7 + $0x4f0] sm:$0xff]
    %v257 = vld [vmem:[#allocation7 + $0x4f8] sm:$0xff]
    %v258 = vld [vmem:[#allocation7 + $0x500] sm:$0xff]
    %v259 = vld [vmem:[#allocation7 + $0x508] sm:$0xff]
    %v260 = vld [vmem:[#allocation7 + $0x510] sm:$0xff]
    %v261 = vld [vmem:[#allocation7 + $0x518] sm:$0xff]
    %v262 = vld [vmem:[#allocation7 + $0x520] sm:$0xff]
    %v263 = vld [vmem:[#allocation7 + $0x528] sm:$0xff]
    %v264 = vld [vmem:[#allocation7 + $0x530] sm:$0xff]
    %v265 = vld [vmem:[#allocation7 + $0x538] sm:$0xff]
    %v266 = vld [vmem:[#allocation7 + $0x540] sm:$0xff]
    %v267 = vld [vmem:[#allocation7 + $0x548] sm:$0xff]
    %v268 = vld [vmem:[#allocation7 + $0x550] sm:$0xff]
    %v269 = vld [vmem:[#allocation7 + $0x558] sm:$0xff]
    %v270 = vld [vmem:[#allocation7 + $0x560] sm:$0xff]
    %v271 = vld [vmem:[#allocation7 + $0x568] sm:$0xff]
    %v272 = vld [vmem:[#allocation7 + $0x570] sm:$0xff]
    %v273 = vld [vmem:[#allocation7 + $0x578] sm:$0xff]
    %v274 = vld [vmem:[#allocation7 + $0x580] sm:$0xff]
    %v275 = vld [vmem:[#allocation7 + $0x588] sm:$0xff]
    %v276 = vld [vmem:[#allocation7 + $0x590] sm:$0xff]
    %v277 = vld [vmem:[#allocation7 + $0x598] sm:$0xff]
    %v278 = vld [vmem:[#allocation7 + $0x5a0] sm:$0xff]
    %v279 = vld [vmem:[#allocation7 + $0x5a8] sm:$0xff]
    %v280 = vld [vmem:[#allocation7 + $0x5b0] sm:$0xff]
    %v281 = vld [vmem:[#allocation7 + $0x5b8] sm:$0xff]
    %v282 = vld [vmem:[#allocation7 + $0x5c0] sm:$0xff]
    %v283 = vld [vmem:[#allocation7 + $0x5c8] sm:$0xff]
    %v284 = vld [vmem:[#allocation7 + $0x5d0] sm:$0xff]
    %v285 = vld [vmem:[#allocation7 + $0x5d8] sm:$0xff]
    %v286 = vld [vmem:[#allocation7 + $0x5e0] sm:$0xff]
    %v287 = vld [vmem:[#allocation7 + $0x5e8] sm:$0xff]
    %v288 = vld [vmem:[#allocation7 + $0x5f0] sm:$0xff]
    %v289 = vld [vmem:[#allocation7 + $0x5f8] sm:$0xff]
    %v290 = vld [vmem:[#allocation7 + $0x600] sm:$0xff]
    %v291 = vld [vmem:[#allocation7 + $0x608] sm:$0xff]
    %v292 = vld [vmem:[#allocation7 + $0x610] sm:$0xff]
    %v293 = vld [vmem:[#allocation7 + $0x618] sm:$0xff]
    %v294 = vld [vmem:[#allocation7 + $0x620] sm:$0xff]
    %v295 = vld [vmem:[#allocation7 + $0x628] sm:$0xff]
    %v296 = vld [vmem:[#allocation7 + $0x630] sm:$0xff]
    %v297 = vld [vmem:[#allocation7 + $0x638] sm:$0xff]
    %v298 = vld [vmem:[#allocation7 + $0x640] sm:$0xff]
    %v299 = vld [vmem:[#allocation7 + $0x648] sm:$0xff]
    %v300 = vld [vmem:[#allocation7 + $0x650] sm:$0xff]
    %v301 = vld [vmem:[#allocation7 + $0x658] sm:$0xff]
    %v302 = vld [vmem:[#allocation7 + $0x660] sm:$0xff]
    %v303 = vld [vmem:[#allocation7 + $0x668] sm:$0xff]
    %v304 = vld [vmem:[#allocation7 + $0x670] sm:$0xff]
    %v305 = vld [vmem:[#allocation7 + $0x678] sm:$0xff]
    %v306 = vld [vmem:[#allocation7 + $0x680] sm:$0xff]
    %v307 = vld [vmem:[#allocation7 + $0x688] sm:$0xff]
    %v308 = vld [vmem:[#allocation7 + $0x690] sm:$0xff]
    %v309 = vld [vmem:[#allocation7 + $0x698] sm:$0xff]
    %v310 = vld [vmem:[#allocation7 + $0x6a0] sm:$0xff]
    %v311 = vld [vmem:[#allocation7 + $0x6a8] sm:$0xff]
    %v312 = vld [vmem:[#allocation7 + $0x6b0] sm:$0xff]
    %v313 = vld [vmem:[#allocation7 + $0x6b8] sm:$0xff]
    %v314 = vld [vmem:[#allocation7 + $0x6c0] sm:$0xff]
    %v315 = vld [vmem:[#allocation7 + $0x6c8] sm:$0xff]
    %v316 = vld [vmem:[#allocation7 + $0x6d0] sm:$0xff]
    %v317 = vld [vmem:[#allocation7 + $0x6d8] sm:$0xff]
    %v318 = vld [vmem:[#allocation7 + $0x6e0] sm:$0xff]
    %v319 = vld [vmem:[#allocation7 + $0x6e8] sm:$0xff]
    %v320 = vld [vmem:[#allocation7 + $0x6f0] sm:$0xff]
    %v321 = vld [vmem:[#allocation7 + $0x6f8] sm:$0xff]
    %v322 = vld [vmem:[#allocation7 + $0x700] sm:$0xff]
    %v323 = vld [vmem:[#allocation7 + $0x708] sm:$0xff]
    %v324 = vld [vmem:[#allocation7 + $0x710] sm:$0xff]
    %v325 = vld [vmem:[#allocation7 + $0x718] sm:$0xff]
    %v326 = vld [vmem:[#allocation7 + $0x720] sm:$0xff]
    %v327 = vld [vmem:[#allocation7 + $0x728] sm:$0xff]
    %v328 = vld [vmem:[#allocation7 + $0x730] sm:$0xff]
    %v329 = vld [vmem:[#allocation7 + $0x738] sm:$0xff]
    %v330 = vld [vmem:[#allocation7 + $0x740] sm:$0xff]
    %v331 = vld [vmem:[#allocation7 + $0x748] sm:$0xff]
    %v332 = vld [vmem:[#allocation7 + $0x750] sm:$0xff]
    %v333 = vld [vmem:[#allocation7 + $0x758] sm:$0xff]
    %v334 = vld [vmem:[#allocation7 + $0x760] sm:$0xff]
    %v335 = vld [vmem:[#allocation7 + $0x768] sm:$0xff]
    %v336 = vld [vmem:[#allocation7 + $0x770] sm:$0xff]
    %v337 = vld [vmem:[#allocation7 + $0x778] sm:$0xff]
    %v338 = vld [vmem:[#allocation7 + $0x780] sm:$0xff]
    %v339 = vld [vmem:[#allocation7 + $0x788] sm:$0xff]
    %v340 = vld [vmem:[#allocation7 + $0x790] sm:$0xff]
    %v341 = vld [vmem:[#allocation7 + $0x798] sm:$0xff]
    %v342 = vld [vmem:[#allocation7 + $0x7a0] sm:$0xff]
    %v343 = vld [vmem:[#allocation7 + $0x7a8] sm:$0xff]
    %v344 = vld [vmem:[#allocation7 + $0x7b0] sm:$0xff]
    %v345 = vld [vmem:[#allocation7 + $0x7b8] sm:$0xff]
    %v346 = vld [vmem:[#allocation7 + $0x7c0] sm:$0xff]
    %v347 = vld [vmem:[#allocation7 + $0x7c8] sm:$0xff]
    %v348 = vld [vmem:[#allocation7 + $0x7d0] sm:$0xff]
    %v349 = vld [vmem:[#allocation7 + $0x7d8] sm:$0xff]
    %v350 = vld [vmem:[#allocation7 + $0x7e0] sm:$0xff]
    %v351 = vld [vmem:[#allocation7 + $0x7e8] sm:$0xff]
    %v352 = vld [vmem:[#allocation7 + $0x7f0] sm:$0xff]
    %v353 = vld [vmem:[#allocation7 + $0x7f8] sm:$0xff]
    %v354 = vld [vmem:[#allocation7 + $0x800] sm:$0xff]
    %v355 = vld [vmem:[#allocation7 + $0x808] sm:$0xff]
    %v356 = vld [vmem:[#allocation7 + $0x810] sm:$0xff]
    %v357 = vld [vmem:[#allocation7 + $0x818] sm:$0xff]
    %v358 = vld [vmem:[#allocation7 + $0x820] sm:$0xff]
    %v359 = vld [vmem:[#allocation7 + $0x828] sm:$0xff]
    %v360 = vld [vmem:[#allocation7 + $0x830] sm:$0xff]
    %v361 = vld [vmem:[#allocation7 + $0x838] sm:$0xff]
    %v362 = vld [vmem:[#allocation7 + $0x840] sm:$0xff]
    %v363 = vld [vmem:[#allocation7 + $0x848] sm:$0xff]
    %v364 = vld [vmem:[#allocation7 + $0x850] sm:$0xff]
    %v365 = vld [vmem:[#allocation7 + $0x858] sm:$0xff]
    %v366 = vld [vmem:[#allocation7 + $0x860] sm:$0xff]
    %v367 = vld [vmem:[#allocation7 + $0x868] sm:$0xff]
    %v368 = vld [vmem:[#allocation7 + $0x870] sm:$0xff]
    %v369 = vld [vmem:[#allocation7 + $0x878] sm:$0xff]
    %v370 = vld [vmem:[#allocation7 + $0x880] sm:$0xff]
    %v371 = vld [vmem:[#allocation7 + $0x888] sm:$0xff]
    %v372 = vld [vmem:[#allocation7 + $0x890] sm:$0xff]
    %v373 = vld [vmem:[#allocation7 + $0x898] sm:$0xff]
    %v374 = vld [vmem:[#allocation7 + $0x8a0] sm:$0xff]
    %v375 = vld [vmem:[#allocation7 + $0x8a8] sm:$0xff]
    %v376 = vld [vmem:[#allocation7 + $0x8b0] sm:$0xff]
    %v377 = vld [vmem:[#allocation7 + $0x8b8] sm:$0xff]
    %v378 = vld [vmem:[#allocation7 + $0x8c0] sm:$0xff]
    %v379 = vld [vmem:[#allocation7 + $0x8c8] sm:$0xff]
    %v380 = vld [vmem:[#allocation7 + $0x8d0] sm:$0xff]
    %v381 = vld [vmem:[#allocation7 + $0x8d8] sm:$0xff]
    %v382 = vld [vmem:[#allocation7 + $0x8e0] sm:$0xff]
    %v383 = vld [vmem:[#allocation7 + $0x8e8] sm:$0xff]
    %v384 = vld [vmem:[#allocation7 + $0x8f0] sm:$0xff]
    %v385 = vld [vmem:[#allocation7 + $0x8f8] sm:$0xff]
    %v386 = vld [vmem:[#allocation7 + $0x900] sm:$0xff]
    %v387 = vld [vmem:[#allocation7 + $0x908] sm:$0xff]
    %v388 = vld [vmem:[#allocation7 + $0x910] sm:$0xff]
    %v389 = vld [vmem:[#allocation7 + $0x918] sm:$0xff]
    %v390 = vld [vmem:[#allocation7 + $0x920] sm:$0xff]
    %v391 = vld [vmem:[#allocation7 + $0x928] sm:$0xff]
    %v392 = vld [vmem:[#allocation7 + $0x930] sm:$0xff]
    %v393 = vld [vmem:[#allocation7 + $0x938] sm:$0xff]
    %v394 = vld [vmem:[#allocation7 + $0x940] sm:$0xff]
    %v395 = vld [vmem:[#allocation7 + $0x948] sm:$0xff]
    %v396 = vld [vmem:[#allocation7 + $0x950] sm:$0xff]
    %v397 = vld [vmem:[#allocation7 + $0x958] sm:$0xff]
    %v398 = vld [vmem:[#allocation7 + $0x960] sm:$0xff]
    %v399 = vld [vmem:[#allocation7 + $0x968] sm:$0xff]
    %v400 = vld [vmem:[#allocation7 + $0x970] sm:$0xff]
    %v401 = vld [vmem:[#allocation7 + $0x978] sm:$0xff]
    %v402 = vld [vmem:[#allocation7 + $0x980] sm:$0xff]
    %v403 = vld [vmem:[#allocation7 + $0x988] sm:$0xff]
    %v404 = vld [vmem:[#allocation7 + $0x990] sm:$0xff]
    %v405 = vld [vmem:[#allocation7 + $0x998] sm:$0xff]
    %v406 = vld [vmem:[#allocation7 + $0x9a0] sm:$0xff]
    %v407 = vld [vmem:[#allocation7 + $0x9a8] sm:$0xff]
    %v408 = vld [vmem:[#allocation7 + $0x9b0] sm:$0xff]
    %v409 = vld [vmem:[#allocation7 + $0x9b8] sm:$0xff]
    %v410 = vld [vmem:[#allocation7 + $0x9c0] sm:$0xff]
    %v411 = vld [vmem:[#allocation7 + $0x9c8] sm:$0xff]
    %v412 = vld [vmem:[#allocation7 + $0x9d0] sm:$0xff]
    %v413 = vld [vmem:[#allocation7 + $0x9d8] sm:$0xff]
    %v414 = vld [vmem:[#allocation7 + $0x9e0] sm:$0xff]
    %v415 = vld [vmem:[#allocation7 + $0x9e8] sm:$0xff]
    %v416 = vld [vmem:[#allocation7 + $0x9f0] sm:$0xff]
    %v417 = vld [vmem:[#allocation7 + $0x9f8] sm:$0xff]
    %v418 = vld [vmem:[#allocation7 + $0xa00] sm:$0xff]
    %v419 = vld [vmem:[#allocation7 + $0xa08] sm:$0xff]
    %v420 = vld [vmem:[#allocation7 + $0xa10] sm:$0xff]
    %v421 = vld [vmem:[#allocation7 + $0xa18] sm:$0xff]
    %v422 = vld [vmem:[#allocation7 + $0xa20] sm:$0xff]
    %v423 = vld [vmem:[#allocation7 + $0xa28] sm:$0xff]
    %v424 = vld [vmem:[#allocation7 + $0xa30] sm:$0xff]
    %v425 = vld [vmem:[#allocation7 + $0xa38] sm:$0xff]
    %v426 = vld [vmem:[#allocation7 + $0xa40] sm:$0xff]
    %v427 = vld [vmem:[#allocation7 + $0xa48] sm:$0xff]
    %v428 = vld [vmem:[#allocation7 + $0xa50] sm:$0xff]
    %v429 = vld [vmem:[#allocation7 + $0xa58] sm:$0xff]
    %v430 = vld [vmem:[#allocation7 + $0xa60] sm:$0xff]
    %v431 = vld [vmem:[#allocation7 + $0xa68] sm:$0xff]
    %v432 = vld [vmem:[#allocation7 + $0xa70] sm:$0xff]
    %v433 = vld [vmem:[#allocation7 + $0xa78] sm:$0xff]
    %v434 = vld [vmem:[#allocation7 + $0xa80] sm:$0xff]
    %v435 = vld [vmem:[#allocation7 + $0xa88] sm:$0xff]
    %v436 = vld [vmem:[#allocation7 + $0xa90] sm:$0xff]
    %v437 = vld [vmem:[#allocation7 + $0xa98] sm:$0xff]
    %v438 = vld [vmem:[#allocation7 + $0xaa0] sm:$0xff]
    %v439 = vld [vmem:[#allocation7 + $0xaa8] sm:$0xff]
    %v440 = vld [vmem:[#allocation7 + $0xab0] sm:$0xff]
    %v441 = vld [vmem:[#allocation7 + $0xab8] sm:$0xff]
    %v442 = vld [vmem:[#allocation7 + $0xac0] sm:$0xff]
    %v443 = vld [vmem:[#allocation7 + $0xac8] sm:$0xff]
    %v444 = vld [vmem:[#allocation7 + $0xad0] sm:$0xff]
    %v445 = vld [vmem:[#allocation7 + $0xad8] sm:$0xff]
    %v446 = vld [vmem:[#allocation7 + $0xae0] sm:$0xff]
    %v447 = vld [vmem:[#allocation7 + $0xae8] sm:$0xff]
    %v448 = vld [vmem:[#allocation7 + $0xaf0] sm:$0xff]
    %v449 = vld [vmem:[#allocation7 + $0xaf8] sm:$0xff]
    %v450 = vld [vmem:[#allocation7 + $0xb00] sm:$0xff]
    %v451 = vld [vmem:[#allocation7 + $0xb08] sm:$0xff]
    %v452 = vld [vmem:[#allocation7 + $0xb10] sm:$0xff]
    %v453 = vld [vmem:[#allocation7 + $0xb18] sm:$0xff]
    %v454 = vld [vmem:[#allocation7 + $0xb20] sm:$0xff]
    %v455 = vld [vmem:[#allocation7 + $0xb28] sm:$0xff]
    %v456 = vld [vmem:[#allocation7 + $0xb30] sm:$0xff]
    %v457 = vld [vmem:[#allocation7 + $0xb38] sm:$0xff]
    %v458 = vld [vmem:[#allocation7 + $0xb40] sm:$0xff]
    %v459 = vld [vmem:[#allocation7 + $0xb48] sm:$0xff]
    %v460 = vld [vmem:[#allocation7 + $0xb50] sm:$0xff]
    %v461 = vld [vmem:[#allocation7 + $0xb58] sm:$0xff]
    %v462 = vld [vmem:[#allocation7 + $0xb60] sm:$0xff]
    %v463 = vld [vmem:[#allocation7 + $0xb68] sm:$0xff]
    %v464 = vld [vmem:[#allocation7 + $0xb70] sm:$0xff]
    %v465 = vld [vmem:[#allocation7 + $0xb78] sm:$0xff]
    %v466 = vld [vmem:[#allocation7 + $0xb80] sm:$0xff]
    %v467 = vld [vmem:[#allocation7 + $0xb88] sm:$0xff]
    %v468 = vld [vmem:[#allocation7 + $0xb90] sm:$0xff]
    %v469 = vld [vmem:[#allocation7 + $0xb98] sm:$0xff]
    %v470 = vld [vmem:[#allocation7 + $0xba0] sm:$0xff]
    %v471 = vld [vmem:[#allocation7 + $0xba8] sm:$0xff]
    %v472 = vld [vmem:[#allocation7 + $0xbb0] sm:$0xff]
    %v473 = vld [vmem:[#allocation7 + $0xbb8] sm:$0xff]
    %v474 = vld [vmem:[#allocation7 + $0xbc0] sm:$0xff]
    %v475 = vld [vmem:[#allocation7 + $0xbc8] sm:$0xff]
    %v476 = vld [vmem:[#allocation7 + $0xbd0] sm:$0xff]
    %v477 = vld [vmem:[#allocation7 + $0xbd8] sm:$0xff]
    %v478 = vld [vmem:[#allocation7 + $0xbe0] sm:$0xff]
    %v479 = vld [vmem:[#allocation7 + $0xbe8] sm:$0xff]
    %v480 = vld [vmem:[#allocation7 + $0xbf0] sm:$0xff]
    %v481 = vld [vmem:[#allocation7 + $0xbf8] sm:$0xff]
    %v482 = vld [vmem:[#allocation7 + $0xc00] sm:$0xff]
    %v483 = vld [vmem:[#allocation7 + $0xc08] sm:$0xff]
    %v484 = vld [vmem:[#allocation7 + $0xc10] sm:$0xff]
    %v485 = vld [vmem:[#allocation7 + $0xc18] sm:$0xff]
    %v486 = vld [vmem:[#allocation7 + $0xc20] sm:$0xff]
    %v487 = vld [vmem:[#allocation7 + $0xc28] sm:$0xff]
    %v488 = vld [vmem:[#allocation7 + $0xc30] sm:$0xff]
    %v489 = vld [vmem:[#allocation7 + $0xc38] sm:$0xff]
    %v490 = vld [vmem:[#allocation7 + $0xc40] sm:$0xff]
    %v491 = vld [vmem:[#allocation7 + $0xc48] sm:$0xff]
    %v492 = vld [vmem:[#allocation7 + $0xc50] sm:$0xff]
    %v493 = vld [vmem:[#allocation7 + $0xc58] sm:$0xff]
    %v494 = vld [vmem:[#allocation7 + $0xc60] sm:$0xff]
    %v495 = vld [vmem:[#allocation7 + $0xc68] sm:$0xff]
    %v496 = vld [vmem:[#allocation7 + $0xc70] sm:$0xff]
    %v497 = vld [vmem:[#allocation7 + $0xc78] sm:$0xff]
    %v498 = vld [vmem:[#allocation7 + $0xc80] sm:$0xff]
    %v499 = vld [vmem:[#allocation7 + $0xc88] sm:$0xff]
    %v500 = vld [vmem:[#allocation7 + $0xc90] sm:$0xff]
    %v501 = vld [vmem:[#allocation7 + $0xc98] sm:$0xff]
    %v502 = vld [vmem:[#allocation7 + $0xca0] sm:$0xff]
    %v503 = vld [vmem:[#allocation7 + $0xca8] sm:$0xff]
    %v504 = vld [vmem:[#allocation7 + $0xcb0] sm:$0xff]
    %v505 = vld [vmem:[#allocation7 + $0xcb8] sm:$0xff]
    %v506 = vld [vmem:[#allocation7 + $0xcc0] sm:$0xff]
    %v507 = vld [vmem:[#allocation7 + $0xcc8] sm:$0xff]
    %v508 = vld [vmem:[#allocation7 + $0xcd0] sm:$0xff]
    %v509 = vld [vmem:[#allocation7 + $0xcd8] sm:$0xff]
    %v510 = vld [vmem:[#allocation7 + $0xce0] sm:$0xff]
    %v511 = vld [vmem:[#allocation7 + $0xce8] sm:$0xff]
    %v512 = vld [vmem:[#allocation7 + $0xcf0] sm:$0xff]
    %v513 = vld [vmem:[#allocation7 + $0xcf8] sm:$0xff]
    %v514 = vld [vmem:[#allocation7 + $0xd00] sm:$0xff]
    %v515 = vld [vmem:[#allocation7 + $0xd08] sm:$0xff]
    %v516 = vld [vmem:[#allocation7 + $0xd10] sm:$0xff]
    %v517 = vld [vmem:[#allocation7 + $0xd18] sm:$0xff]
    %v518 = vld [vmem:[#allocation7 + $0xd20] sm:$0xff]
    %v519 = vld [vmem:[#allocation7 + $0xd28] sm:$0xff]
    %v520 = vld [vmem:[#allocation7 + $0xd30] sm:$0xff]
    %v521 = vld [vmem:[#allocation7 + $0xd38] sm:$0xff]
    %v522 = vld [vmem:[#allocation7 + $0xd40] sm:$0xff]
    %v523 = vld [vmem:[#allocation7 + $0xd48] sm:$0xff]
    %v524 = vld [vmem:[#allocation7 + $0xd50] sm:$0xff]
    %v525 = vld [vmem:[#allocation7 + $0xd58] sm:$0xff]
    %v526 = vld [vmem:[#allocation7 + $0xd60] sm:$0xff]
    %v527 = vld [vmem:[#allocation7 + $0xd68] sm:$0xff]
    %v528 = vld [vmem:[#allocation7 + $0xd70] sm:$0xff]
    %v529 = vld [vmem:[#allocation7 + $0xd78] sm:$0xff]
    %v530 = vld [vmem:[#allocation7 + $0xd80] sm:$0xff]
    %v531 = vld [vmem:[#allocation7 + $0xd88] sm:$0xff]
    %v532 = vld [vmem:[#allocation7 + $0xd90] sm:$0xff]
    %v533 = vld [vmem:[#allocation7 + $0xd98] sm:$0xff]
    %v534 = vld [vmem:[#allocation7 + $0xda0] sm:$0xff]
    %v535 = vld [vmem:[#allocation7 + $0xda8] sm:$0xff]
    %v536 = vld [vmem:[#allocation7 + $0xdb0] sm:$0xff]
    %v537 = vld [vmem:[#allocation7 + $0xdb8] sm:$0xff]
    %v538 = vld [vmem:[#allocation7 + $0xdc0] sm:$0xff]
    %v539 = vld [vmem:[#allocation7 + $0xdc8] sm:$0xff]
    %v540 = vld [vmem:[#allocation7 + $0xdd0] sm:$0xff]
    %v541 = vld [vmem:[#allocation7 + $0xdd8] sm:$0xff]
    %v542 = vld [vmem:[#allocation7 + $0xde0] sm:$0xff]
    %v543 = vld [vmem:[#allocation7 + $0xde8] sm:$0xff]
    %v544 = vld [vmem:[#allocation7 + $0xdf0] sm:$0xff]
    %v545 = vld [vmem:[#allocation7 + $0xdf8] sm:$0xff]
    %v546 = vld [vmem:[#allocation7 + $0xe00] sm:$0xff]
    %v547 = vld [vmem:[#allocation7 + $0xe08] sm:$0xff]
    %v548 = vld [vmem:[#allocation7 + $0xe10] sm:$0xff]
    %v549 = vld [vmem:[#allocation7 + $0xe18] sm:$0xff]
    %v550 = vld [vmem:[#allocation7 + $0xe20] sm:$0xff]
    %v551 = vld [vmem:[#allocation7 + $0xe28] sm:$0xff]
    %v552 = vld [vmem:[#allocation7 + $0xe30] sm:$0xff]
    %v553 = vld [vmem:[#allocation7 + $0xe38] sm:$0xff]
    %v554 = vld [vmem:[#allocation7 + $0xe40] sm:$0xff]
    %v555 = vld [vmem:[#allocation7 + $0xe48] sm:$0xff]
    %v556 = vld [vmem:[#allocation7 + $0xe50] sm:$0xff]
    %v557 = vld [vmem:[#allocation7 + $0xe58] sm:$0xff]
    %v558 = vld [vmem:[#allocation7 + $0xe60] sm:$0xff]
    %v559 = vld [vmem:[#allocation7 + $0xe68] sm:$0xff]
    %v560 = vld [vmem:[#allocation7 + $0xe70] sm:$0xff]
    %v561 = vld [vmem:[#allocation7 + $0xe78] sm:$0xff]
    %v562 = vld [vmem:[#allocation7 + $0xe80] sm:$0xff]
    %v563 = vld [vmem:[#allocation7 + $0xe88] sm:$0xff]
    %v564 = vld [vmem:[#allocation7 + $0xe90] sm:$0xff]
    %v565 = vld [vmem:[#allocation7 + $0xe98] sm:$0xff]
    %v566 = vld [vmem:[#allocation7 + $0xea0] sm:$0xff]
    %v567 = vld [vmem:[#allocation7 + $0xea8] sm:$0xff]
    %v568 = vld [vmem:[#allocation7 + $0xeb0] sm:$0xff]
    %v569 = vld [vmem:[#allocation7 + $0xeb8] sm:$0xff]
    %v570 = vld [vmem:[#allocation7 + $0xec0] sm:$0xff]
    %v571 = vld [vmem:[#allocation7 + $0xec8] sm:$0xff]
    %v572 = vld [vmem:[#allocation7 + $0xed0] sm:$0xff]
    %v573 = vld [vmem:[#allocation7 + $0xed8] sm:$0xff]
    %v574 = vld [vmem:[#allocation7 + $0xee0] sm:$0xff]
    %v575 = vld [vmem:[#allocation7 + $0xee8] sm:$0xff]
    %v576 = vld [vmem:[#allocation7 + $0xef0] sm:$0xff]
    %v577 = vld [vmem:[#allocation7 + $0xef8] sm:$0xff]
    %v578 = vld [vmem:[#allocation7 + $0xf00] sm:$0xff]
    %v579 = vld [vmem:[#allocation7 + $0xf08] sm:$0xff]
    %v580 = vld [vmem:[#allocation7 + $0xf10] sm:$0xff]
    %v581 = vld [vmem:[#allocation7 + $0xf18] sm:$0xff]
    %v582 = vld [vmem:[#allocation7 + $0xf20] sm:$0xff]
    %v583 = vld [vmem:[#allocation7 + $0xf28] sm:$0xff]
    %v584 = vld [vmem:[#allocation7 + $0xf30] sm:$0xff]
    %v585 = vld [vmem:[#allocation7 + $0xf38] sm:$0xff]
    %v586 = vld [vmem:[#allocation7 + $0xf40] sm:$0xff]
    %v587 = vld [vmem:[#allocation7 + $0xf48] sm:$0xff]
    %v588 = vld [vmem:[#allocation7 + $0xf50] sm:$0xff]
    %v589 = vld [vmem:[#allocation7 + $0xf58] sm:$0xff]
    %v590 = vld [vmem:[#allocation7 + $0xf60] sm:$0xff]
    %v591 = vld [vmem:[#allocation7 + $0xf68] sm:$0xff]
    %v592 = vld [vmem:[#allocation7 + $0xf70] sm:$0xff]
    %v593 = vld [vmem:[#allocation7 + $0xf78] sm:$0xff]
    %v594 = vld [vmem:[#allocation7 + $0xf80] sm:$0xff]
    %v595 = vld [vmem:[#allocation7 + $0xf88] sm:$0xff]
    %v596 = vld [vmem:[#allocation7 + $0xf90] sm:$0xff]
    %v597 = vld [vmem:[#allocation7 + $0xf98] sm:$0xff]
    %v598 = vld [vmem:[#allocation7 + $0xfa0] sm:$0xff]
    %v599 = vld [vmem:[#allocation7 + $0xfa8] sm:$0xff]
    %v600 = vld [vmem:[#allocation7 + $0xfb0] sm:$0xff]
    %v601 = vld [vmem:[#allocation7 + $0xfb8] sm:$0xff]
    %v602 = vld [vmem:[#allocation7 + $0xfc0] sm:$0xff]
    %v603 = vld [vmem:[#allocation7 + $0xfc8] sm:$0xff]
    %v604 = vld [vmem:[#allocation7 + $0xfd0] sm:$0xff]
    %v605 = vld [vmem:[#allocation7 + $0xfd8] sm:$0xff]
    %v606 = vld [vmem:[#allocation7 + $0xfe0] sm:$0xff]
    %v607 = vld [vmem:[#allocation7 + $0xfe8] sm:$0xff]
    %v608 = vld [vmem:[#allocation7 + $0xff0] sm:$0xff]
    %v609 = vld [vmem:[#allocation7 + $0xff8] sm:$0xff]
    %v610 = vld [vmem:[#allocation9] sm:$0xff]
    %v612 = vlaneseq
    %v613 = vshrl.u32 %v612, 7
    %v614 = vsub.s32 0, %v613
    %v615 = vrot.slane %v610, %v614
    %v616 = vlaneseq
    %v617 = vshrl.u32 %v616, 7
    %v618 = vsub.s32 1, %v617
    %v619 = vrot.slane %v610, %v618
    %v620 = vlaneseq
    %v621 = vshrl.u32 %v620, 7
    %v622 = vsub.s32 2, %v621
    %v623 = vrot.slane %v610, %v622
    %v624 = vlaneseq
    %v625 = vshrl.u32 %v624, 7
    %v626 = vsub.s32 3, %v625
    %v627 = vrot.slane %v610, %v626
    %v628 = vlaneseq
    %v629 = vshrl.u32 %v628, 7
    %v630 = vsub.s32 4, %v629
    %v631 = vrot.slane %v610, %v630
    %v632 = vlaneseq
    %v633 = vshrl.u32 %v632, 7
    %v634 = vsub.s32 5, %v633
    %v635 = vrot.slane %v610, %v634
    %v636 = vlaneseq
    %v637 = vshrl.u32 %v636, 7
    %v638 = vsub.s32 6, %v637
    %v639 = vrot.slane %v610, %v638
    %v640 = vlaneseq
    %v641 = vshrl.u32 %v640, 7
    %v642 = vsub.s32 7, %v641
    %v643 = vrot.slane %v610, %v642
    %v656 = vunpack.c.l.b16 %v94
    %v657 = vunpack.c.h.b16 %v94
    %v658 = vunpack.c.l.b16 %v95
    %v659 = vunpack.c.h.b16 %v95
    %v660 = vunpack.c.l.b16 %v96
    %v661 = vunpack.c.h.b16 %v96
    %v662 = vunpack.c.l.b16 %v97
    %v663 = vunpack.c.h.b16 %v97
    %v664 = vpack.c.b16 %v656, %v656
    %v665 = vpack.c.b16 %v657, %v657
    %v666 = vpack.c.b16 %v658, %v658
    %v667 = vpack.c.b16 %v659, %v659
    %v668 = vpack.c.b16 %v660, %v660
    %v669 = vpack.c.b16 %v661, %v661
    %v670 = vpack.c.b16 %v662, %v662
    %v671 = vpack.c.b16 %v663, %v663
    %v1192 = vunpack.c.l.b16 %v98
    %v1193 = vunpack.c.h.b16 %v98
    %v1194 = vunpack.c.l.b16 %v99
    %v1195 = vunpack.c.h.b16 %v99
    %v1196 = vunpack.c.l.b16 %v100
    %v1197 = vunpack.c.h.b16 %v100
    %v1198 = vunpack.c.l.b16 %v101
    %v1199 = vunpack.c.h.b16 %v101
    %v1200 = vunpack.c.l.b16 %v102
    %v1201 = vunpack.c.h.b16 %v102
    %v1202 = vunpack.c.l.b16 %v103
    %v1203 = vunpack.c.h.b16 %v103
    %v1204 = vunpack.c.l.b16 %v104
    %v1205 = vunpack.c.h.b16 %v104
    %v1206 = vunpack.c.l.b16 %v105
    %v1207 = vunpack.c.h.b16 %v105
    %v1208 = vunpack.c.l.b16 %v106
    %v1209 = vunpack.c.h.b16 %v106
    %v1210 = vunpack.c.l.b16 %v107
    %v1211 = vunpack.c.h.b16 %v107
    %v1212 = vunpack.c.l.b16 %v108
    %v1213 = vunpack.c.h.b16 %v108
    %v1214 = vunpack.c.l.b16 %v109
    %v1215 = vunpack.c.h.b16 %v109
    %v1216 = vunpack.c.l.b16 %v110
    %v1217 = vunpack.c.h.b16 %v110
    %v1218 = vunpack.c.l.b16 %v111
    %v1219 = vunpack.c.h.b16 %v111
    %v1220 = vunpack.c.l.b16 %v112
    %v1221 = vunpack.c.h.b16 %v112
    %v1222 = vunpack.c.l.b16 %v113
    %v1223 = vunpack.c.h.b16 %v113
    %v1224 = vunpack.c.l.b16 %v114
    %v1225 = vunpack.c.h.b16 %v114
    %v1226 = vunpack.c.l.b16 %v115
    %v1227 = vunpack.c.h.b16 %v115
    %v1228 = vunpack.c.l.b16 %v116
    %v1229 = vunpack.c.h.b16 %v116
    %v1230 = vunpack.c.l.b16 %v117
    %v1231 = vunpack.c.h.b16 %v117
    %v1232 = vunpack.c.l.b16 %v118
    %v1233 = vunpack.c.h.b16 %v118
    %v1234 = vunpack.c.l.b16 %v119
    %v1235 = vunpack.c.h.b16 %v119
    %v1236 = vunpack.c.l.b16 %v120
    %v1237 = vunpack.c.h.b16 %v120
    %v1238 = vunpack.c.l.b16 %v121
    %v1239 = vunpack.c.h.b16 %v121
    %v1240 = vunpack.c.l.b16 %v122
    %v1241 = vunpack.c.h.b16 %v122
    %v1242 = vunpack.c.l.b16 %v123
    %v1243 = vunpack.c.h.b16 %v123
    %v1244 = vunpack.c.l.b16 %v124
    %v1245 = vunpack.c.h.b16 %v124
    %v1246 = vunpack.c.l.b16 %v125
    %v1247 = vunpack.c.h.b16 %v125
    %v1248 = vunpack.c.l.b16 %v126
    %v1249 = vunpack.c.h.b16 %v126
    %v1250 = vunpack.c.l.b16 %v127
    %v1251 = vunpack.c.h.b16 %v127
    %v1252 = vunpack.c.l.b16 %v128
    %v1253 = vunpack.c.h.b16 %v128
    %v1254 = vunpack.c.l.b16 %v129
    %v1255 = vunpack.c.h.b16 %v129
    %v1256 = vunpack.c.l.b16 %v130
    %v1257 = vunpack.c.h.b16 %v130
    %v1258 = vunpack.c.l.b16 %v131
    %v1259 = vunpack.c.h.b16 %v131
    %v1260 = vunpack.c.l.b16 %v132
    %v1261 = vunpack.c.h.b16 %v132
    %v1262 = vunpack.c.l.b16 %v133
    %v1263 = vunpack.c.h.b16 %v133
    %v1264 = vunpack.c.l.b16 %v134
    %v1265 = vunpack.c.h.b16 %v134
    %v1266 = vunpack.c.l.b16 %v135
    %v1267 = vunpack.c.h.b16 %v135
    %v1268 = vunpack.c.l.b16 %v136
    %v1269 = vunpack.c.h.b16 %v136
    %v1270 = vunpack.c.l.b16 %v137
    %v1271 = vunpack.c.h.b16 %v137
    %v1272 = vunpack.c.l.b16 %v138
    %v1273 = vunpack.c.h.b16 %v138
    %v1274 = vunpack.c.l.b16 %v139
    %v1275 = vunpack.c.h.b16 %v139
    %v1276 = vunpack.c.l.b16 %v140
    %v1277 = vunpack.c.h.b16 %v140
    %v1278 = vunpack.c.l.b16 %v141
    %v1279 = vunpack.c.h.b16 %v141
    %v1280 = vunpack.c.l.b16 %v142
    %v1281 = vunpack.c.h.b16 %v142
    %v1282 = vunpack.c.l.b16 %v143
    %v1283 = vunpack.c.h.b16 %v143
    %v1284 = vunpack.c.l.b16 %v144
    %v1285 = vunpack.c.h.b16 %v144
    %v1286 = vunpack.c.l.b16 %v145
    %v1287 = vunpack.c.h.b16 %v145
    %v1288 = vunpack.c.l.b16 %v146
    %v1289 = vunpack.c.h.b16 %v146
    %v1290 = vunpack.c.l.b16 %v147
    %v1291 = vunpack.c.h.b16 %v147
    %v1292 = vunpack.c.l.b16 %v148
    %v1293 = vunpack.c.h.b16 %v148
    %v1294 = vunpack.c.l.b16 %v149
    %v1295 = vunpack.c.h.b16 %v149
    %v1296 = vunpack.c.l.b16 %v150
    %v1297 = vunpack.c.h.b16 %v150
    %v1298 = vunpack.c.l.b16 %v151
    %v1299 = vunpack.c.h.b16 %v151
    %v1300 = vunpack.c.l.b16 %v152
    %v1301 = vunpack.c.h.b16 %v152
    %v1302 = vunpack.c.l.b16 %v153
    %v1303 = vunpack.c.h.b16 %v153
    %v1304 = vunpack.c.l.b16 %v154
    %v1305 = vunpack.c.h.b16 %v154
    %v1306 = vunpack.c.l.b16 %v155
    %v1307 = vunpack.c.h.b16 %v155
    %v1308 = vunpack.c.l.b16 %v156
    %v1309 = vunpack.c.h.b16 %v156
    %v1310 = vunpack.c.l.b16 %v157
    %v1311 = vunpack.c.h.b16 %v157
    %v1312 = vunpack.c.l.b16 %v158
    %v1313 = vunpack.c.h.b16 %v158
    %v1314 = vunpack.c.l.b16 %v159
    %v1315 = vunpack.c.h.b16 %v159
    %v1316 = vunpack.c.l.b16 %v160
    %v1317 = vunpack.c.h.b16 %v160
    %v1318 = vunpack.c.l.b16 %v161
    %v1319 = vunpack.c.h.b16 %v161
    %v1320 = vunpack.c.l.b16 %v162
    %v1321 = vunpack.c.h.b16 %v162
    %v1322 = vunpack.c.l.b16 %v163
    %v1323 = vunpack.c.h.b16 %v163
    %v1324 = vunpack.c.l.b16 %v164
    %v1325 = vunpack.c.h.b16 %v164
    %v1326 = vunpack.c.l.b16 %v165
    %v1327 = vunpack.c.h.b16 %v165
    %v1328 = vunpack.c.l.b16 %v166
    %v1329 = vunpack.c.h.b16 %v166
    %v1330 = vunpack.c.l.b16 %v167
    %v1331 = vunpack.c.h.b16 %v167
    %v1332 = vunpack.c.l.b16 %v168
    %v1333 = vunpack.c.h.b16 %v168
    %v1334 = vunpack.c.l.b16 %v169
    %v1335 = vunpack.c.h.b16 %v169
    %v1336 = vunpack.c.l.b16 %v170
    %v1337 = vunpack.c.h.b16 %v170
    %v1338 = vunpack.c.l.b16 %v171
    %v1339 = vunpack.c.h.b16 %v171
    %v1340 = vunpack.c.l.b16 %v172
    %v1341 = vunpack.c.h.b16 %v172
    %v1342 = vunpack.c.l.b16 %v173
    %v1343 = vunpack.c.h.b16 %v173
    %v1344 = vunpack.c.l.b16 %v174
    %v1345 = vunpack.c.h.b16 %v174
    %v1346 = vunpack.c.l.b16 %v175
    %v1347 = vunpack.c.h.b16 %v175
    %v1348 = vunpack.c.l.b16 %v176
    %v1349 = vunpack.c.h.b16 %v176
    %v1350 = vunpack.c.l.b16 %v177
    %v1351 = vunpack.c.h.b16 %v177
    %v1352 = vunpack.c.l.b16 %v178
    %v1353 = vunpack.c.h.b16 %v178
    %v1354 = vunpack.c.l.b16 %v179
    %v1355 = vunpack.c.h.b16 %v179
    %v1356 = vunpack.c.l.b16 %v180
    %v1357 = vunpack.c.h.b16 %v180
    %v1358 = vunpack.c.l.b16 %v181
    %v1359 = vunpack.c.h.b16 %v181
    %v1360 = vunpack.c.l.b16 %v182
    %v1361 = vunpack.c.h.b16 %v182
    %v1362 = vunpack.c.l.b16 %v183
    %v1363 = vunpack.c.h.b16 %v183
    %v1364 = vunpack.c.l.b16 %v184
    %v1365 = vunpack.c.h.b16 %v184
    %v1366 = vunpack.c.l.b16 %v185
    %v1367 = vunpack.c.h.b16 %v185
    %v1368 = vunpack.c.l.b16 %v186
    %v1369 = vunpack.c.h.b16 %v186
    %v1370 = vunpack.c.l.b16 %v187
    %v1371 = vunpack.c.h.b16 %v187
    %v1372 = vunpack.c.l.b16 %v188
    %v1373 = vunpack.c.h.b16 %v188
    %v1374 = vunpack.c.l.b16 %v189
    %v1375 = vunpack.c.h.b16 %v189
    %v1376 = vunpack.c.l.b16 %v190
    %v1377 = vunpack.c.h.b16 %v190
    %v1378 = vunpack.c.l.b16 %v191
    %v1379 = vunpack.c.h.b16 %v191
    %v1380 = vunpack.c.l.b16 %v192
    %v1381 = vunpack.c.h.b16 %v192
    %v1382 = vunpack.c.l.b16 %v193
    %v1383 = vunpack.c.h.b16 %v193
    %v1384 = vunpack.c.l.b16 %v194
    %v1385 = vunpack.c.h.b16 %v194
    %v1386 = vunpack.c.l.b16 %v195
    %v1387 = vunpack.c.h.b16 %v195
    %v1388 = vunpack.c.l.b16 %v196
    %v1389 = vunpack.c.h.b16 %v196
    %v1390 = vunpack.c.l.b16 %v197
    %v1391 = vunpack.c.h.b16 %v197
    %v1392 = vunpack.c.l.b16 %v198
    %v1393 = vunpack.c.h.b16 %v198
    %v1394 = vunpack.c.l.b16 %v199
    %v1395 = vunpack.c.h.b16 %v199
    %v1396 = vunpack.c.l.b16 %v200
    %v1397 = vunpack.c.h.b16 %v200
    %v1398 = vunpack.c.l.b16 %v201
    %v1399 = vunpack.c.h.b16 %v201
    %v1400 = vunpack.c.l.b16 %v202
    %v1401 = vunpack.c.h.b16 %v202
    %v1402 = vunpack.c.l.b16 %v203
    %v1403 = vunpack.c.h.b16 %v203
    %v1404 = vunpack.c.l.b16 %v204
    %v1405 = vunpack.c.h.b16 %v204
    %v1406 = vunpack.c.l.b16 %v205
    %v1407 = vunpack.c.h.b16 %v205
    %v1408 = vunpack.c.l.b16 %v206
    %v1409 = vunpack.c.h.b16 %v206
    %v1410 = vunpack.c.l.b16 %v207
    %v1411 = vunpack.c.h.b16 %v207
    %v1412 = vunpack.c.l.b16 %v208
    %v1413 = vunpack.c.h.b16 %v208
    %v1414 = vunpack.c.l.b16 %v209
    %v1415 = vunpack.c.h.b16 %v209
    %v1416 = vunpack.c.l.b16 %v210
    %v1417 = vunpack.c.h.b16 %v210
    %v1418 = vunpack.c.l.b16 %v211
    %v1419 = vunpack.c.h.b16 %v211
    %v1420 = vunpack.c.l.b16 %v212
    %v1421 = vunpack.c.h.b16 %v212
    %v1422 = vunpack.c.l.b16 %v213
    %v1423 = vunpack.c.h.b16 %v213
    %v1424 = vunpack.c.l.b16 %v214
    %v1425 = vunpack.c.h.b16 %v214
    %v1426 = vunpack.c.l.b16 %v215
    %v1427 = vunpack.c.h.b16 %v215
    %v1428 = vunpack.c.l.b16 %v216
    %v1429 = vunpack.c.h.b16 %v216
    %v1430 = vunpack.c.l.b16 %v217
    %v1431 = vunpack.c.h.b16 %v217
    %v1432 = vunpack.c.l.b16 %v218
    %v1433 = vunpack.c.h.b16 %v218
    %v1434 = vunpack.c.l.b16 %v219
    %v1435 = vunpack.c.h.b16 %v219
    %v1436 = vunpack.c.l.b16 %v220
    %v1437 = vunpack.c.h.b16 %v220
    %v1438 = vunpack.c.l.b16 %v221
    %v1439 = vunpack.c.h.b16 %v221
    %v1440 = vunpack.c.l.b16 %v222
    %v1441 = vunpack.c.h.b16 %v222
    %v1442 = vunpack.c.l.b16 %v223
    %v1443 = vunpack.c.h.b16 %v223
    %v1444 = vunpack.c.l.b16 %v224
    %v1445 = vunpack.c.h.b16 %v224
    %v1446 = vunpack.c.l.b16 %v225
    %v1447 = vunpack.c.h.b16 %v225
    %v1448 = vunpack.c.l.b16 %v226
    %v1449 = vunpack.c.h.b16 %v226
    %v1450 = vunpack.c.l.b16 %v227
    %v1451 = vunpack.c.h.b16 %v227
    %v1452 = vunpack.c.l.b16 %v228
    %v1453 = vunpack.c.h.b16 %v228
    %v1454 = vunpack.c.l.b16 %v229
    %v1455 = vunpack.c.h.b16 %v229
    %v1456 = vunpack.c.l.b16 %v230
    %v1457 = vunpack.c.h.b16 %v230
    %v1458 = vunpack.c.l.b16 %v231
    %v1459 = vunpack.c.h.b16 %v231
    %v1460 = vunpack.c.l.b16 %v232
    %v1461 = vunpack.c.h.b16 %v232
    %v1462 = vunpack.c.l.b16 %v233
    %v1463 = vunpack.c.h.b16 %v233
    %v1464 = vunpack.c.l.b16 %v234
    %v1465 = vunpack.c.h.b16 %v234
    %v1466 = vunpack.c.l.b16 %v235
    %v1467 = vunpack.c.h.b16 %v235
    %v1468 = vunpack.c.l.b16 %v236
    %v1469 = vunpack.c.h.b16 %v236
    %v1470 = vunpack.c.l.b16 %v237
    %v1471 = vunpack.c.h.b16 %v237
    %v1472 = vunpack.c.l.b16 %v238
    %v1473 = vunpack.c.h.b16 %v238
    %v1474 = vunpack.c.l.b16 %v239
    %v1475 = vunpack.c.h.b16 %v239
    %v1476 = vunpack.c.l.b16 %v240
    %v1477 = vunpack.c.h.b16 %v240
    %v1478 = vunpack.c.l.b16 %v241
    %v1479 = vunpack.c.h.b16 %v241
    %v1480 = vunpack.c.l.b16 %v242
    %v1481 = vunpack.c.h.b16 %v242
    %v1482 = vunpack.c.l.b16 %v243
    %v1483 = vunpack.c.h.b16 %v243
    %v1484 = vunpack.c.l.b16 %v244
    %v1485 = vunpack.c.h.b16 %v244
    %v1486 = vunpack.c.l.b16 %v245
    %v1487 = vunpack.c.h.b16 %v245
    %v1488 = vunpack.c.l.b16 %v246
    %v1489 = vunpack.c.h.b16 %v246
    %v1490 = vunpack.c.l.b16 %v247
    %v1491 = vunpack.c.h.b16 %v247
    %v1492 = vunpack.c.l.b16 %v248
    %v1493 = vunpack.c.h.b16 %v248
    %v1494 = vunpack.c.l.b16 %v249
    %v1495 = vunpack.c.h.b16 %v249
    %v1496 = vunpack.c.l.b16 %v250
    %v1497 = vunpack.c.h.b16 %v250
    %v1498 = vunpack.c.l.b16 %v251
    %v1499 = vunpack.c.h.b16 %v251
    %v1500 = vunpack.c.l.b16 %v252
    %v1501 = vunpack.c.h.b16 %v252
    %v1502 = vunpack.c.l.b16 %v253
    %v1503 = vunpack.c.h.b16 %v253
    %v1504 = vunpack.c.l.b16 %v254
    %v1505 = vunpack.c.h.b16 %v254
    %v1506 = vunpack.c.l.b16 %v255
    %v1507 = vunpack.c.h.b16 %v255
    %v1508 = vunpack.c.l.b16 %v256
    %v1509 = vunpack.c.h.b16 %v256
    %v1510 = vunpack.c.l.b16 %v257
    %v1511 = vunpack.c.h.b16 %v257
    %v1512 = vunpack.c.l.b16 %v258
    %v1513 = vunpack.c.h.b16 %v258
    %v1514 = vunpack.c.l.b16 %v259
    %v1515 = vunpack.c.h.b16 %v259
    %v1516 = vunpack.c.l.b16 %v260
    %v1517 = vunpack.c.h.b16 %v260
    %v1518 = vunpack.c.l.b16 %v261
    %v1519 = vunpack.c.h.b16 %v261
    %v1520 = vunpack.c.l.b16 %v262
    %v1521 = vunpack.c.h.b16 %v262
    %v1522 = vunpack.c.l.b16 %v263
    %v1523 = vunpack.c.h.b16 %v263
    %v1524 = vunpack.c.l.b16 %v264
    %v1525 = vunpack.c.h.b16 %v264
    %v1526 = vunpack.c.l.b16 %v265
    %v1527 = vunpack.c.h.b16 %v265
    %v1528 = vunpack.c.l.b16 %v266
    %v1529 = vunpack.c.h.b16 %v266
    %v1530 = vunpack.c.l.b16 %v267
    %v1531 = vunpack.c.h.b16 %v267
    %v1532 = vunpack.c.l.b16 %v268
    %v1533 = vunpack.c.h.b16 %v268
    %v1534 = vunpack.c.l.b16 %v269
    %v1535 = vunpack.c.h.b16 %v269
    %v1536 = vunpack.c.l.b16 %v270
    %v1537 = vunpack.c.h.b16 %v270
    %v1538 = vunpack.c.l.b16 %v271
    %v1539 = vunpack.c.h.b16 %v271
    %v1540 = vunpack.c.l.b16 %v272
    %v1541 = vunpack.c.h.b16 %v272
    %v1542 = vunpack.c.l.b16 %v273
    %v1543 = vunpack.c.h.b16 %v273
    %v1544 = vunpack.c.l.b16 %v274
    %v1545 = vunpack.c.h.b16 %v274
    %v1546 = vunpack.c.l.b16 %v275
    %v1547 = vunpack.c.h.b16 %v275
    %v1548 = vunpack.c.l.b16 %v276
    %v1549 = vunpack.c.h.b16 %v276
    %v1550 = vunpack.c.l.b16 %v277
    %v1551 = vunpack.c.h.b16 %v277
    %v1552 = vunpack.c.l.b16 %v278
    %v1553 = vunpack.c.h.b16 %v278
    %v1554 = vunpack.c.l.b16 %v279
    %v1555 = vunpack.c.h.b16 %v279
    %v1556 = vunpack.c.l.b16 %v280
    %v1557 = vunpack.c.h.b16 %v280
    %v1558 = vunpack.c.l.b16 %v281
    %v1559 = vunpack.c.h.b16 %v281
    %v1560 = vunpack.c.l.b16 %v282
    %v1561 = vunpack.c.h.b16 %v282
    %v1562 = vunpack.c.l.b16 %v283
    %v1563 = vunpack.c.h.b16 %v283
    %v1564 = vunpack.c.l.b16 %v284
    %v1565 = vunpack.c.h.b16 %v284
    %v1566 = vunpack.c.l.b16 %v285
    %v1567 = vunpack.c.h.b16 %v285
    %v1568 = vunpack.c.l.b16 %v286
    %v1569 = vunpack.c.h.b16 %v286
    %v1570 = vunpack.c.l.b16 %v287
    %v1571 = vunpack.c.h.b16 %v287
    %v1572 = vunpack.c.l.b16 %v288
    %v1573 = vunpack.c.h.b16 %v288
    %v1574 = vunpack.c.l.b16 %v289
    %v1575 = vunpack.c.h.b16 %v289
    %v1576 = vunpack.c.l.b16 %v290
    %v1577 = vunpack.c.h.b16 %v290
    %v1578 = vunpack.c.l.b16 %v291
    %v1579 = vunpack.c.h.b16 %v291
    %v1580 = vunpack.c.l.b16 %v292
    %v1581 = vunpack.c.h.b16 %v292
    %v1582 = vunpack.c.l.b16 %v293
    %v1583 = vunpack.c.h.b16 %v293
    %v1584 = vunpack.c.l.b16 %v294
    %v1585 = vunpack.c.h.b16 %v294
    %v1586 = vunpack.c.l.b16 %v295
    %v1587 = vunpack.c.h.b16 %v295
    %v1588 = vunpack.c.l.b16 %v296
    %v1589 = vunpack.c.h.b16 %v296
    %v1590 = vunpack.c.l.b16 %v297
    %v1591 = vunpack.c.h.b16 %v297
    %v1592 = vunpack.c.l.b16 %v298
    %v1593 = vunpack.c.h.b16 %v298
    %v1594 = vunpack.c.l.b16 %v299
    %v1595 = vunpack.c.h.b16 %v299
    %v1596 = vunpack.c.l.b16 %v300
    %v1597 = vunpack.c.h.b16 %v300
    %v1598 = vunpack.c.l.b16 %v301
    %v1599 = vunpack.c.h.b16 %v301
    %v1600 = vunpack.c.l.b16 %v302
    %v1601 = vunpack.c.h.b16 %v302
    %v1602 = vunpack.c.l.b16 %v303
    %v1603 = vunpack.c.h.b16 %v303
    %v1604 = vunpack.c.l.b16 %v304
    %v1605 = vunpack.c.h.b16 %v304
    %v1606 = vunpack.c.l.b16 %v305
    %v1607 = vunpack.c.h.b16 %v305
    %v1608 = vunpack.c.l.b16 %v306
    %v1609 = vunpack.c.h.b16 %v306
    %v1610 = vunpack.c.l.b16 %v307
    %v1611 = vunpack.c.h.b16 %v307
    %v1612 = vunpack.c.l.b16 %v308
    %v1613 = vunpack.c.h.b16 %v308
    %v1614 = vunpack.c.l.b16 %v309
    %v1615 = vunpack.c.h.b16 %v309
    %v1616 = vunpack.c.l.b16 %v310
    %v1617 = vunpack.c.h.b16 %v310
    %v1618 = vunpack.c.l.b16 %v311
    %v1619 = vunpack.c.h.b16 %v311
    %v1620 = vunpack.c.l.b16 %v312
    %v1621 = vunpack.c.h.b16 %v312
    %v1622 = vunpack.c.l.b16 %v313
    %v1623 = vunpack.c.h.b16 %v313
    %v1624 = vunpack.c.l.b16 %v314
    %v1625 = vunpack.c.h.b16 %v314
    %v1626 = vunpack.c.l.b16 %v315
    %v1627 = vunpack.c.h.b16 %v315
    %v1628 = vunpack.c.l.b16 %v316
    %v1629 = vunpack.c.h.b16 %v316
    %v1630 = vunpack.c.l.b16 %v317
    %v1631 = vunpack.c.h.b16 %v317
    %v1632 = vunpack.c.l.b16 %v318
    %v1633 = vunpack.c.h.b16 %v318
    %v1634 = vunpack.c.l.b16 %v319
    %v1635 = vunpack.c.h.b16 %v319
    %v1636 = vunpack.c.l.b16 %v320
    %v1637 = vunpack.c.h.b16 %v320
    %v1638 = vunpack.c.l.b16 %v321
    %v1639 = vunpack.c.h.b16 %v321
    %v1640 = vunpack.c.l.b16 %v322
    %v1641 = vunpack.c.h.b16 %v322
    %v1642 = vunpack.c.l.b16 %v323
    %v1643 = vunpack.c.h.b16 %v323
    %v1644 = vunpack.c.l.b16 %v324
    %v1645 = vunpack.c.h.b16 %v324
    %v1646 = vunpack.c.l.b16 %v325
    %v1647 = vunpack.c.h.b16 %v325
    %v1648 = vunpack.c.l.b16 %v326
    %v1649 = vunpack.c.h.b16 %v326
    %v1650 = vunpack.c.l.b16 %v327
    %v1651 = vunpack.c.h.b16 %v327
    %v1652 = vunpack.c.l.b16 %v328
    %v1653 = vunpack.c.h.b16 %v328
    %v1654 = vunpack.c.l.b16 %v329
    %v1655 = vunpack.c.h.b16 %v329
    %v1656 = vunpack.c.l.b16 %v330
    %v1657 = vunpack.c.h.b16 %v330
    %v1658 = vunpack.c.l.b16 %v331
    %v1659 = vunpack.c.h.b16 %v331
    %v1660 = vunpack.c.l.b16 %v332
    %v1661 = vunpack.c.h.b16 %v332
    %v1662 = vunpack.c.l.b16 %v333
    %v1663 = vunpack.c.h.b16 %v333
    %v1664 = vunpack.c.l.b16 %v334
    %v1665 = vunpack.c.h.b16 %v334
    %v1666 = vunpack.c.l.b16 %v335
    %v1667 = vunpack.c.h.b16 %v335
    %v1668 = vunpack.c.l.b16 %v336
    %v1669 = vunpack.c.h.b16 %v336
    %v1670 = vunpack.c.l.b16 %v337
    %v1671 = vunpack.c.h.b16 %v337
    %v1672 = vunpack.c.l.b16 %v338
    %v1673 = vunpack.c.h.b16 %v338
    %v1674 = vunpack.c.l.b16 %v339
    %v1675 = vunpack.c.h.b16 %v339
    %v1676 = vunpack.c.l.b16 %v340
    %v1677 = vunpack.c.h.b16 %v340
    %v1678 = vunpack.c.l.b16 %v341
    %v1679 = vunpack.c.h.b16 %v341
    %v1680 = vunpack.c.l.b16 %v342
    %v1681 = vunpack.c.h.b16 %v342
    %v1682 = vunpack.c.l.b16 %v343
    %v1683 = vunpack.c.h.b16 %v343
    %v1684 = vunpack.c.l.b16 %v344
    %v1685 = vunpack.c.h.b16 %v344
    %v1686 = vunpack.c.l.b16 %v345
    %v1687 = vunpack.c.h.b16 %v345
    %v1688 = vunpack.c.l.b16 %v346
    %v1689 = vunpack.c.h.b16 %v346
    %v1690 = vunpack.c.l.b16 %v347
    %v1691 = vunpack.c.h.b16 %v347
    %v1692 = vunpack.c.l.b16 %v348
    %v1693 = vunpack.c.h.b16 %v348
    %v1694 = vunpack.c.l.b16 %v349
    %v1695 = vunpack.c.h.b16 %v349
    %v1696 = vunpack.c.l.b16 %v350
    %v1697 = vunpack.c.h.b16 %v350
    %v1698 = vunpack.c.l.b16 %v351
    %v1699 = vunpack.c.h.b16 %v351
    %v1700 = vunpack.c.l.b16 %v352
    %v1701 = vunpack.c.h.b16 %v352
    %v1702 = vunpack.c.l.b16 %v353
    %v1703 = vunpack.c.h.b16 %v353
    %v1704 = vunpack.c.l.b16 %v354
    %v1705 = vunpack.c.h.b16 %v354
    %v1706 = vunpack.c.l.b16 %v355
    %v1707 = vunpack.c.h.b16 %v355
    %v1708 = vunpack.c.l.b16 %v356
    %v1709 = vunpack.c.h.b16 %v356
    %v1710 = vunpack.c.l.b16 %v357
    %v1711 = vunpack.c.h.b16 %v357
    %v1712 = vunpack.c.l.b16 %v358
    %v1713 = vunpack.c.h.b16 %v358
    %v1714 = vunpack.c.l.b16 %v359
    %v1715 = vunpack.c.h.b16 %v359
    %v1716 = vunpack.c.l.b16 %v360
    %v1717 = vunpack.c.h.b16 %v360
    %v1718 = vunpack.c.l.b16 %v361
    %v1719 = vunpack.c.h.b16 %v361
    %v1720 = vunpack.c.l.b16 %v362
    %v1721 = vunpack.c.h.b16 %v362
    %v1722 = vunpack.c.l.b16 %v363
    %v1723 = vunpack.c.h.b16 %v363
    %v1724 = vunpack.c.l.b16 %v364
    %v1725 = vunpack.c.h.b16 %v364
    %v1726 = vunpack.c.l.b16 %v365
    %v1727 = vunpack.c.h.b16 %v365
    %v1728 = vunpack.c.l.b16 %v366
    %v1729 = vunpack.c.h.b16 %v366
    %v1730 = vunpack.c.l.b16 %v367
    %v1731 = vunpack.c.h.b16 %v367
    %v1732 = vunpack.c.l.b16 %v368
    %v1733 = vunpack.c.h.b16 %v368
    %v1734 = vunpack.c.l.b16 %v369
    %v1735 = vunpack.c.h.b16 %v369
    %v1736 = vunpack.c.l.b16 %v370
    %v1737 = vunpack.c.h.b16 %v370
    %v1738 = vunpack.c.l.b16 %v371
    %v1739 = vunpack.c.h.b16 %v371
    %v1740 = vunpack.c.l.b16 %v372
    %v1741 = vunpack.c.h.b16 %v372
    %v1742 = vunpack.c.l.b16 %v373
    %v1743 = vunpack.c.h.b16 %v373
    %v1744 = vunpack.c.l.b16 %v374
    %v1745 = vunpack.c.h.b16 %v374
    %v1746 = vunpack.c.l.b16 %v375
    %v1747 = vunpack.c.h.b16 %v375
    %v1748 = vunpack.c.l.b16 %v376
    %v1749 = vunpack.c.h.b16 %v376
    %v1750 = vunpack.c.l.b16 %v377
    %v1751 = vunpack.c.h.b16 %v377
    %v1752 = vunpack.c.l.b16 %v378
    %v1753 = vunpack.c.h.b16 %v378
    %v1754 = vunpack.c.l.b16 %v379
    %v1755 = vunpack.c.h.b16 %v379
    %v1756 = vunpack.c.l.b16 %v380
    %v1757 = vunpack.c.h.b16 %v380
    %v1758 = vunpack.c.l.b16 %v381
    %v1759 = vunpack.c.h.b16 %v381
    %v1760 = vunpack.c.l.b16 %v382
    %v1761 = vunpack.c.h.b16 %v382
    %v1762 = vunpack.c.l.b16 %v383
    %v1763 = vunpack.c.h.b16 %v383
    %v1764 = vunpack.c.l.b16 %v384
    %v1765 = vunpack.c.h.b16 %v384
    %v1766 = vunpack.c.l.b16 %v385
    %v1767 = vunpack.c.h.b16 %v385
    %v1768 = vunpack.c.l.b16 %v386
    %v1769 = vunpack.c.h.b16 %v386
    %v1770 = vunpack.c.l.b16 %v387
    %v1771 = vunpack.c.h.b16 %v387
    %v1772 = vunpack.c.l.b16 %v388
    %v1773 = vunpack.c.h.b16 %v388
    %v1774 = vunpack.c.l.b16 %v389
    %v1775 = vunpack.c.h.b16 %v389
    %v1776 = vunpack.c.l.b16 %v390
    %v1777 = vunpack.c.h.b16 %v390
    %v1778 = vunpack.c.l.b16 %v391
    %v1779 = vunpack.c.h.b16 %v391
    %v1780 = vunpack.c.l.b16 %v392
    %v1781 = vunpack.c.h.b16 %v392
    %v1782 = vunpack.c.l.b16 %v393
    %v1783 = vunpack.c.h.b16 %v393
    %v1784 = vunpack.c.l.b16 %v394
    %v1785 = vunpack.c.h.b16 %v394
    %v1786 = vunpack.c.l.b16 %v395
    %v1787 = vunpack.c.h.b16 %v395
    %v1788 = vunpack.c.l.b16 %v396
    %v1789 = vunpack.c.h.b16 %v396
    %v1790 = vunpack.c.l.b16 %v397
    %v1791 = vunpack.c.h.b16 %v397
    %v1792 = vunpack.c.l.b16 %v398
    %v1793 = vunpack.c.h.b16 %v398
    %v1794 = vunpack.c.l.b16 %v399
    %v1795 = vunpack.c.h.b16 %v399
    %v1796 = vunpack.c.l.b16 %v400
    %v1797 = vunpack.c.h.b16 %v400
    %v1798 = vunpack.c.l.b16 %v401
    %v1799 = vunpack.c.h.b16 %v401
    %v1800 = vunpack.c.l.b16 %v402
    %v1801 = vunpack.c.h.b16 %v402
    %v1802 = vunpack.c.l.b16 %v403
    %v1803 = vunpack.c.h.b16 %v403
    %v1804 = vunpack.c.l.b16 %v404
    %v1805 = vunpack.c.h.b16 %v404
    %v1806 = vunpack.c.l.b16 %v405
    %v1807 = vunpack.c.h.b16 %v405
    %v1808 = vunpack.c.l.b16 %v406
    %v1809 = vunpack.c.h.b16 %v406
    %v1810 = vunpack.c.l.b16 %v407
    %v1811 = vunpack.c.h.b16 %v407
    %v1812 = vunpack.c.l.b16 %v408
    %v1813 = vunpack.c.h.b16 %v408
    %v1814 = vunpack.c.l.b16 %v409
    %v1815 = vunpack.c.h.b16 %v409
    %v1816 = vunpack.c.l.b16 %v410
    %v1817 = vunpack.c.h.b16 %v410
    %v1818 = vunpack.c.l.b16 %v411
    %v1819 = vunpack.c.h.b16 %v411
    %v1820 = vunpack.c.l.b16 %v412
    %v1821 = vunpack.c.h.b16 %v412
    %v1822 = vunpack.c.l.b16 %v413
    %v1823 = vunpack.c.h.b16 %v413
    %v1824 = vunpack.c.l.b16 %v414
    %v1825 = vunpack.c.h.b16 %v414
    %v1826 = vunpack.c.l.b16 %v415
    %v1827 = vunpack.c.h.b16 %v415
    %v1828 = vunpack.c.l.b16 %v416
    %v1829 = vunpack.c.h.b16 %v416
    %v1830 = vunpack.c.l.b16 %v417
    %v1831 = vunpack.c.h.b16 %v417
    %v1832 = vunpack.c.l.b16 %v418
    %v1833 = vunpack.c.h.b16 %v418
    %v1834 = vunpack.c.l.b16 %v419
    %v1835 = vunpack.c.h.b16 %v419
    %v1836 = vunpack.c.l.b16 %v420
    %v1837 = vunpack.c.h.b16 %v420
    %v1838 = vunpack.c.l.b16 %v421
    %v1839 = vunpack.c.h.b16 %v421
    %v1840 = vunpack.c.l.b16 %v422
    %v1841 = vunpack.c.h.b16 %v422
    %v1842 = vunpack.c.l.b16 %v423
    %v1843 = vunpack.c.h.b16 %v423
    %v1844 = vunpack.c.l.b16 %v424
    %v1845 = vunpack.c.h.b16 %v424
    %v1846 = vunpack.c.l.b16 %v425
    %v1847 = vunpack.c.h.b16 %v425
    %v1848 = vunpack.c.l.b16 %v426
    %v1849 = vunpack.c.h.b16 %v426
    %v1850 = vunpack.c.l.b16 %v427
    %v1851 = vunpack.c.h.b16 %v427
    %v1852 = vunpack.c.l.b16 %v428
    %v1853 = vunpack.c.h.b16 %v428
    %v1854 = vunpack.c.l.b16 %v429
    %v1855 = vunpack.c.h.b16 %v429
    %v1856 = vunpack.c.l.b16 %v430
    %v1857 = vunpack.c.h.b16 %v430
    %v1858 = vunpack.c.l.b16 %v431
    %v1859 = vunpack.c.h.b16 %v431
    %v1860 = vunpack.c.l.b16 %v432
    %v1861 = vunpack.c.h.b16 %v432
    %v1862 = vunpack.c.l.b16 %v433
    %v1863 = vunpack.c.h.b16 %v433
    %v1864 = vunpack.c.l.b16 %v434
    %v1865 = vunpack.c.h.b16 %v434
    %v1866 = vunpack.c.l.b16 %v435
    %v1867 = vunpack.c.h.b16 %v435
    %v1868 = vunpack.c.l.b16 %v436
    %v1869 = vunpack.c.h.b16 %v436
    %v1870 = vunpack.c.l.b16 %v437
    %v1871 = vunpack.c.h.b16 %v437
    %v1872 = vunpack.c.l.b16 %v438
    %v1873 = vunpack.c.h.b16 %v438
    %v1874 = vunpack.c.l.b16 %v439
    %v1875 = vunpack.c.h.b16 %v439
    %v1876 = vunpack.c.l.b16 %v440
    %v1877 = vunpack.c.h.b16 %v440
    %v1878 = vunpack.c.l.b16 %v441
    %v1879 = vunpack.c.h.b16 %v441
    %v1880 = vunpack.c.l.b16 %v442
    %v1881 = vunpack.c.h.b16 %v442
    %v1882 = vunpack.c.l.b16 %v443
    %v1883 = vunpack.c.h.b16 %v443
    %v1884 = vunpack.c.l.b16 %v444
    %v1885 = vunpack.c.h.b16 %v444
    %v1886 = vunpack.c.l.b16 %v445
    %v1887 = vunpack.c.h.b16 %v445
    %v1888 = vunpack.c.l.b16 %v446
    %v1889 = vunpack.c.h.b16 %v446
    %v1890 = vunpack.c.l.b16 %v447
    %v1891 = vunpack.c.h.b16 %v447
    %v1892 = vunpack.c.l.b16 %v448
    %v1893 = vunpack.c.h.b16 %v448
    %v1894 = vunpack.c.l.b16 %v449
    %v1895 = vunpack.c.h.b16 %v449
    %v1896 = vunpack.c.l.b16 %v450
    %v1897 = vunpack.c.h.b16 %v450
    %v1898 = vunpack.c.l.b16 %v451
    %v1899 = vunpack.c.h.b16 %v451
    %v1900 = vunpack.c.l.b16 %v452
    %v1901 = vunpack.c.h.b16 %v452
    %v1902 = vunpack.c.l.b16 %v453
    %v1903 = vunpack.c.h.b16 %v453
    %v1904 = vunpack.c.l.b16 %v454
    %v1905 = vunpack.c.h.b16 %v454
    %v1906 = vunpack.c.l.b16 %v455
    %v1907 = vunpack.c.h.b16 %v455
    %v1908 = vunpack.c.l.b16 %v456
    %v1909 = vunpack.c.h.b16 %v456
    %v1910 = vunpack.c.l.b16 %v457
    %v1911 = vunpack.c.h.b16 %v457
    %v1912 = vunpack.c.l.b16 %v458
    %v1913 = vunpack.c.h.b16 %v458
    %v1914 = vunpack.c.l.b16 %v459
    %v1915 = vunpack.c.h.b16 %v459
    %v1916 = vunpack.c.l.b16 %v460
    %v1917 = vunpack.c.h.b16 %v460
    %v1918 = vunpack.c.l.b16 %v461
    %v1919 = vunpack.c.h.b16 %v461
    %v1920 = vunpack.c.l.b16 %v462
    %v1921 = vunpack.c.h.b16 %v462
    %v1922 = vunpack.c.l.b16 %v463
    %v1923 = vunpack.c.h.b16 %v463
    %v1924 = vunpack.c.l.b16 %v464
    %v1925 = vunpack.c.h.b16 %v464
    %v1926 = vunpack.c.l.b16 %v465
    %v1927 = vunpack.c.h.b16 %v465
    %v1928 = vunpack.c.l.b16 %v466
    %v1929 = vunpack.c.h.b16 %v466
    %v1930 = vunpack.c.l.b16 %v467
    %v1931 = vunpack.c.h.b16 %v467
    %v1932 = vunpack.c.l.b16 %v468
    %v1933 = vunpack.c.h.b16 %v468
    %v1934 = vunpack.c.l.b16 %v469
    %v1935 = vunpack.c.h.b16 %v469
    %v1936 = vunpack.c.l.b16 %v470
    %v1937 = vunpack.c.h.b16 %v470
    %v1938 = vunpack.c.l.b16 %v471
    %v1939 = vunpack.c.h.b16 %v471
    %v1940 = vunpack.c.l.b16 %v472
    %v1941 = vunpack.c.h.b16 %v472
    %v1942 = vunpack.c.l.b16 %v473
    %v1943 = vunpack.c.h.b16 %v473
    %v1944 = vunpack.c.l.b16 %v474
    %v1945 = vunpack.c.h.b16 %v474
    %v1946 = vunpack.c.l.b16 %v475
    %v1947 = vunpack.c.h.b16 %v475
    %v1948 = vunpack.c.l.b16 %v476
    %v1949 = vunpack.c.h.b16 %v476
    %v1950 = vunpack.c.l.b16 %v477
    %v1951 = vunpack.c.h.b16 %v477
    %v1952 = vunpack.c.l.b16 %v478
    %v1953 = vunpack.c.h.b16 %v478
    %v1954 = vunpack.c.l.b16 %v479
    %v1955 = vunpack.c.h.b16 %v479
    %v1956 = vunpack.c.l.b16 %v480
    %v1957 = vunpack.c.h.b16 %v480
    %v1958 = vunpack.c.l.b16 %v481
    %v1959 = vunpack.c.h.b16 %v481
    %v1960 = vunpack.c.l.b16 %v482
    %v1961 = vunpack.c.h.b16 %v482
    %v1962 = vunpack.c.l.b16 %v483
    %v1963 = vunpack.c.h.b16 %v483
    %v1964 = vunpack.c.l.b16 %v484
    %v1965 = vunpack.c.h.b16 %v484
    %v1966 = vunpack.c.l.b16 %v485
    %v1967 = vunpack.c.h.b16 %v485
    %v1968 = vunpack.c.l.b16 %v486
    %v1969 = vunpack.c.h.b16 %v486
    %v1970 = vunpack.c.l.b16 %v487
    %v1971 = vunpack.c.h.b16 %v487
    %v1972 = vunpack.c.l.b16 %v488
    %v1973 = vunpack.c.h.b16 %v488
    %v1974 = vunpack.c.l.b16 %v489
    %v1975 = vunpack.c.h.b16 %v489
    %v1976 = vunpack.c.l.b16 %v490
    %v1977 = vunpack.c.h.b16 %v490
    %v1978 = vunpack.c.l.b16 %v491
    %v1979 = vunpack.c.h.b16 %v491
    %v1980 = vunpack.c.l.b16 %v492
    %v1981 = vunpack.c.h.b16 %v492
    %v1982 = vunpack.c.l.b16 %v493
    %v1983 = vunpack.c.h.b16 %v493
    %v1984 = vunpack.c.l.b16 %v494
    %v1985 = vunpack.c.h.b16 %v494
    %v1986 = vunpack.c.l.b16 %v495
    %v1987 = vunpack.c.h.b16 %v495
    %v1988 = vunpack.c.l.b16 %v496
    %v1989 = vunpack.c.h.b16 %v496
    %v1990 = vunpack.c.l.b16 %v497
    %v1991 = vunpack.c.h.b16 %v497
    %v1992 = vunpack.c.l.b16 %v498
    %v1993 = vunpack.c.h.b16 %v498
    %v1994 = vunpack.c.l.b16 %v499
    %v1995 = vunpack.c.h.b16 %v499
    %v1996 = vunpack.c.l.b16 %v500
    %v1997 = vunpack.c.h.b16 %v500
    %v1998 = vunpack.c.l.b16 %v501
    %v1999 = vunpack.c.h.b16 %v501
    %v2000 = vunpack.c.l.b16 %v502
    %v2001 = vunpack.c.h.b16 %v502
    %v2002 = vunpack.c.l.b16 %v503
    %v2003 = vunpack.c.h.b16 %v503
    %v2004 = vunpack.c.l.b16 %v504
    %v2005 = vunpack.c.h.b16 %v504
    %v2006 = vunpack.c.l.b16 %v505
    %v2007 = vunpack.c.h.b16 %v505
    %v2008 = vunpack.c.l.b16 %v506
    %v2009 = vunpack.c.h.b16 %v506
    %v2010 = vunpack.c.l.b16 %v507
    %v2011 = vunpack.c.h.b16 %v507
    %v2012 = vunpack.c.l.b16 %v508
    %v2013 = vunpack.c.h.b16 %v508
    %v2014 = vunpack.c.l.b16 %v509
    %v2015 = vunpack.c.h.b16 %v509
    %v2016 = vunpack.c.l.b16 %v510
    %v2017 = vunpack.c.h.b16 %v510
    %v2018 = vunpack.c.l.b16 %v511
    %v2019 = vunpack.c.h.b16 %v511
    %v2020 = vunpack.c.l.b16 %v512
    %v2021 = vunpack.c.h.b16 %v512
    %v2022 = vunpack.c.l.b16 %v513
    %v2023 = vunpack.c.h.b16 %v513
    %v2024 = vunpack.c.l.b16 %v514
    %v2025 = vunpack.c.h.b16 %v514
    %v2026 = vunpack.c.l.b16 %v515
    %v2027 = vunpack.c.h.b16 %v515
    %v2028 = vunpack.c.l.b16 %v516
    %v2029 = vunpack.c.h.b16 %v516
    %v2030 = vunpack.c.l.b16 %v517
    %v2031 = vunpack.c.h.b16 %v517
    %v2032 = vunpack.c.l.b16 %v518
    %v2033 = vunpack.c.h.b16 %v518
    %v2034 = vunpack.c.l.b16 %v519
    %v2035 = vunpack.c.h.b16 %v519
    %v2036 = vunpack.c.l.b16 %v520
    %v2037 = vunpack.c.h.b16 %v520
    %v2038 = vunpack.c.l.b16 %v521
    %v2039 = vunpack.c.h.b16 %v521
    %v2040 = vunpack.c.l.b16 %v522
    %v2041 = vunpack.c.h.b16 %v522
    %v2042 = vunpack.c.l.b16 %v523
    %v2043 = vunpack.c.h.b16 %v523
    %v2044 = vunpack.c.l.b16 %v524
    %v2045 = vunpack.c.h.b16 %v524
    %v2046 = vunpack.c.l.b16 %v525
    %v2047 = vunpack.c.h.b16 %v525
    %v2048 = vunpack.c.l.b16 %v526
    %v2049 = vunpack.c.h.b16 %v526
    %v2050 = vunpack.c.l.b16 %v527
    %v2051 = vunpack.c.h.b16 %v527
    %v2052 = vunpack.c.l.b16 %v528
    %v2053 = vunpack.c.h.b16 %v528
    %v2054 = vunpack.c.l.b16 %v529
    %v2055 = vunpack.c.h.b16 %v529
    %v2056 = vunpack.c.l.b16 %v530
    %v2057 = vunpack.c.h.b16 %v530
    %v2058 = vunpack.c.l.b16 %v531
    %v2059 = vunpack.c.h.b16 %v531
    %v2060 = vunpack.c.l.b16 %v532
    %v2061 = vunpack.c.h.b16 %v532
    %v2062 = vunpack.c.l.b16 %v533
    %v2063 = vunpack.c.h.b16 %v533
    %v2064 = vunpack.c.l.b16 %v534
    %v2065 = vunpack.c.h.b16 %v534
    %v2066 = vunpack.c.l.b16 %v535
    %v2067 = vunpack.c.h.b16 %v535
    %v2068 = vunpack.c.l.b16 %v536
    %v2069 = vunpack.c.h.b16 %v536
    %v2070 = vunpack.c.l.b16 %v537
    %v2071 = vunpack.c.h.b16 %v537
    %v2072 = vunpack.c.l.b16 %v538
    %v2073 = vunpack.c.h.b16 %v538
    %v2074 = vunpack.c.l.b16 %v539
    %v2075 = vunpack.c.h.b16 %v539
    %v2076 = vunpack.c.l.b16 %v540
    %v2077 = vunpack.c.h.b16 %v540
    %v2078 = vunpack.c.l.b16 %v541
    %v2079 = vunpack.c.h.b16 %v541
    %v2080 = vunpack.c.l.b16 %v542
    %v2081 = vunpack.c.h.b16 %v542
    %v2082 = vunpack.c.l.b16 %v543
    %v2083 = vunpack.c.h.b16 %v543
    %v2084 = vunpack.c.l.b16 %v544
    %v2085 = vunpack.c.h.b16 %v544
    %v2086 = vunpack.c.l.b16 %v545
    %v2087 = vunpack.c.h.b16 %v545
    %v2088 = vunpack.c.l.b16 %v546
    %v2089 = vunpack.c.h.b16 %v546
    %v2090 = vunpack.c.l.b16 %v547
    %v2091 = vunpack.c.h.b16 %v547
    %v2092 = vunpack.c.l.b16 %v548
    %v2093 = vunpack.c.h.b16 %v548
    %v2094 = vunpack.c.l.b16 %v549
    %v2095 = vunpack.c.h.b16 %v549
    %v2096 = vunpack.c.l.b16 %v550
    %v2097 = vunpack.c.h.b16 %v550
    %v2098 = vunpack.c.l.b16 %v551
    %v2099 = vunpack.c.h.b16 %v551
    %v2100 = vunpack.c.l.b16 %v552
    %v2101 = vunpack.c.h.b16 %v552
    %v2102 = vunpack.c.l.b16 %v553
    %v2103 = vunpack.c.h.b16 %v553
    %v2104 = vunpack.c.l.b16 %v554
    %v2105 = vunpack.c.h.b16 %v554
    %v2106 = vunpack.c.l.b16 %v555
    %v2107 = vunpack.c.h.b16 %v555
    %v2108 = vunpack.c.l.b16 %v556
    %v2109 = vunpack.c.h.b16 %v556
    %v2110 = vunpack.c.l.b16 %v557
    %v2111 = vunpack.c.h.b16 %v557
    %v2112 = vunpack.c.l.b16 %v558
    %v2113 = vunpack.c.h.b16 %v558
    %v2114 = vunpack.c.l.b16 %v559
    %v2115 = vunpack.c.h.b16 %v559
    %v2116 = vunpack.c.l.b16 %v560
    %v2117 = vunpack.c.h.b16 %v560
    %v2118 = vunpack.c.l.b16 %v561
    %v2119 = vunpack.c.h.b16 %v561
    %v2120 = vunpack.c.l.b16 %v562
    %v2121 = vunpack.c.h.b16 %v562
    %v2122 = vunpack.c.l.b16 %v563
    %v2123 = vunpack.c.h.b16 %v563
    %v2124 = vunpack.c.l.b16 %v564
    %v2125 = vunpack.c.h.b16 %v564
    %v2126 = vunpack.c.l.b16 %v565
    %v2127 = vunpack.c.h.b16 %v565
    %v2128 = vunpack.c.l.b16 %v566
    %v2129 = vunpack.c.h.b16 %v566
    %v2130 = vunpack.c.l.b16 %v567
    %v2131 = vunpack.c.h.b16 %v567
    %v2132 = vunpack.c.l.b16 %v568
    %v2133 = vunpack.c.h.b16 %v568
    %v2134 = vunpack.c.l.b16 %v569
    %v2135 = vunpack.c.h.b16 %v569
    %v2136 = vunpack.c.l.b16 %v570
    %v2137 = vunpack.c.h.b16 %v570
    %v2138 = vunpack.c.l.b16 %v571
    %v2139 = vunpack.c.h.b16 %v571
    %v2140 = vunpack.c.l.b16 %v572
    %v2141 = vunpack.c.h.b16 %v572
    %v2142 = vunpack.c.l.b16 %v573
    %v2143 = vunpack.c.h.b16 %v573
    %v2144 = vunpack.c.l.b16 %v574
    %v2145 = vunpack.c.h.b16 %v574
    %v2146 = vunpack.c.l.b16 %v575
    %v2147 = vunpack.c.h.b16 %v575
    %v2148 = vunpack.c.l.b16 %v576
    %v2149 = vunpack.c.h.b16 %v576
    %v2150 = vunpack.c.l.b16 %v577
    %v2151 = vunpack.c.h.b16 %v577
    %v2152 = vunpack.c.l.b16 %v578
    %v2153 = vunpack.c.h.b16 %v578
    %v2154 = vunpack.c.l.b16 %v579
    %v2155 = vunpack.c.h.b16 %v579
    %v2156 = vunpack.c.l.b16 %v580
    %v2157 = vunpack.c.h.b16 %v580
    %v2158 = vunpack.c.l.b16 %v581
    %v2159 = vunpack.c.h.b16 %v581
    %v2160 = vunpack.c.l.b16 %v582
    %v2161 = vunpack.c.h.b16 %v582
    %v2162 = vunpack.c.l.b16 %v583
    %v2163 = vunpack.c.h.b16 %v583
    %v2164 = vunpack.c.l.b16 %v584
    %v2165 = vunpack.c.h.b16 %v584
    %v2166 = vunpack.c.l.b16 %v585
    %v2167 = vunpack.c.h.b16 %v585
    %v2168 = vunpack.c.l.b16 %v586
    %v2169 = vunpack.c.h.b16 %v586
    %v2170 = vunpack.c.l.b16 %v587
    %v2171 = vunpack.c.h.b16 %v587
    %v2172 = vunpack.c.l.b16 %v588
    %v2173 = vunpack.c.h.b16 %v588
    %v2174 = vunpack.c.l.b16 %v589
    %v2175 = vunpack.c.h.b16 %v589
    %v2176 = vunpack.c.l.b16 %v590
    %v2177 = vunpack.c.h.b16 %v590
    %v2178 = vunpack.c.l.b16 %v591
    %v2179 = vunpack.c.h.b16 %v591
    %v2180 = vunpack.c.l.b16 %v592
    %v2181 = vunpack.c.h.b16 %v592
    %v2182 = vunpack.c.l.b16 %v593
    %v2183 = vunpack.c.h.b16 %v593
    %v2184 = vunpack.c.l.b16 %v594
    %v2185 = vunpack.c.h.b16 %v594
    %v2186 = vunpack.c.l.b16 %v595
    %v2187 = vunpack.c.h.b16 %v595
    %v2188 = vunpack.c.l.b16 %v596
    %v2189 = vunpack.c.h.b16 %v596
    %v2190 = vunpack.c.l.b16 %v597
    %v2191 = vunpack.c.h.b16 %v597
    %v2192 = vunpack.c.l.b16 %v598
    %v2193 = vunpack.c.h.b16 %v598
    %v2194 = vunpack.c.l.b16 %v599
    %v2195 = vunpack.c.h.b16 %v599
    %v2196 = vunpack.c.l.b16 %v600
    %v2197 = vunpack.c.h.b16 %v600
    %v2198 = vunpack.c.l.b16 %v601
    %v2199 = vunpack.c.h.b16 %v601
    %v2200 = vunpack.c.l.b16 %v602
    %v2201 = vunpack.c.h.b16 %v602
    %v2202 = vunpack.c.l.b16 %v603
    %v2203 = vunpack.c.h.b16 %v603
    %v2204 = vunpack.c.l.b16 %v604
    %v2205 = vunpack.c.h.b16 %v604
    %v2206 = vunpack.c.l.b16 %v605
    %v2207 = vunpack.c.h.b16 %v605
    %v2208 = vunpack.c.l.b16 %v606
    %v2209 = vunpack.c.h.b16 %v606
    %v2210 = vunpack.c.l.b16 %v607
    %v2211 = vunpack.c.h.b16 %v607
    %v2212 = vunpack.c.l.b16 %v608
    %v2213 = vunpack.c.h.b16 %v608
    %v2214 = vunpack.c.l.b16 %v609
    %v2215 = vunpack.c.h.b16 %v609
    %v2216 = vpack.c.b16 %v1200, %v1192
    %v2217 = vpack.c.b16 %v1201, %v1193
    %v2218 = vpack.c.b16 %v1202, %v1194
    %v2219 = vpack.c.b16 %v1203, %v1195
    %v2220 = vpack.c.b16 %v1204, %v1196
    %v2221 = vpack.c.b16 %v1205, %v1197
    %v2222 = vpack.c.b16 %v1206, %v1198
    %v2223 = vpack.c.b16 %v1207, %v1199
    %v2224 = vpack.c.b16 %v1216, %v1208
    %v2225 = vpack.c.b16 %v1217, %v1209
    %v2226 = vpack.c.b16 %v1218, %v1210
    %v2227 = vpack.c.b16 %v1219, %v1211
    %v2228 = vpack.c.b16 %v1220, %v1212
    %v2229 = vpack.c.b16 %v1221, %v1213
    %v2230 = vpack.c.b16 %v1222, %v1214
    %v2231 = vpack.c.b16 %v1223, %v1215
    %v2232 = vpack.c.b16 %v1232, %v1224
    %v2233 = vpack.c.b16 %v1233, %v1225
    %v2234 = vpack.c.b16 %v1234, %v1226
    %v2235 = vpack.c.b16 %v1235, %v1227
    %v2236 = vpack.c.b16 %v1236, %v1228
    %v2237 = vpack.c.b16 %v1237, %v1229
    %v2238 = vpack.c.b16 %v1238, %v1230
    %v2239 = vpack.c.b16 %v1239, %v1231
    %v2240 = vpack.c.b16 %v1248, %v1240
    %v2241 = vpack.c.b16 %v1249, %v1241
    %v2242 = vpack.c.b16 %v1250, %v1242
    %v2243 = vpack.c.b16 %v1251, %v1243
    %v2244 = vpack.c.b16 %v1252, %v1244
    %v2245 = vpack.c.b16 %v1253, %v1245
    %v2246 = vpack.c.b16 %v1254, %v1246
    %v2247 = vpack.c.b16 %v1255, %v1247
    %v2248 = vpack.c.b16 %v1264, %v1256
    %v2249 = vpack.c.b16 %v1265, %v1257
    %v2250 = vpack.c.b16 %v1266, %v1258
    %v2251 = vpack.c.b16 %v1267, %v1259
    %v2252 = vpack.c.b16 %v1268, %v1260
    %v2253 = vpack.c.b16 %v1269, %v1261
    %v2254 = vpack.c.b16 %v1270, %v1262
    %v2255 = vpack.c.b16 %v1271, %v1263
    %v2256 = vpack.c.b16 %v1280, %v1272
    %v2257 = vpack.c.b16 %v1281, %v1273
    %v2258 = vpack.c.b16 %v1282, %v1274
    %v2259 = vpack.c.b16 %v1283, %v1275
    %v2260 = vpack.c.b16 %v1284, %v1276
    %v2261 = vpack.c.b16 %v1285, %v1277
    %v2262 = vpack.c.b16 %v1286, %v1278
    %v2263 = vpack.c.b16 %v1287, %v1279
    %v2264 = vpack.c.b16 %v1296, %v1288
    %v2265 = vpack.c.b16 %v1297, %v1289
    %v2266 = vpack.c.b16 %v1298, %v1290
    %v2267 = vpack.c.b16 %v1299, %v1291
    %v2268 = vpack.c.b16 %v1300, %v1292
    %v2269 = vpack.c.b16 %v1301, %v1293
    %v2270 = vpack.c.b16 %v1302, %v1294
    %v2271 = vpack.c.b16 %v1303, %v1295
    %v2272 = vpack.c.b16 %v1312, %v1304
    %v2273 = vpack.c.b16 %v1313, %v1305
    %v2274 = vpack.c.b16 %v1314, %v1306
    %v2275 = vpack.c.b16 %v1315, %v1307
    %v2276 = vpack.c.b16 %v1316, %v1308
    %v2277 = vpack.c.b16 %v1317, %v1309
    %v2278 = vpack.c.b16 %v1318, %v1310
    %v2279 = vpack.c.b16 %v1319, %v1311
    %v2280 = vpack.c.b16 %v1328, %v1320
    %v2281 = vpack.c.b16 %v1329, %v1321
    %v2282 = vpack.c.b16 %v1330, %v1322
    %v2283 = vpack.c.b16 %v1331, %v1323
    %v2284 = vpack.c.b16 %v1332, %v1324
    %v2285 = vpack.c.b16 %v1333, %v1325
    %v2286 = vpack.c.b16 %v1334, %v1326
    %v2287 = vpack.c.b16 %v1335, %v1327
    %v2288 = vpack.c.b16 %v1344, %v1336
    %v2289 = vpack.c.b16 %v1345, %v1337
    %v2290 = vpack.c.b16 %v1346, %v1338
    %v2291 = vpack.c.b16 %v1347, %v1339
    %v2292 = vpack.c.b16 %v1348, %v1340
    %v2293 = vpack.c.b16 %v1349, %v1341
    %v2294 = vpack.c.b16 %v1350, %v1342
    %v2295 = vpack.c.b16 %v1351, %v1343
    %v2296 = vpack.c.b16 %v1360, %v1352
    %v2297 = vpack.c.b16 %v1361, %v1353
    %v2298 = vpack.c.b16 %v1362, %v1354
    %v2299 = vpack.c.b16 %v1363, %v1355
    %v2300 = vpack.c.b16 %v1364, %v1356
    %v2301 = vpack.c.b16 %v1365, %v1357
    %v2302 = vpack.c.b16 %v1366, %v1358
    %v2303 = vpack.c.b16 %v1367, %v1359
    %v2304 = vpack.c.b16 %v1376, %v1368
    %v2305 = vpack.c.b16 %v1377, %v1369
    %v2306 = vpack.c.b16 %v1378, %v1370
    %v2307 = vpack.c.b16 %v1379, %v1371
    %v2308 = vpack.c.b16 %v1380, %v1372
    %v2309 = vpack.c.b16 %v1381, %v1373
    %v2310 = vpack.c.b16 %v1382, %v1374
    %v2311 = vpack.c.b16 %v1383, %v1375
    %v2312 = vpack.c.b16 %v1392, %v1384
    %v2313 = vpack.c.b16 %v1393, %v1385
    %v2314 = vpack.c.b16 %v1394, %v1386
    %v2315 = vpack.c.b16 %v1395, %v1387
    %v2316 = vpack.c.b16 %v1396, %v1388
    %v2317 = vpack.c.b16 %v1397, %v1389
    %v2318 = vpack.c.b16 %v1398, %v1390
    %v2319 = vpack.c.b16 %v1399, %v1391
    %v2320 = vpack.c.b16 %v1408, %v1400
    %v2321 = vpack.c.b16 %v1409, %v1401
    %v2322 = vpack.c.b16 %v1410, %v1402
    %v2323 = vpack.c.b16 %v1411, %v1403
    %v2324 = vpack.c.b16 %v1412, %v1404
    %v2325 = vpack.c.b16 %v1413, %v1405
    %v2326 = vpack.c.b16 %v1414, %v1406
    %v2327 = vpack.c.b16 %v1415, %v1407
    %v2328 = vpack.c.b16 %v1424, %v1416
    %v2329 = vpack.c.b16 %v1425, %v1417
    %v2330 = vpack.c.b16 %v1426, %v1418
    %v2331 = vpack.c.b16 %v1427, %v1419
    %v2332 = vpack.c.b16 %v1428, %v1420
    %v2333 = vpack.c.b16 %v1429, %v1421
    %v2334 = vpack.c.b16 %v1430, %v1422
    %v2335 = vpack.c.b16 %v1431, %v1423
    %v2336 = vpack.c.b16 %v1440, %v1432
    %v2337 = vpack.c.b16 %v1441, %v1433
    %v2338 = vpack.c.b16 %v1442, %v1434
    %v2339 = vpack.c.b16 %v1443, %v1435
    %v2340 = vpack.c.b16 %v1444, %v1436
    %v2341 = vpack.c.b16 %v1445, %v1437
    %v2342 = vpack.c.b16 %v1446, %v1438
    %v2343 = vpack.c.b16 %v1447, %v1439
    %v2344 = vpack.c.b16 %v1456, %v1448
    %v2345 = vpack.c.b16 %v1457, %v1449
    %v2346 = vpack.c.b16 %v1458, %v1450
    %v2347 = vpack.c.b16 %v1459, %v1451
    %v2348 = vpack.c.b16 %v1460, %v1452
    %v2349 = vpack.c.b16 %v1461, %v1453
    %v2350 = vpack.c.b16 %v1462, %v1454
    %v2351 = vpack.c.b16 %v1463, %v1455
    %v2352 = vpack.c.b16 %v1472, %v1464
    %v2353 = vpack.c.b16 %v1473, %v1465
    %v2354 = vpack.c.b16 %v1474, %v1466
    %v2355 = vpack.c.b16 %v1475, %v1467
    %v2356 = vpack.c.b16 %v1476, %v1468
    %v2357 = vpack.c.b16 %v1477, %v1469
    %v2358 = vpack.c.b16 %v1478, %v1470
    %v2359 = vpack.c.b16 %v1479, %v1471
    %v2360 = vpack.c.b16 %v1488, %v1480
    %v2361 = vpack.c.b16 %v1489, %v1481
    %v2362 = vpack.c.b16 %v1490, %v1482
    %v2363 = vpack.c.b16 %v1491, %v1483
    %v2364 = vpack.c.b16 %v1492, %v1484
    %v2365 = vpack.c.b16 %v1493, %v1485
    %v2366 = vpack.c.b16 %v1494, %v1486
    %v2367 = vpack.c.b16 %v1495, %v1487
    %v2368 = vpack.c.b16 %v1504, %v1496
    %v2369 = vpack.c.b16 %v1505, %v1497
    %v2370 = vpack.c.b16 %v1506, %v1498
    %v2371 = vpack.c.b16 %v1507, %v1499
    %v2372 = vpack.c.b16 %v1508, %v1500
    %v2373 = vpack.c.b16 %v1509, %v1501
    %v2374 = vpack.c.b16 %v1510, %v1502
    %v2375 = vpack.c.b16 %v1511, %v1503
    %v2376 = vpack.c.b16 %v1520, %v1512
    %v2377 = vpack.c.b16 %v1521, %v1513
    %v2378 = vpack.c.b16 %v1522, %v1514
    %v2379 = vpack.c.b16 %v1523, %v1515
    %v2380 = vpack.c.b16 %v1524, %v1516
    %v2381 = vpack.c.b16 %v1525, %v1517
    %v2382 = vpack.c.b16 %v1526, %v1518
    %v2383 = vpack.c.b16 %v1527, %v1519
    %v2384 = vpack.c.b16 %v1536, %v1528
    %v2385 = vpack.c.b16 %v1537, %v1529
    %v2386 = vpack.c.b16 %v1538, %v1530
    %v2387 = vpack.c.b16 %v1539, %v1531
    %v2388 = vpack.c.b16 %v1540, %v1532
    %v2389 = vpack.c.b16 %v1541, %v1533
    %v2390 = vpack.c.b16 %v1542, %v1534
    %v2391 = vpack.c.b16 %v1543, %v1535
    %v2392 = vpack.c.b16 %v1552, %v1544
    %v2393 = vpack.c.b16 %v1553, %v1545
    %v2394 = vpack.c.b16 %v1554, %v1546
    %v2395 = vpack.c.b16 %v1555, %v1547
    %v2396 = vpack.c.b16 %v1556, %v1548
    %v2397 = vpack.c.b16 %v1557, %v1549
    %v2398 = vpack.c.b16 %v1558, %v1550
    %v2399 = vpack.c.b16 %v1559, %v1551
    %v2400 = vpack.c.b16 %v1568, %v1560
    %v2401 = vpack.c.b16 %v1569, %v1561
    %v2402 = vpack.c.b16 %v1570, %v1562
    %v2403 = vpack.c.b16 %v1571, %v1563
    %v2404 = vpack.c.b16 %v1572, %v1564
    %v2405 = vpack.c.b16 %v1573, %v1565
    %v2406 = vpack.c.b16 %v1574, %v1566
    %v2407 = vpack.c.b16 %v1575, %v1567
    %v2408 = vpack.c.b16 %v1584, %v1576
    %v2409 = vpack.c.b16 %v1585, %v1577
    %v2410 = vpack.c.b16 %v1586, %v1578
    %v2411 = vpack.c.b16 %v1587, %v1579
    %v2412 = vpack.c.b16 %v1588, %v1580
    %v2413 = vpack.c.b16 %v1589, %v1581
    %v2414 = vpack.c.b16 %v1590, %v1582
    %v2415 = vpack.c.b16 %v1591, %v1583
    %v2416 = vpack.c.b16 %v1600, %v1592
    %v2417 = vpack.c.b16 %v1601, %v1593
    %v2418 = vpack.c.b16 %v1602, %v1594
    %v2419 = vpack.c.b16 %v1603, %v1595
    %v2420 = vpack.c.b16 %v1604, %v1596
    %v2421 = vpack.c.b16 %v1605, %v1597
    %v2422 = vpack.c.b16 %v1606, %v1598
    %v2423 = vpack.c.b16 %v1607, %v1599
    %v2424 = vpack.c.b16 %v1616, %v1608
    %v2425 = vpack.c.b16 %v1617, %v1609
    %v2426 = vpack.c.b16 %v1618, %v1610
    %v2427 = vpack.c.b16 %v1619, %v1611
    %v2428 = vpack.c.b16 %v1620, %v1612
    %v2429 = vpack.c.b16 %v1621, %v1613
    %v2430 = vpack.c.b16 %v1622, %v1614
    %v2431 = vpack.c.b16 %v1623, %v1615
    %v2432 = vpack.c.b16 %v1632, %v1624
    %v2433 = vpack.c.b16 %v1633, %v1625
    %v2434 = vpack.c.b16 %v1634, %v1626
    %v2435 = vpack.c.b16 %v1635, %v1627
    %v2436 = vpack.c.b16 %v1636, %v1628
    %v2437 = vpack.c.b16 %v1637, %v1629
    %v2438 = vpack.c.b16 %v1638, %v1630
    %v2439 = vpack.c.b16 %v1639, %v1631
    %v2440 = vpack.c.b16 %v1648, %v1640
    %v2441 = vpack.c.b16 %v1649, %v1641
    %v2442 = vpack.c.b16 %v1650, %v1642
    %v2443 = vpack.c.b16 %v1651, %v1643
    %v2444 = vpack.c.b16 %v1652, %v1644
    %v2445 = vpack.c.b16 %v1653, %v1645
    %v2446 = vpack.c.b16 %v1654, %v1646
    %v2447 = vpack.c.b16 %v1655, %v1647
    %v2448 = vpack.c.b16 %v1664, %v1656
    %v2449 = vpack.c.b16 %v1665, %v1657
    %v2450 = vpack.c.b16 %v1666, %v1658
    %v2451 = vpack.c.b16 %v1667, %v1659
    %v2452 = vpack.c.b16 %v1668, %v1660
    %v2453 = vpack.c.b16 %v1669, %v1661
    %v2454 = vpack.c.b16 %v1670, %v1662
    %v2455 = vpack.c.b16 %v1671, %v1663
    %v2456 = vpack.c.b16 %v1680, %v1672
    %v2457 = vpack.c.b16 %v1681, %v1673
    %v2458 = vpack.c.b16 %v1682, %v1674
    %v2459 = vpack.c.b16 %v1683, %v1675
    %v2460 = vpack.c.b16 %v1684, %v1676
    %v2461 = vpack.c.b16 %v1685, %v1677
    %v2462 = vpack.c.b16 %v1686, %v1678
    %v2463 = vpack.c.b16 %v1687, %v1679
    %v2464 = vpack.c.b16 %v1696, %v1688
    %v2465 = vpack.c.b16 %v1697, %v1689
    %v2466 = vpack.c.b16 %v1698, %v1690
    %v2467 = vpack.c.b16 %v1699, %v1691
    %v2468 = vpack.c.b16 %v1700, %v1692
    %v2469 = vpack.c.b16 %v1701, %v1693
    %v2470 = vpack.c.b16 %v1702, %v1694
    %v2471 = vpack.c.b16 %v1703, %v1695
    %v2472 = vpack.c.b16 %v1712, %v1704
    %v2473 = vpack.c.b16 %v1713, %v1705
    %v2474 = vpack.c.b16 %v1714, %v1706
    %v2475 = vpack.c.b16 %v1715, %v1707
    %v2476 = vpack.c.b16 %v1716, %v1708
    %v2477 = vpack.c.b16 %v1717, %v1709
    %v2478 = vpack.c.b16 %v1718, %v1710
    %v2479 = vpack.c.b16 %v1719, %v1711
    %v2480 = vpack.c.b16 %v1728, %v1720
    %v2481 = vpack.c.b16 %v1729, %v1721
    %v2482 = vpack.c.b16 %v1730, %v1722
    %v2483 = vpack.c.b16 %v1731, %v1723
    %v2484 = vpack.c.b16 %v1732, %v1724
    %v2485 = vpack.c.b16 %v1733, %v1725
    %v2486 = vpack.c.b16 %v1734, %v1726
    %v2487 = vpack.c.b16 %v1735, %v1727
    %v2488 = vpack.c.b16 %v1744, %v1736
    %v2489 = vpack.c.b16 %v1745, %v1737
    %v2490 = vpack.c.b16 %v1746, %v1738
    %v2491 = vpack.c.b16 %v1747, %v1739
    %v2492 = vpack.c.b16 %v1748, %v1740
    %v2493 = vpack.c.b16 %v1749, %v1741
    %v2494 = vpack.c.b16 %v1750, %v1742
    %v2495 = vpack.c.b16 %v1751, %v1743
    %v2496 = vpack.c.b16 %v1760, %v1752
    %v2497 = vpack.c.b16 %v1761, %v1753
    %v2498 = vpack.c.b16 %v1762, %v1754
    %v2499 = vpack.c.b16 %v1763, %v1755
    %v2500 = vpack.c.b16 %v1764, %v1756
    %v2501 = vpack.c.b16 %v1765, %v1757
    %v2502 = vpack.c.b16 %v1766, %v1758
    %v2503 = vpack.c.b16 %v1767, %v1759
    %v2504 = vpack.c.b16 %v1776, %v1768
    %v2505 = vpack.c.b16 %v1777, %v1769
    %v2506 = vpack.c.b16 %v1778, %v1770
    %v2507 = vpack.c.b16 %v1779, %v1771
    %v2508 = vpack.c.b16 %v1780, %v1772
    %v2509 = vpack.c.b16 %v1781, %v1773
    %v2510 = vpack.c.b16 %v1782, %v1774
    %v2511 = vpack.c.b16 %v1783, %v1775
    %v2512 = vpack.c.b16 %v1792, %v1784
    %v2513 = vpack.c.b16 %v1793, %v1785
    %v2514 = vpack.c.b16 %v1794, %v1786
    %v2515 = vpack.c.b16 %v1795, %v1787
    %v2516 = vpack.c.b16 %v1796, %v1788
    %v2517 = vpack.c.b16 %v1797, %v1789
    %v2518 = vpack.c.b16 %v1798, %v1790
    %v2519 = vpack.c.b16 %v1799, %v1791
    %v2520 = vpack.c.b16 %v1808, %v1800
    %v2521 = vpack.c.b16 %v1809, %v1801
    %v2522 = vpack.c.b16 %v1810, %v1802
    %v2523 = vpack.c.b16 %v1811, %v1803
    %v2524 = vpack.c.b16 %v1812, %v1804
    %v2525 = vpack.c.b16 %v1813, %v1805
    %v2526 = vpack.c.b16 %v1814, %v1806
    %v2527 = vpack.c.b16 %v1815, %v1807
    %v2528 = vpack.c.b16 %v1824, %v1816
    %v2529 = vpack.c.b16 %v1825, %v1817
    %v2530 = vpack.c.b16 %v1826, %v1818
    %v2531 = vpack.c.b16 %v1827, %v1819
    %v2532 = vpack.c.b16 %v1828, %v1820
    %v2533 = vpack.c.b16 %v1829, %v1821
    %v2534 = vpack.c.b16 %v1830, %v1822
    %v2535 = vpack.c.b16 %v1831, %v1823
    %v2536 = vpack.c.b16 %v1840, %v1832
    %v2537 = vpack.c.b16 %v1841, %v1833
    %v2538 = vpack.c.b16 %v1842, %v1834
    %v2539 = vpack.c.b16 %v1843, %v1835
    %v2540 = vpack.c.b16 %v1844, %v1836
    %v2541 = vpack.c.b16 %v1845, %v1837
    %v2542 = vpack.c.b16 %v1846, %v1838
    %v2543 = vpack.c.b16 %v1847, %v1839
    %v2544 = vpack.c.b16 %v1856, %v1848
    %v2545 = vpack.c.b16 %v1857, %v1849
    %v2546 = vpack.c.b16 %v1858, %v1850
    %v2547 = vpack.c.b16 %v1859, %v1851
    %v2548 = vpack.c.b16 %v1860, %v1852
    %v2549 = vpack.c.b16 %v1861, %v1853
    %v2550 = vpack.c.b16 %v1862, %v1854
    %v2551 = vpack.c.b16 %v1863, %v1855
    %v2552 = vpack.c.b16 %v1872, %v1864
    %v2553 = vpack.c.b16 %v1873, %v1865
    %v2554 = vpack.c.b16 %v1874, %v1866
    %v2555 = vpack.c.b16 %v1875, %v1867
    %v2556 = vpack.c.b16 %v1876, %v1868
    %v2557 = vpack.c.b16 %v1877, %v1869
    %v2558 = vpack.c.b16 %v1878, %v1870
    %v2559 = vpack.c.b16 %v1879, %v1871
    %v2560 = vpack.c.b16 %v1888, %v1880
    %v2561 = vpack.c.b16 %v1889, %v1881
    %v2562 = vpack.c.b16 %v1890, %v1882
    %v2563 = vpack.c.b16 %v1891, %v1883
    %v2564 = vpack.c.b16 %v1892, %v1884
    %v2565 = vpack.c.b16 %v1893, %v1885
    %v2566 = vpack.c.b16 %v1894, %v1886
    %v2567 = vpack.c.b16 %v1895, %v1887
    %v2568 = vpack.c.b16 %v1904, %v1896
    %v2569 = vpack.c.b16 %v1905, %v1897
    %v2570 = vpack.c.b16 %v1906, %v1898
    %v2571 = vpack.c.b16 %v1907, %v1899
    %v2572 = vpack.c.b16 %v1908, %v1900
    %v2573 = vpack.c.b16 %v1909, %v1901
    %v2574 = vpack.c.b16 %v1910, %v1902
    %v2575 = vpack.c.b16 %v1911, %v1903
    %v2576 = vpack.c.b16 %v1920, %v1912
    %v2577 = vpack.c.b16 %v1921, %v1913
    %v2578 = vpack.c.b16 %v1922, %v1914
    %v2579 = vpack.c.b16 %v1923, %v1915
    %v2580 = vpack.c.b16 %v1924, %v1916
    %v2581 = vpack.c.b16 %v1925, %v1917
    %v2582 = vpack.c.b16 %v1926, %v1918
    %v2583 = vpack.c.b16 %v1927, %v1919
    %v2584 = vpack.c.b16 %v1936, %v1928
    %v2585 = vpack.c.b16 %v1937, %v1929
    %v2586 = vpack.c.b16 %v1938, %v1930
    %v2587 = vpack.c.b16 %v1939, %v1931
    %v2588 = vpack.c.b16 %v1940, %v1932
    %v2589 = vpack.c.b16 %v1941, %v1933
    %v2590 = vpack.c.b16 %v1942, %v1934
    %v2591 = vpack.c.b16 %v1943, %v1935
    %v2592 = vpack.c.b16 %v1952, %v1944
    %v2593 = vpack.c.b16 %v1953, %v1945
    %v2594 = vpack.c.b16 %v1954, %v1946
    %v2595 = vpack.c.b16 %v1955, %v1947
    %v2596 = vpack.c.b16 %v1956, %v1948
    %v2597 = vpack.c.b16 %v1957, %v1949
    %v2598 = vpack.c.b16 %v1958, %v1950
    %v2599 = vpack.c.b16 %v1959, %v1951
    %v2600 = vpack.c.b16 %v1968, %v1960
    %v2601 = vpack.c.b16 %v1969, %v1961
    %v2602 = vpack.c.b16 %v1970, %v1962
    %v2603 = vpack.c.b16 %v1971, %v1963
    %v2604 = vpack.c.b16 %v1972, %v1964
    %v2605 = vpack.c.b16 %v1973, %v1965
    %v2606 = vpack.c.b16 %v1974, %v1966
    %v2607 = vpack.c.b16 %v1975, %v1967
    %v2608 = vpack.c.b16 %v1984, %v1976
    %v2609 = vpack.c.b16 %v1985, %v1977
    %v2610 = vpack.c.b16 %v1986, %v1978
    %v2611 = vpack.c.b16 %v1987, %v1979
    %v2612 = vpack.c.b16 %v1988, %v1980
    %v2613 = vpack.c.b16 %v1989, %v1981
    %v2614 = vpack.c.b16 %v1990, %v1982
    %v2615 = vpack.c.b16 %v1991, %v1983
    %v2616 = vpack.c.b16 %v2000, %v1992
    %v2617 = vpack.c.b16 %v2001, %v1993
    %v2618 = vpack.c.b16 %v2002, %v1994
    %v2619 = vpack.c.b16 %v2003, %v1995
    %v2620 = vpack.c.b16 %v2004, %v1996
    %v2621 = vpack.c.b16 %v2005, %v1997
    %v2622 = vpack.c.b16 %v2006, %v1998
    %v2623 = vpack.c.b16 %v2007, %v1999
    %v2624 = vpack.c.b16 %v2016, %v2008
    %v2625 = vpack.c.b16 %v2017, %v2009
    %v2626 = vpack.c.b16 %v2018, %v2010
    %v2627 = vpack.c.b16 %v2019, %v2011
    %v2628 = vpack.c.b16 %v2020, %v2012
    %v2629 = vpack.c.b16 %v2021, %v2013
    %v2630 = vpack.c.b16 %v2022, %v2014
    %v2631 = vpack.c.b16 %v2023, %v2015
    %v2632 = vpack.c.b16 %v2032, %v2024
    %v2633 = vpack.c.b16 %v2033, %v2025
    %v2634 = vpack.c.b16 %v2034, %v2026
    %v2635 = vpack.c.b16 %v2035, %v2027
    %v2636 = vpack.c.b16 %v2036, %v2028
    %v2637 = vpack.c.b16 %v2037, %v2029
    %v2638 = vpack.c.b16 %v2038, %v2030
    %v2639 = vpack.c.b16 %v2039, %v2031
    %v2640 = vpack.c.b16 %v2048, %v2040
    %v2641 = vpack.c.b16 %v2049, %v2041
    %v2642 = vpack.c.b16 %v2050, %v2042
    %v2643 = vpack.c.b16 %v2051, %v2043
    %v2644 = vpack.c.b16 %v2052, %v2044
    %v2645 = vpack.c.b16 %v2053, %v2045
    %v2646 = vpack.c.b16 %v2054, %v2046
    %v2647 = vpack.c.b16 %v2055, %v2047
    %v2648 = vpack.c.b16 %v2064, %v2056
    %v2649 = vpack.c.b16 %v2065, %v2057
    %v2650 = vpack.c.b16 %v2066, %v2058
    %v2651 = vpack.c.b16 %v2067, %v2059
    %v2652 = vpack.c.b16 %v2068, %v2060
    %v2653 = vpack.c.b16 %v2069, %v2061
    %v2654 = vpack.c.b16 %v2070, %v2062
    %v2655 = vpack.c.b16 %v2071, %v2063
    %v2656 = vpack.c.b16 %v2080, %v2072
    %v2657 = vpack.c.b16 %v2081, %v2073
    %v2658 = vpack.c.b16 %v2082, %v2074
    %v2659 = vpack.c.b16 %v2083, %v2075
    %v2660 = vpack.c.b16 %v2084, %v2076
    %v2661 = vpack.c.b16 %v2085, %v2077
    %v2662 = vpack.c.b16 %v2086, %v2078
    %v2663 = vpack.c.b16 %v2087, %v2079
    %v2664 = vpack.c.b16 %v2096, %v2088
    %v2665 = vpack.c.b16 %v2097, %v2089
    %v2666 = vpack.c.b16 %v2098, %v2090
    %v2667 = vpack.c.b16 %v2099, %v2091
    %v2668 = vpack.c.b16 %v2100, %v2092
    %v2669 = vpack.c.b16 %v2101, %v2093
    %v2670 = vpack.c.b16 %v2102, %v2094
    %v2671 = vpack.c.b16 %v2103, %v2095
    %v2672 = vpack.c.b16 %v2112, %v2104
    %v2673 = vpack.c.b16 %v2113, %v2105
    %v2674 = vpack.c.b16 %v2114, %v2106
    %v2675 = vpack.c.b16 %v2115, %v2107
    %v2676 = vpack.c.b16 %v2116, %v2108
    %v2677 = vpack.c.b16 %v2117, %v2109
    %v2678 = vpack.c.b16 %v2118, %v2110
    %v2679 = vpack.c.b16 %v2119, %v2111
    %v2680 = vpack.c.b16 %v2128, %v2120
    %v2681 = vpack.c.b16 %v2129, %v2121
    %v2682 = vpack.c.b16 %v2130, %v2122
    %v2683 = vpack.c.b16 %v2131, %v2123
    %v2684 = vpack.c.b16 %v2132, %v2124
    %v2685 = vpack.c.b16 %v2133, %v2125
    %v2686 = vpack.c.b16 %v2134, %v2126
    %v2687 = vpack.c.b16 %v2135, %v2127
    %v2688 = vpack.c.b16 %v2144, %v2136
    %v2689 = vpack.c.b16 %v2145, %v2137
    %v2690 = vpack.c.b16 %v2146, %v2138
    %v2691 = vpack.c.b16 %v2147, %v2139
    %v2692 = vpack.c.b16 %v2148, %v2140
    %v2693 = vpack.c.b16 %v2149, %v2141
    %v2694 = vpack.c.b16 %v2150, %v2142
    %v2695 = vpack.c.b16 %v2151, %v2143
    %v2696 = vpack.c.b16 %v2160, %v2152
    %v2697 = vpack.c.b16 %v2161, %v2153
    %v2698 = vpack.c.b16 %v2162, %v2154
    %v2699 = vpack.c.b16 %v2163, %v2155
    %v2700 = vpack.c.b16 %v2164, %v2156
    %v2701 = vpack.c.b16 %v2165, %v2157
    %v2702 = vpack.c.b16 %v2166, %v2158
    %v2703 = vpack.c.b16 %v2167, %v2159
    %v2704 = vpack.c.b16 %v2176, %v2168
    %v2705 = vpack.c.b16 %v2177, %v2169
    %v2706 = vpack.c.b16 %v2178, %v2170
    %v2707 = vpack.c.b16 %v2179, %v2171
    %v2708 = vpack.c.b16 %v2180, %v2172
    %v2709 = vpack.c.b16 %v2181, %v2173
    %v2710 = vpack.c.b16 %v2182, %v2174
    %v2711 = vpack.c.b16 %v2183, %v2175
    %v2712 = vpack.c.b16 %v2192, %v2184
    %v2713 = vpack.c.b16 %v2193, %v2185
    %v2714 = vpack.c.b16 %v2194, %v2186
    %v2715 = vpack.c.b16 %v2195, %v2187
    %v2716 = vpack.c.b16 %v2196, %v2188
    %v2717 = vpack.c.b16 %v2197, %v2189
    %v2718 = vpack.c.b16 %v2198, %v2190
    %v2719 = vpack.c.b16 %v2199, %v2191
    %v2720 = vpack.c.b16 %v2208, %v2200
    %v2721 = vpack.c.b16 %v2209, %v2201
    %v2722 = vpack.c.b16 %v2210, %v2202
    %v2723 = vpack.c.b16 %v2211, %v2203
    %v2724 = vpack.c.b16 %v2212, %v2204
    %v2725 = vpack.c.b16 %v2213, %v2205
    %v2726 = vpack.c.b16 %v2214, %v2206
    %v2727 = vpack.c.b16 %v2215, %v2207
    %3240 = vmatprep.subr.bf16.mxu0 %v2217
    %3241 = vmatpush1.bf16.msra.mxu0 %v2216
    %3242 = vmatprep.subr.bf16.mxu0 %v2225
    %3243 = vmatpush1.bf16.msra.mxu0 %v2224
    %3244 = vmatprep.subr.bf16.mxu0 %v2233
    %3245 = vmatpush1.bf16.msra.mxu0 %v2232
    %3246 = vmatprep.subr.bf16.mxu0 %v2241
    %3247 = vmatpush1.bf16.msra.mxu0 %v2240
    %3248 = vmatprep.subr.bf16.mxu0 %v2249
    %3249 = vmatpush1.bf16.msra.mxu0 %v2248
    %3250 = vmatprep.subr.bf16.mxu0 %v2257
    %3251 = vmatpush1.bf16.msra.mxu0 %v2256
    %3252 = vmatprep.subr.bf16.mxu0 %v2265
    %3253 = vmatpush1.bf16.msra.mxu0 %v2264
    %3254 = vmatprep.subr.bf16.mxu0 %v2273
    %3255 = vmatpush1.bf16.msra.mxu0 %v2272
    %3256 = vmatprep.subr.bf16.mxu0 %v2281
    %3257 = vmatpush1.bf16.msra.mxu0 %v2280
    %3258 = vmatprep.subr.bf16.mxu0 %v2289
    %3259 = vmatpush1.bf16.msra.mxu0 %v2288
    %3260 = vmatprep.subr.bf16.mxu0 %v2297
    %3261 = vmatpush1.bf16.msra.mxu0 %v2296
    %3262 = vmatprep.subr.bf16.mxu0 %v2305
    %3263 = vmatpush1.bf16.msra.mxu0 %v2304
    %3264 = vmatprep.subr.bf16.mxu0 %v2313
    %3265 = vmatpush1.bf16.msra.mxu0 %v2312
    %3266 = vmatprep.subr.bf16.mxu0 %v2321
    %3267 = vmatpush1.bf16.msra.mxu0 %v2320
    %3268 = vmatprep.subr.bf16.mxu0 %v2329
    %3269 = vmatpush1.bf16.msra.mxu0 %v2328
    %3270 = vmatprep.subr.bf16.mxu0 %v2337
    %3271 = vmatpush1.bf16.msra.mxu0 %v2336
    %3272 = vmatprep.mubr.bf16.mxu0 %v665
    %3273 = vmatmul.mubr.bf16.gmra.mrb[0].mxu0 %v664
    %v3274 = vpop.f32.mrb[0].mxu0
    %v3275 = vadd.f32 %v615, %v3274
    %v3276 = vpop.f32.mrb[0].mxu0
    %v3277 = vadd.f32 %v619, %v3276
    %v3278 = vpop.f32.mrb[0].mxu0
    %v3279 = vpop.f32.mrb[0].mxu0
    %3280 = vdwg.mxu0
    %3281 = vmatprep.subr.bf16.mxu0 %v2345
    %3282 = vmatpush1.bf16.msra.mxu0 %v2344
    %3283 = vmatprep.subr.bf16.mxu0 %v2353
    %3284 = vmatpush1.bf16.msra.mxu0 %v2352
    %3285 = vmatprep.subr.bf16.mxu0 %v2361
    %3286 = vmatpush1.bf16.msra.mxu0 %v2360
    %3287 = vmatprep.subr.bf16.mxu0 %v2369
    %3288 = vmatpush1.bf16.msra.mxu0 %v2368
    %3289 = vmatprep.subr.bf16.mxu0 %v2377
    %3290 = vmatpush1.bf16.msra.mxu0 %v2376
    %3291 = vmatprep.subr.bf16.mxu0 %v2385
    %3292 = vmatpush1.bf16.msra.mxu0 %v2384
    %3293 = vmatprep.subr.bf16.mxu0 %v2393
    %3294 = vmatpush1.bf16.msra.mxu0 %v2392
    %3295 = vmatprep.subr.bf16.mxu0 %v2401
    %3296 = vmatpush1.bf16.msra.mxu0 %v2400
    %3297 = vmatprep.subr.bf16.mxu0 %v2409
    %3298 = vmatpush1.bf16.msra.mxu0 %v2408
    %3299 = vmatprep.subr.bf16.mxu0 %v2417
    %3300 = vmatpush1.bf16.msra.mxu0 %v2416
    %3301 = vmatprep.subr.bf16.mxu0 %v2425
    %3302 = vmatpush1.bf16.msra.mxu0 %v2424
    %3303 = vmatprep.subr.bf16.mxu0 %v2433
    %3304 = vmatpush1.bf16.msra.mxu0 %v2432
    %3305 = vmatprep.subr.bf16.mxu0 %v2441
    %3306 = vmatpush1.bf16.msra.mxu0 %v2440
    %3307 = vmatprep.subr.bf16.mxu0 %v2449
    %3308 = vmatpush1.bf16.msra.mxu0 %v2448
    %3309 = vmatprep.subr.bf16.mxu0 %v2457
    %3310 = vmatpush1.bf16.msra.mxu0 %v2456
    %3311 = vmatprep.subr.bf16.mxu0 %v2465
    %3312 = vmatpush1.bf16.msra.mxu0 %v2464
    %3313 = vmatprep.mubr.bf16.mxu0 %v667
    %3314 = vmatmul.mubr.bf16.gmra.mrb[0].mxu0 %v666
    %v3315 = vpop.f32.mrb[0].mxu0
    %v3316 = vadd.f32 %v3275, %v3315
    %v3317 = vpop.f32.mrb[0].mxu0
    %v3318 = vadd.f32 %v3277, %v3317
    %v3319 = vpop.f32.mrb[0].mxu0
    %v3320 = vpop.f32.mrb[0].mxu0
    %3321 = vdwg.mxu0
    %3322 = vmatprep.subr.bf16.mxu0 %v2473
    %3323 = vmatpush1.bf16.msra.mxu0 %v2472
    %3324 = vmatprep.subr.bf16.mxu0 %v2481
    %3325 = vmatpush1.bf16.msra.mxu0 %v2480
    %3326 = vmatprep.subr.bf16.mxu0 %v2489
    %3327 = vmatpush1.bf16.msra.mxu0 %v2488
    %3328 = vmatprep.subr.bf16.mxu0 %v2497
    %3329 = vmatpush1.bf16.msra.mxu0 %v2496
    %3330 = vmatprep.subr.bf16.mxu0 %v2505
    %3331 = vmatpush1.bf16.msra.mxu0 %v2504
    %3332 = vmatprep.subr.bf16.mxu0 %v2513
    %3333 = vmatpush1.bf16.msra.mxu0 %v2512
    %3334 = vmatprep.subr.bf16.mxu0 %v2521
    %3335 = vmatpush1.bf16.msra.mxu0 %v2520
    %3336 = vmatprep.subr.bf16.mxu0 %v2529
    %3337 = vmatpush1.bf16.msra.mxu0 %v2528
    %3338 = vmatprep.subr.bf16.mxu0 %v2537
    %3339 = vmatpush1.bf16.msra.mxu0 %v2536
    %3340 = vmatprep.subr.bf16.mxu0 %v2545
    %3341 = vmatpush1.bf16.msra.mxu0 %v2544
    %3342 = vmatprep.subr.bf16.mxu0 %v2553
    %3343 = vmatpush1.bf16.msra.mxu0 %v2552
    %3344 = vmatprep.subr.bf16.mxu0 %v2561
    %3345 = vmatpush1.bf16.msra.mxu0 %v2560
    %3346 = vmatprep.subr.bf16.mxu0 %v2569
    %3347 = vmatpush1.bf16.msra.mxu0 %v2568
    %3348 = vmatprep.subr.bf16.mxu0 %v2577
    %3349 = vmatpush1.bf16.msra.mxu0 %v2576
    %3350 = vmatprep.subr.bf16.mxu0 %v2585
    %3351 = vmatpush1.bf16.msra.mxu0 %v2584
    %3352 = vmatprep.subr.bf16.mxu0 %v2593
    %3353 = vmatpush1.bf16.msra.mxu0 %v2592
    %3354 = vmatprep.mubr.bf16.mxu0 %v669
    %3355 = vmatmul.mubr.bf16.gmra.mrb[0].mxu0 %v668
    %v3356 = vpop.f32.mrb[0].mxu0
    %v3357 = vadd.f32 %v3316, %v3356
    %v3358 = vpop.f32.mrb[0].mxu0
    %v3359 = vadd.f32 %v3318, %v3358
    %v3360 = vpop.f32.mrb[0].mxu0
    %v3361 = vpop.f32.mrb[0].mxu0
    %3362 = vdwg.mxu0
    %3363 = vmatprep.subr.bf16.mxu0 %v2601
    %3364 = vmatpush1.bf16.msra.mxu0 %v2600
    %3365 = vmatprep.subr.bf16.mxu0 %v2609
    %3366 = vmatpush1.bf16.msra.mxu0 %v2608
    %3367 = vmatprep.subr.bf16.mxu0 %v2617
    %3368 = vmatpush1.bf16.msra.mxu0 %v2616
    %3369 = vmatprep.subr.bf16.mxu0 %v2625
    %3370 = vmatpush1.bf16.msra.mxu0 %v2624
    %3371 = vmatprep.subr.bf16.mxu0 %v2633
    %3372 = vmatpush1.bf16.msra.mxu0 %v2632
    %3373 = vmatprep.subr.bf16.mxu0 %v2641
    %3374 = vmatpush1.bf16.msra.mxu0 %v2640
    %3375 = vmatprep.subr.bf16.mxu0 %v2649
    %3376 = vmatpush1.bf16.msra.mxu0 %v2648
    %3377 = vmatprep.subr.bf16.mxu0 %v2657
    %3378 = vmatpush1.bf16.msra.mxu0 %v2656
    %3379 = vmatprep.subr.bf16.mxu0 %v2665
    %3380 = vmatpush1.bf16.msra.mxu0 %v2664
    %3381 = vmatprep.subr.bf16.mxu0 %v2673
    %3382 = vmatpush1.bf16.msra.mxu0 %v2672
    %3383 = vmatprep.subr.bf16.mxu0 %v2681
    %3384 = vmatpush1.bf16.msra.mxu0 %v2680
    %3385 = vmatprep.subr.bf16.mxu0 %v2689
    %3386 = vmatpush1.bf16.msra.mxu0 %v2688
    %3387 = vmatprep.subr.bf16.mxu0 %v2697
    %3388 = vmatpush1.bf16.msra.mxu0 %v2696
    %3389 = vmatprep.subr.bf16.mxu0 %v2705
    %3390 = vmatpush1.bf16.msra.mxu0 %v2704
    %3391 = vmatprep.subr.bf16.mxu0 %v2713
    %3392 = vmatpush1.bf16.msra.mxu0 %v2712
    %3393 = vmatprep.subr.bf16.mxu0 %v2721
    %3394 = vmatpush1.bf16.msra.mxu0 %v2720
    %3395 = vmatprep.mubr.bf16.mxu0 %v671
    %3396 = vmatmul.mubr.bf16.gmra.mrb[0].mxu0 %v670
    %v3397 = vpop.f32.mrb[0].mxu0
    %v3398 = vadd.f32 %v3357, %v3397
    %v3399 = vpop.f32.mrb[0].mxu0
    %v3400 = vadd.f32 %v3359, %v3399
    %v3401 = vpop.f32.mrb[0].mxu0
    %v3402 = vpop.f32.mrb[0].mxu0
    %3403 = vdwg.mxu0
    %3404 = vmatprep.subr.bf16.mxu0 %v2219
    %3405 = vmatpush1.bf16.msra.mxu0 %v2218
    %3406 = vmatprep.subr.bf16.mxu0 %v2227
    %3407 = vmatpush1.bf16.msra.mxu0 %v2226
    %3408 = vmatprep.subr.bf16.mxu0 %v2235
    %3409 = vmatpush1.bf16.msra.mxu0 %v2234
    %3410 = vmatprep.subr.bf16.mxu0 %v2243
    %3411 = vmatpush1.bf16.msra.mxu0 %v2242
    %3412 = vmatprep.subr.bf16.mxu0 %v2251
    %3413 = vmatpush1.bf16.msra.mxu0 %v2250
    %3414 = vmatprep.subr.bf16.mxu0 %v2259
    %3415 = vmatpush1.bf16.msra.mxu0 %v2258
    %3416 = vmatprep.subr.bf16.mxu0 %v2267
    %3417 = vmatpush1.bf16.msra.mxu0 %v2266
    %3418 = vmatprep.subr.bf16.mxu0 %v2275
    %3419 = vmatpush1.bf16.msra.mxu0 %v2274
    %3420 = vmatprep.subr.bf16.mxu0 %v2283
    %3421 = vmatpush1.bf16.msra.mxu0 %v2282
    %3422 = vmatprep.subr.bf16.mxu0 %v2291
    %3423 = vmatpush1.bf16.msra.mxu0 %v2290
    %3424 = vmatprep.subr.bf16.mxu0 %v2299
    %3425 = vmatpush1.bf16.msra.mxu0 %v2298
    %3426 = vmatprep.subr.bf16.mxu0 %v2307
    %3427 = vmatpush1.bf16.msra.mxu0 %v2306
    %3428 = vmatprep.subr.bf16.mxu0 %v2315
    %3429 = vmatpush1.bf16.msra.mxu0 %v2314
    %3430 = vmatprep.subr.bf16.mxu0 %v2323
    %3431 = vmatpush1.bf16.msra.mxu0 %v2322
    %3432 = vmatprep.subr.bf16.mxu0 %v2331
    %3433 = vmatpush1.bf16.msra.mxu0 %v2330
    %3434 = vmatprep.subr.bf16.mxu0 %v2339
    %3435 = vmatpush1.bf16.msra.mxu0 %v2338
    %3436 = vmatprep.mubr.bf16.mxu0 %v665
    %3437 = vmatmul.mubr.bf16.gmra.mrb[0].mxu0 %v664
    %v3438 = vpop.f32.mrb[0].mxu0
    %v3439 = vadd.f32 %v623, %v3438
    %v3440 = vpop.f32.mrb[0].mxu0
    %v3441 = vadd.f32 %v627, %v3440
    %v3442 = vpop.f32.mrb[0].mxu0
    %v3443 = vpop.f32.mrb[0].mxu0
    %3444 = vdwg.mxu0
    %3445 = vmatprep.subr.bf16.mxu0 %v2347
    %3446 = vmatpush1.bf16.msra.mxu0 %v2346
    %3447 = vmatprep.subr.bf16.mxu0 %v2355
    %3448 = vmatpush1.bf16.msra.mxu0 %v2354
    %3449 = vmatprep.subr.bf16.mxu0 %v2363
    %3450 = vmatpush1.bf16.msra.mxu0 %v2362
    %3451 = vmatprep.subr.bf16.mxu0 %v2371
    %3452 = vmatpush1.bf16.msra.mxu0 %v2370
    %3453 = vmatprep.subr.bf16.mxu0 %v2379
    %3454 = vmatpush1.bf16.msra.mxu0 %v2378
    %3455 = vmatprep.subr.bf16.mxu0 %v2387
    %3456 = vmatpush1.bf16.msra.mxu0 %v2386
    %3457 = vmatprep.subr.bf16.mxu0 %v2395
    %3458 = vmatpush1.bf16.msra.mxu0 %v2394
    %3459 = vmatprep.subr.bf16.mxu0 %v2403
    %3460 = vmatpush1.bf16.msra.mxu0 %v2402
    %3461 = vmatprep.subr.bf16.mxu0 %v2411
    %3462 = vmatpush1.bf16.msra.mxu0 %v2410
    %3463 = vmatprep.subr.bf16.mxu0 %v2419
    %3464 = vmatpush1.bf16.msra.mxu0 %v2418
    %3465 = vmatprep.subr.bf16.mxu0 %v2427
    %3466 = vmatpush1.bf16.msra.mxu0 %v2426
    %3467 = vmatprep.subr.bf16.mxu0 %v2435
    %3468 = vmatpush1.bf16.msra.mxu0 %v2434
    %3469 = vmatprep.subr.bf16.mxu0 %v2443
    %3470 = vmatpush1.bf16.msra.mxu0 %v2442
    %3471 = vmatprep.subr.bf16.mxu0 %v2451
    %3472 = vmatpush1.bf16.msra.mxu0 %v2450
    %3473 = vmatprep.subr.bf16.mxu0 %v2459
    %3474 = vmatpush1.bf16.msra.mxu0 %v2458
    %3475 = vmatprep.subr.bf16.mxu0 %v2467
    %3476 = vmatpush1.bf16.msra.mxu0 %v2466
    %3477 = vmatprep.mubr.bf16.mxu0 %v667
    %3478 = vmatmul.mubr.bf16.gmra.mrb[0].mxu0 %v666
    %v3479 = vpop.f32.mrb[0].mxu0
    %v3480 = vadd.f32 %v3439, %v3479
    %v3481 = vpop.f32.mrb[0].mxu0
    %v3482 = vadd.f32 %v3441, %v3481
    %v3483 = vpop.f32.mrb[0].mxu0
    %v3484 = vpop.f32.mrb[0].mxu0
    %3485 = vdwg.mxu0
    %3486 = vmatprep.subr.bf16.mxu0 %v2475
    %3487 = vmatpush1.bf16.msra.mxu0 %v2474
    %3488 = vmatprep.subr.bf16.mxu0 %v2483
    %3489 = vmatpush1.bf16.msra.mxu0 %v2482
    %3490 = vmatprep.subr.bf16.mxu0 %v2491
    %3491 = vmatpush1.bf16.msra.mxu0 %v2490
    %3492 = vmatprep.subr.bf16.mxu0 %v2499
    %3493 = vmatpush1.bf16.msra.mxu0 %v2498
    %3494 = vmatprep.subr.bf16.mxu0 %v2507
    %3495 = vmatpush1.bf16.msra.mxu0 %v2506
    %3496 = vmatprep.subr.bf16.mxu0 %v2515
    %3497 = vmatpush1.bf16.msra.mxu0 %v2514
    %3498 = vmatprep.subr.bf16.mxu0 %v2523
    %3499 = vmatpush1.bf16.msra.mxu0 %v2522
    %3500 = vmatprep.subr.bf16.mxu0 %v2531
    %3501 = vmatpush1.bf16.msra.mxu0 %v2530
    %3502 = vmatprep.subr.bf16.mxu0 %v2539
    %3503 = vmatpush1.bf16.msra.mxu0 %v2538
    %3504 = vmatprep.subr.bf16.mxu0 %v2547
    %3505 = vmatpush1.bf16.msra.mxu0 %v2546
    %3506 = vmatprep.subr.bf16.mxu0 %v2555
    %3507 = vmatpush1.bf16.msra.mxu0 %v2554
    %3508 = vmatprep.subr.bf16.mxu0 %v2563
    %3509 = vmatpush1.bf16.msra.mxu0 %v2562
    %3510 = vmatprep.subr.bf16.mxu0 %v2571
    %3511 = vmatpush1.bf16.msra.mxu0 %v2570
    %3512 = vmatprep.subr.bf16.mxu0 %v2579
    %3513 = vmatpush1.bf16.msra.mxu0 %v2578
    %3514 = vmatprep.subr.bf16.mxu0 %v2587
    %3515 = vmatpush1.bf16.msra.mxu0 %v2586
    %3516 = vmatprep.subr.bf16.mxu0 %v2595
    %3517 = vmatpush1.bf16.msra.mxu0 %v2594
    %3518 = vmatprep.mubr.bf16.mxu0 %v669
    %3519 = vmatmul.mubr.bf16.gmra.mrb[0].mxu0 %v668
    %v3520 = vpop.f32.mrb[0].mxu0
    %v3521 = vadd.f32 %v3480, %v3520
    %v3522 = vpop.f32.mrb[0].mxu0
    %v3523 = vadd.f32 %v3482, %v3522
    %v3524 = vpop.f32.mrb[0].mxu0
    %v3525 = vpop.f32.mrb[0].mxu0
    %3526 = vdwg.mxu0
    %3527 = vmatprep.subr.bf16.mxu0 %v2603
    %3528 = vmatpush1.bf16.msra.mxu0 %v2602
    %3529 = vmatprep.subr.bf16.mxu0 %v2611
    %3530 = vmatpush1.bf16.msra.mxu0 %v2610
    %3531 = vmatprep.subr.bf16.mxu0 %v2619
    %3532 = vmatpush1.bf16.msra.mxu0 %v2618
    %3533 = vmatprep.subr.bf16.mxu0 %v2627
    %3534 = vmatpush1.bf16.msra.mxu0 %v2626
    %3535 = vmatprep.subr.bf16.mxu0 %v2635
    %3536 = vmatpush1.bf16.msra.mxu0 %v2634
    %3537 = vmatprep.subr.bf16.mxu0 %v2643
    %3538 = vmatpush1.bf16.msra.mxu0 %v2642
    %3539 = vmatprep.subr.bf16.mxu0 %v2651
    %3540 = vmatpush1.bf16.msra.mxu0 %v2650
    %3541 = vmatprep.subr.bf16.mxu0 %v2659
    %3542 = vmatpush1.bf16.msra.mxu0 %v2658
    %3543 = vmatprep.subr.bf16.mxu0 %v2667
    %3544 = vmatpush1.bf16.msra.mxu0 %v2666
    %3545 = vmatprep.subr.bf16.mxu0 %v2675
    %3546 = vmatpush1.bf16.msra.mxu0 %v2674
    %3547 = vmatprep.subr.bf16.mxu0 %v2683
    %3548 = vmatpush1.bf16.msra.mxu0 %v2682
    %3549 = vmatprep.subr.bf16.mxu0 %v2691
    %3550 = vmatpush1.bf16.msra.mxu0 %v2690
    %3551 = vmatprep.subr.bf16.mxu0 %v2699
    %3552 = vmatpush1.bf16.msra.mxu0 %v2698
    %3553 = vmatprep.subr.bf16.mxu0 %v2707
    %3554 = vmatpush1.bf16.msra.mxu0 %v2706
    %3555 = vmatprep.subr.bf16.mxu0 %v2715
    %3556 = vmatpush1.bf16.msra.mxu0 %v2714
    %3557 = vmatprep.subr.bf16.mxu0 %v2723
    %3558 = vmatpush1.bf16.msra.mxu0 %v2722
    %3559 = vmatprep.mubr.bf16.mxu0 %v671
    %3560 = vmatmul.mubr.bf16.gmra.mrb[0].mxu0 %v670
    %v3561 = vpop.f32.mrb[0].mxu0
    %v3562 = vadd.f32 %v3521, %v3561
    %v3563 = vpop.f32.mrb[0].mxu0
    %v3564 = vadd.f32 %v3523, %v3563
    %v3565 = vpop.f32.mrb[0].mxu0
    %v3566 = vpop.f32.mrb[0].mxu0
    %3567 = vdwg.mxu0
    %3568 = vmatprep.subr.bf16.mxu0 %v2221
    %3569 = vmatpush1.bf16.msra.mxu0 %v2220
    %3570 = vmatprep.subr.bf16.mxu0 %v2229
    %3571 = vmatpush1.bf16.msra.mxu0 %v2228
    %3572 = vmatprep.subr.bf16.mxu0 %v2237
    %3573 = vmatpush1.bf16.msra.mxu0 %v2236
    %3574 = vmatprep.subr.bf16.mxu0 %v2245
    %3575 = vmatpush1.bf16.msra.mxu0 %v2244
    %3576 = vmatprep.subr.bf16.mxu0 %v2253
    %3577 = vmatpush1.bf16.msra.mxu0 %v2252
    %3578 = vmatprep.subr.bf16.mxu0 %v2261
    %3579 = vmatpush1.bf16.msra.mxu0 %v2260
    %3580 = vmatprep.subr.bf16.mxu0 %v2269
    %3581 = vmatpush1.bf16.msra.mxu0 %v2268
    %3582 = vmatprep.subr.bf16.mxu0 %v2277
    %3583 = vmatpush1.bf16.msra.mxu0 %v2276
    %3584 = vmatprep.subr.bf16.mxu0 %v2285
    %3585 = vmatpush1.bf16.msra.mxu0 %v2284
    %3586 = vmatprep.subr.bf16.mxu0 %v2293
    %3587 = vmatpush1.bf16.msra.mxu0 %v2292
    %3588 = vmatprep.subr.bf16.mxu0 %v2301
    %3589 = vmatpush1.bf16.msra.mxu0 %v2300
    %3590 = vmatprep.subr.bf16.mxu0 %v2309
    %3591 = vmatpush1.bf16.msra.mxu0 %v2308
    %3592 = vmatprep.subr.bf16.mxu0 %v2317
    %3593 = vmatpush1.bf16.msra.mxu0 %v2316
    %3594 = vmatprep.subr.bf16.mxu0 %v2325
    %3595 = vmatpush1.bf16.msra.mxu0 %v2324
    %3596 = vmatprep.subr.bf16.mxu0 %v2333
    %3597 = vmatpush1.bf16.msra.mxu0 %v2332
    %3598 = vmatprep.subr.bf16.mxu0 %v2341
    %3599 = vmatpush1.bf16.msra.mxu0 %v2340
    %3600 = vmatprep.mubr.bf16.mxu0 %v665
    %3601 = vmatmul.mubr.bf16.gmra.mrb[0].mxu0 %v664
    %v3602 = vpop.f32.mrb[0].mxu0
    %v3603 = vadd.f32 %v631, %v3602
    %v3604 = vpop.f32.mrb[0].mxu0
    %v3605 = vadd.f32 %v635, %v3604
    %v3606 = vpop.f32.mrb[0].mxu0
    %v3607 = vpop.f32.mrb[0].mxu0
    %3608 = vdwg.mxu0
    %3609 = vmatprep.subr.bf16.mxu0 %v2349
    %3610 = vmatpush1.bf16.msra.mxu0 %v2348
    %3611 = vmatprep.subr.bf16.mxu0 %v2357
    %3612 = vmatpush1.bf16.msra.mxu0 %v2356
    %3613 = vmatprep.subr.bf16.mxu0 %v2365
    %3614 = vmatpush1.bf16.msra.mxu0 %v2364
    %3615 = vmatprep.subr.bf16.mxu0 %v2373
    %3616 = vmatpush1.bf16.msra.mxu0 %v2372
    %3617 = vmatprep.subr.bf16.mxu0 %v2381
    %3618 = vmatpush1.bf16.msra.mxu0 %v2380
    %3619 = vmatprep.subr.bf16.mxu0 %v2389
    %3620 = vmatpush1.bf16.msra.mxu0 %v2388
    %3621 = vmatprep.subr.bf16.mxu0 %v2397
    %3622 = vmatpush1.bf16.msra.mxu0 %v2396
    %3623 = vmatprep.subr.bf16.mxu0 %v2405
    %3624 = vmatpush1.bf16.msra.mxu0 %v2404
    %3625 = vmatprep.subr.bf16.mxu0 %v2413
    %3626 = vmatpush1.bf16.msra.mxu0 %v2412
    %3627 = vmatprep.subr.bf16.mxu0 %v2421
    %3628 = vmatpush1.bf16.msra.mxu0 %v2420
    %3629 = vmatprep.subr.bf16.mxu0 %v2429
    %3630 = vmatpush1.bf16.msra.mxu0 %v2428
    %3631 = vmatprep.subr.bf16.mxu0 %v2437
    %3632 = vmatpush1.bf16.msra.mxu0 %v2436
    %3633 = vmatprep.subr.bf16.mxu0 %v2445
    %3634 = vmatpush1.bf16.msra.mxu0 %v2444
    %3635 = vmatprep.subr.bf16.mxu0 %v2453
    %3636 = vmatpush1.bf16.msra.mxu0 %v2452
    %3637 = vmatprep.subr.bf16.mxu0 %v2461
    %3638 = vmatpush1.bf16.msra.mxu0 %v2460
    %3639 = vmatprep.subr.bf16.mxu0 %v2469
    %3640 = vmatpush1.bf16.msra.mxu0 %v2468
    %3641 = vmatprep.mubr.bf16.mxu0 %v667
    %3642 = vmatmul.mubr.bf16.gmra.mrb[0].mxu0 %v666
    %v3643 = vpop.f32.mrb[0].mxu0
    %v3644 = vadd.f32 %v3603, %v3643
    %v3645 = vpop.f32.mrb[0].mxu0
    %v3646 = vadd.f32 %v3605, %v3645
    %v3647 = vpop.f32.mrb[0].mxu0
    %v3648 = vpop.f32.mrb[0].mxu0
    %3649 = vdwg.mxu0
    %3650 = vmatprep.subr.bf16.mxu0 %v2477
    %3651 = vmatpush1.bf16.msra.mxu0 %v2476
    %3652 = vmatprep.subr.bf16.mxu0 %v2485
    %3653 = vmatpush1.bf16.msra.mxu0 %v2484
    %3654 = vmatprep.subr.bf16.mxu0 %v2493
    %3655 = vmatpush1.bf16.msra.mxu0 %v2492
    %3656 = vmatprep.subr.bf16.mxu0 %v2501
    %3657 = vmatpush1.bf16.msra.mxu0 %v2500
    %3658 = vmatprep.subr.bf16.mxu0 %v2509
    %3659 = vmatpush1.bf16.msra.mxu0 %v2508
    %3660 = vmatprep.subr.bf16.mxu0 %v2517
    %3661 = vmatpush1.bf16.msra.mxu0 %v2516
    %3662 = vmatprep.subr.bf16.mxu0 %v2525
    %3663 = vmatpush1.bf16.msra.mxu0 %v2524
    %3664 = vmatprep.subr.bf16.mxu0 %v2533
    %3665 = vmatpush1.bf16.msra.mxu0 %v2532
    %3666 = vmatprep.subr.bf16.mxu0 %v2541
    %3667 = vmatpush1.bf16.msra.mxu0 %v2540
    %3668 = vmatprep.subr.bf16.mxu0 %v2549
    %3669 = vmatpush1.bf16.msra.mxu0 %v2548
    %3670 = vmatprep.subr.bf16.mxu0 %v2557
    %3671 = vmatpush1.bf16.msra.mxu0 %v2556
    %3672 = vmatprep.subr.bf16.mxu0 %v2565
    %3673 = vmatpush1.bf16.msra.mxu0 %v2564
    %3674 = vmatprep.subr.bf16.mxu0 %v2573
    %3675 = vmatpush1.bf16.msra.mxu0 %v2572
    %3676 = vmatprep.subr.bf16.mxu0 %v2581
    %3677 = vmatpush1.bf16.msra.mxu0 %v2580
    %3678 = vmatprep.subr.bf16.mxu0 %v2589
    %3679 = vmatpush1.bf16.msra.mxu0 %v2588
    %3680 = vmatprep.subr.bf16.mxu0 %v2597
    %3681 = vmatpush1.bf16.msra.mxu0 %v2596
    %3682 = vmatprep.mubr.bf16.mxu0 %v669
    %3683 = vmatmul.mubr.bf16.gmra.mrb[0].mxu0 %v668
    %v3684 = vpop.f32.mrb[0].mxu0
    %v3685 = vadd.f32 %v3644, %v3684
    %v3686 = vpop.f32.mrb[0].mxu0
    %v3687 = vadd.f32 %v3646, %v3686
    %v3688 = vpop.f32.mrb[0].mxu0
    %v3689 = vpop.f32.mrb[0].mxu0
    %3690 = vdwg.mxu0
    %3691 = vmatprep.subr.bf16.mxu0 %v2605
    %3692 = vmatpush1.bf16.msra.mxu0 %v2604
    %3693 = vmatprep.subr.bf16.mxu0 %v2613
    %3694 = vmatpush1.bf16.msra.mxu0 %v2612
    %3695 = vmatprep.subr.bf16.mxu0 %v2621
    %3696 = vmatpush1.bf16.msra.mxu0 %v2620
    %3697 = vmatprep.subr.bf16.mxu0 %v2629
    %3698 = vmatpush1.bf16.msra.mxu0 %v2628
    %3699 = vmatprep.subr.bf16.mxu0 %v2637
    %3700 = vmatpush1.bf16.msra.mxu0 %v2636
    %3701 = vmatprep.subr.bf16.mxu0 %v2645
    %3702 = vmatpush1.bf16.msra.mxu0 %v2644
    %3703 = vmatprep.subr.bf16.mxu0 %v2653
    %3704 = vmatpush1.bf16.msra.mxu0 %v2652
    %3705 = vmatprep.subr.bf16.mxu0 %v2661
    %3706 = vmatpush1.bf16.msra.mxu0 %v2660
    %3707 = vmatprep.subr.bf16.mxu0 %v2669
    %3708 = vmatpush1.bf16.msra.mxu0 %v2668
    %3709 = vmatprep.subr.bf16.mxu0 %v2677
    %3710 = vmatpush1.bf16.msra.mxu0 %v2676
    %3711 = vmatprep.subr.bf16.mxu0 %v2685
    %3712 = vmatpush1.bf16.msra.mxu0 %v2684
    %3713 = vmatprep.subr.bf16.mxu0 %v2693
    %3714 = vmatpush1.bf16.msra.mxu0 %v2692
    %3715 = vmatprep.subr.bf16.mxu0 %v2701
    %3716 = vmatpush1.bf16.msra.mxu0 %v2700
    %3717 = vmatprep.subr.bf16.mxu0 %v2709
    %3718 = vmatpush1.bf16.msra.mxu0 %v2708
    %3719 = vmatprep.subr.bf16.mxu0 %v2717
    %3720 = vmatpush1.bf16.msra.mxu0 %v2716
    %3721 = vmatprep.subr.bf16.mxu0 %v2725
    %3722 = vmatpush1.bf16.msra.mxu0 %v2724
    %3723 = vmatprep.mubr.bf16.mxu0 %v671
    %3724 = vmatmul.mubr.bf16.gmra.mrb[0].mxu0 %v670
    %v3725 = vpop.f32.mrb[0].mxu0
    %v3726 = vadd.f32 %v3685, %v3725
    %v3727 = vpop.f32.mrb[0].mxu0
    %v3728 = vadd.f32 %v3687, %v3727
    %v3729 = vpop.f32.mrb[0].mxu0
    %v3730 = vpop.f32.mrb[0].mxu0
    %3731 = vdwg.mxu0
    %3732 = vmatprep.subr.bf16.mxu0 %v2223
    %3733 = vmatpush1.bf16.msra.mxu0 %v2222
    %3734 = vmatprep.subr.bf16.mxu0 %v2231
    %3735 = vmatpush1.bf16.msra.mxu0 %v2230
    %3736 = vmatprep.subr.bf16.mxu0 %v2239
    %3737 = vmatpush1.bf16.msra.mxu0 %v2238
    %3738 = vmatprep.subr.bf16.mxu0 %v2247
    %3739 = vmatpush1.bf16.msra.mxu0 %v2246
    %3740 = vmatprep.subr.bf16.mxu0 %v2255
    %3741 = vmatpush1.bf16.msra.mxu0 %v2254
    %3742 = vmatprep.subr.bf16.mxu0 %v2263
    %3743 = vmatpush1.bf16.msra.mxu0 %v2262
    %3744 = vmatprep.subr.bf16.mxu0 %v2271
    %3745 = vmatpush1.bf16.msra.mxu0 %v2270
    %3746 = vmatprep.subr.bf16.mxu0 %v2279
    %3747 = vmatpush1.bf16.msra.mxu0 %v2278
    %3748 = vmatprep.subr.bf16.mxu0 %v2287
    %3749 = vmatpush1.bf16.msra.mxu0 %v2286
    %3750 = vmatprep.subr.bf16.mxu0 %v2295
    %3751 = vmatpush1.bf16.msra.mxu0 %v2294
    %3752 = vmatprep.subr.bf16.mxu0 %v2303
    %3753 = vmatpush1.bf16.msra.mxu0 %v2302
    %3754 = vmatprep.subr.bf16.mxu0 %v2311
    %3755 = vmatpush1.bf16.msra.mxu0 %v2310
    %3756 = vmatprep.subr.bf16.mxu0 %v2319
    %3757 = vmatpush1.bf16.msra.mxu0 %v2318
    %3758 = vmatprep.subr.bf16.mxu0 %v2327
    %3759 = vmatpush1.bf16.msra.mxu0 %v2326
    %3760 = vmatprep.subr.bf16.mxu0 %v2335
    %3761 = vmatpush1.bf16.msra.mxu0 %v2334
    %3762 = vmatprep.subr.bf16.mxu0 %v2343
    %3763 = vmatpush1.bf16.msra.mxu0 %v2342
    %3764 = vmatprep.mubr.bf16.mxu0 %v665
    %3765 = vmatmul.mubr.bf16.gmra.mrb[0].mxu0 %v664
    %v3766 = vpop.f32.mrb[0].mxu0
    %v3767 = vadd.f32 %v639, %v3766
    %v3768 = vpop.f32.mrb[0].mxu0
    %v3769 = vadd.f32 %v643, %v3768
    %v3770 = vpop.f32.mrb[0].mxu0
    %v3771 = vpop.f32.mrb[0].mxu0
    %3772 = vdwg.mxu0
    %3773 = vmatprep.subr.bf16.mxu0 %v2351
    %3774 = vmatpush1.bf16.msra.mxu0 %v2350
    %3775 = vmatprep.subr.bf16.mxu0 %v2359
    %3776 = vmatpush1.bf16.msra.mxu0 %v2358
    %3777 = vmatprep.subr.bf16.mxu0 %v2367
    %3778 = vmatpush1.bf16.msra.mxu0 %v2366
    %3779 = vmatprep.subr.bf16.mxu0 %v2375
    %3780 = vmatpush1.bf16.msra.mxu0 %v2374
    %3781 = vmatprep.subr.bf16.mxu0 %v2383
    %3782 = vmatpush1.bf16.msra.mxu0 %v2382
    %3783 = vmatprep.subr.bf16.mxu0 %v2391
    %3784 = vmatpush1.bf16.msra.mxu0 %v2390
    %3785 = vmatprep.subr.bf16.mxu0 %v2399
    %3786 = vmatpush1.bf16.msra.mxu0 %v2398
    %3787 = vmatprep.subr.bf16.mxu0 %v2407
    %3788 = vmatpush1.bf16.msra.mxu0 %v2406
    %3789 = vmatprep.subr.bf16.mxu0 %v2415
    %3790 = vmatpush1.bf16.msra.mxu0 %v2414
    %3791 = vmatprep.subr.bf16.mxu0 %v2423
    %3792 = vmatpush1.bf16.msra.mxu0 %v2422
    %3793 = vmatprep.subr.bf16.mxu0 %v2431
    %3794 = vmatpush1.bf16.msra.mxu0 %v2430
    %3795 = vmatprep.subr.bf16.mxu0 %v2439
    %3796 = vmatpush1.bf16.msra.mxu0 %v2438
    %3797 = vmatprep.subr.bf16.mxu0 %v2447
    %3798 = vmatpush1.bf16.msra.mxu0 %v2446
    %3799 = vmatprep.subr.bf16.mxu0 %v2455
    %3800 = vmatpush1.bf16.msra.mxu0 %v2454
    %3801 = vmatprep.subr.bf16.mxu0 %v2463
    %3802 = vmatpush1.bf16.msra.mxu0 %v2462
    %3803 = vmatprep.subr.bf16.mxu0 %v2471
    %3804 = vmatpush1.bf16.msra.mxu0 %v2470
    %3805 = vmatprep.mubr.bf16.mxu0 %v667
    %3806 = vmatmul.mubr.bf16.gmra.mrb[0].mxu0 %v666
    %v3807 = vpop.f32.mrb[0].mxu0
    %v3808 = vadd.f32 %v3767, %v3807
    %v3809 = vpop.f32.mrb[0].mxu0
    %v3810 = vadd.f32 %v3769, %v3809
    %v3811 = vpop.f32.mrb[0].mxu0
    %v3812 = vpop.f32.mrb[0].mxu0
    %3813 = vdwg.mxu0
    %3814 = vmatprep.subr.bf16.mxu0 %v2479
    %3815 = vmatpush1.bf16.msra.mxu0 %v2478
    %3816 = vmatprep.subr.bf16.mxu0 %v2487
    %3817 = vmatpush1.bf16.msra.mxu0 %v2486
    %3818 = vmatprep.subr.bf16.mxu0 %v2495
    %3819 = vmatpush1.bf16.msra.mxu0 %v2494
    %3820 = vmatprep.subr.bf16.mxu0 %v2503
    %3821 = vmatpush1.bf16.msra.mxu0 %v2502
    %3822 = vmatprep.subr.bf16.mxu0 %v2511
    %3823 = vmatpush1.bf16.msra.mxu0 %v2510
    %3824 = vmatprep.subr.bf16.mxu0 %v2519
    %3825 = vmatpush1.bf16.msra.mxu0 %v2518
    %3826 = vmatprep.subr.bf16.mxu0 %v2527
    %3827 = vmatpush1.bf16.msra.mxu0 %v2526
    %3828 = vmatprep.subr.bf16.mxu0 %v2535
    %3829 = vmatpush1.bf16.msra.mxu0 %v2534
    %3830 = vmatprep.subr.bf16.mxu0 %v2543
    %3831 = vmatpush1.bf16.msra.mxu0 %v2542
    %3832 = vmatprep.subr.bf16.mxu0 %v2551
    %3833 = vmatpush1.bf16.msra.mxu0 %v2550
    %3834 = vmatprep.subr.bf16.mxu0 %v2559
    %3835 = vmatpush1.bf16.msra.mxu0 %v2558
    %3836 = vmatprep.subr.bf16.mxu0 %v2567
    %3837 = vmatpush1.bf16.msra.mxu0 %v2566
    %3838 = vmatprep.subr.bf16.mxu0 %v2575
    %3839 = vmatpush1.bf16.msra.mxu0 %v2574
    %3840 = vmatprep.subr.bf16.mxu0 %v2583
    %3841 = vmatpush1.bf16.msra.mxu0 %v2582
    %3842 = vmatprep.subr.bf16.mxu0 %v2591
    %3843 = vmatpush1.bf16.msra.mxu0 %v2590
    %3844 = vmatprep.subr.bf16.mxu0 %v2599
    %3845 = vmatpush1.bf16.msra.mxu0 %v2598
    %3846 = vmatprep.mubr.bf16.mxu0 %v669
    %3847 = vmatmul.mubr.bf16.gmra.mrb[0].mxu0 %v668
    %v3848 = vpop.f32.mrb[0].mxu0
    %v3849 = vadd.f32 %v3808, %v3848
    %v3850 = vpop.f32.mrb[0].mxu0
    %v3851 = vadd.f32 %v3810, %v3850
    %v3852 = vpop.f32.mrb[0].mxu0
    %v3853 = vpop.f32.mrb[0].mxu0
    %3854 = vdwg.mxu0
    %3855 = vmatprep.subr.bf16.mxu0 %v2607
    %3856 = vmatpush1.bf16.msra.mxu0 %v2606
    %3857 = vmatprep.subr.bf16.mxu0 %v2615
    %3858 = vmatpush1.bf16.msra.mxu0 %v2614
    %3859 = vmatprep.subr.bf16.mxu0 %v2623
    %3860 = vmatpush1.bf16.msra.mxu0 %v2622
    %3861 = vmatprep.subr.bf16.mxu0 %v2631
    %3862 = vmatpush1.bf16.msra.mxu0 %v2630
    %3863 = vmatprep.subr.bf16.mxu0 %v2639
    %3864 = vmatpush1.bf16.msra.mxu0 %v2638
    %3865 = vmatprep.subr.bf16.mxu0 %v2647
    %3866 = vmatpush1.bf16.msra.mxu0 %v2646
    %3867 = vmatprep.subr.bf16.mxu0 %v2655
    %3868 = vmatpush1.bf16.msra.mxu0 %v2654
    %3869 = vmatprep.subr.bf16.mxu0 %v2663
    %3870 = vmatpush1.bf16.msra.mxu0 %v2662
    %3871 = vmatprep.subr.bf16.mxu0 %v2671
    %3872 = vmatpush1.bf16.msra.mxu0 %v2670
    %3873 = vmatprep.subr.bf16.mxu0 %v2679
    %3874 = vmatpush1.bf16.msra.mxu0 %v2678
    %3875 = vmatprep.subr.bf16.mxu0 %v2687
    %3876 = vmatpush1.bf16.msra.mxu0 %v2686
    %3877 = vmatprep.subr.bf16.mxu0 %v2695
    %3878 = vmatpush1.bf16.msra.mxu0 %v2694
    %3879 = vmatprep.subr.bf16.mxu0 %v2703
    %3880 = vmatpush1.bf16.msra.mxu0 %v2702
    %3881 = vmatprep.subr.bf16.mxu0 %v2711
    %3882 = vmatpush1.bf16.msra.mxu0 %v2710
    %3883 = vmatprep.subr.bf16.mxu0 %v2719
    %3884 = vmatpush1.bf16.msra.mxu0 %v2718
    %3885 = vmatprep.subr.bf16.mxu0 %v2727
    %3886 = vmatpush1.bf16.msra.mxu0 %v2726
    %3887 = vmatprep.mubr.bf16.mxu0 %v671
    %3888 = vmatmul.mubr.bf16.gmra.mrb[0].mxu0 %v670
    %v3889 = vpop.f32.mrb[0].mxu0
    %v3890 = vadd.f32 %v3849, %v3889
    %v3891 = vpop.f32.mrb[0].mxu0
    %v3892 = vadd.f32 %v3851, %v3891
    %v3893 = vpop.f32.mrb[0].mxu0
    %v3894 = vpop.f32.mrb[0].mxu0
    %3895 = vdwg.mxu0
    %v3896 = vtanh.pop %v3398
    %v3897 = vtanh.pop %v3400
    %v3898 = vtanh.pop %v3562
    %v3899 = vtanh.pop %v3564
    %v3900 = vtanh.pop %v3726
    %v3901 = vtanh.pop %v3728
    %v3902 = vtanh.pop %v3890
    %v3903 = vtanh.pop %v3892
    %v3904 = vpack.c.bf16 %v3896, %v3896
    %v3905 = vpack.c.bf16 %v3897, %v3897
    %v3906 = vpack.c.bf16 %v3898, %v3898
    %v3907 = vpack.c.bf16 %v3899, %v3899
    %v3908 = vpack.c.bf16 %v3900, %v3900
    %v3909 = vpack.c.bf16 %v3901, %v3901
    %v3910 = vpack.c.bf16 %v3902, %v3902
    %v3911 = vpack.c.bf16 %v3903, %v3903
    %v3912 = vld [vmem:[#allocation10] sm:$0xf]
    %v3913 = vld [vmem:[#allocation10 + $0x4] sm:$0xf]
    %v3914 = vld [vmem:[#allocation10 + $0x8] sm:$0xf]
    %v3915 = vld [vmem:[#allocation10 + $0xc] sm:$0xf]
    %v3916 = vld [vmem:[#allocation10 + $0x10] sm:$0xf]
    %v3917 = vld [vmem:[#allocation10 + $0x14] sm:$0xf]
    %v3918 = vld [vmem:[#allocation10 + $0x18] sm:$0xf]
    %v3919 = vld [vmem:[#allocation10 + $0x1c] sm:$0xf]
    %v3920 = vld [vmem:[#allocation10 + $0x20] sm:$0xf]
    %v3921 = vld [vmem:[#allocation10 + $0x24] sm:$0xf]
    %v3922 = vld [vmem:[#allocation10 + $0x28] sm:$0xf]
    %v3923 = vld [vmem:[#allocation10 + $0x2c] sm:$0xf]
    %v3924 = vld [vmem:[#allocation10 + $0x30] sm:$0xf]
    %v3925 = vld [vmem:[#allocation10 + $0x34] sm:$0xf]
    %v3926 = vld [vmem:[#allocation10 + $0x38] sm:$0xf]
    %v3927 = vld [vmem:[#allocation10 + $0x3c] sm:$0xf]
    %v3928 = vld [vmem:[#allocation10 + $0x40] sm:$0xf]
    %v3929 = vld [vmem:[#allocation10 + $0x44] sm:$0xf]
    %v3930 = vld [vmem:[#allocation10 + $0x48] sm:$0xf]
    %v3931 = vld [vmem:[#allocation10 + $0x4c] sm:$0xf]
    %v3932 = vld [vmem:[#allocation10 + $0x50] sm:$0xf]
    %v3933 = vld [vmem:[#allocation10 + $0x54] sm:$0xf]
    %v3934 = vld [vmem:[#allocation10 + $0x58] sm:$0xf]
    %v3935 = vld [vmem:[#allocation10 + $0x5c] sm:$0xf]
    %v3936 = vld [vmem:[#allocation10 + $0x60] sm:$0xf]
    %v3937 = vld [vmem:[#allocation10 + $0x64] sm:$0xf]
    %v3938 = vld [vmem:[#allocation10 + $0x68] sm:$0xf]
    %v3939 = vld [vmem:[#allocation10 + $0x6c] sm:$0xf]
    %v3940 = vld [vmem:[#allocation10 + $0x70] sm:$0xf]
    %v3941 = vld [vmem:[#allocation10 + $0x74] sm:$0xf]
    %v3942 = vld [vmem:[#allocation10 + $0x78] sm:$0xf]
    %v3943 = vld [vmem:[#allocation10 + $0x7c] sm:$0xf]
    %v3944 = vld [vmem:[#allocation10 + $0x80] sm:$0xf]
    %v3945 = vld [vmem:[#allocation10 + $0x84] sm:$0xf]
    %v3946 = vld [vmem:[#allocation10 + $0x88] sm:$0xf]
    %v3947 = vld [vmem:[#allocation10 + $0x8c] sm:$0xf]
    %v3948 = vld [vmem:[#allocation10 + $0x90] sm:$0xf]
    %v3949 = vld [vmem:[#allocation10 + $0x94] sm:$0xf]
    %v3950 = vld [vmem:[#allocation10 + $0x98] sm:$0xf]
    %v3951 = vld [vmem:[#allocation10 + $0x9c] sm:$0xf]
    %v3952 = vld [vmem:[#allocation10 + $0xa0] sm:$0xf]
    %v3953 = vld [vmem:[#allocation10 + $0xa4] sm:$0xf]
    %v3954 = vld [vmem:[#allocation10 + $0xa8] sm:$0xf]
    %v3955 = vld [vmem:[#allocation10 + $0xac] sm:$0xf]
    %v3956 = vld [vmem:[#allocation10 + $0xb0] sm:$0xf]
    %v3957 = vld [vmem:[#allocation10 + $0xb4] sm:$0xf]
    %v3958 = vld [vmem:[#allocation10 + $0xb8] sm:$0xf]
    %v3959 = vld [vmem:[#allocation10 + $0xbc] sm:$0xf]
    %v3960 = vld [vmem:[#allocation10 + $0xc0] sm:$0xf]
    %v3961 = vld [vmem:[#allocation10 + $0xc4] sm:$0xf]
    %v3962 = vld [vmem:[#allocation10 + $0xc8] sm:$0xf]
    %v3963 = vld [vmem:[#allocation10 + $0xcc] sm:$0xf]
    %v3964 = vld [vmem:[#allocation10 + $0xd0] sm:$0xf]
    %v3965 = vld [vmem:[#allocation10 + $0xd4] sm:$0xf]
    %v3966 = vld [vmem:[#allocation10 + $0xd8] sm:$0xf]
    %v3967 = vld [vmem:[#allocation10 + $0xdc] sm:$0xf]
    %v3968 = vld [vmem:[#allocation10 + $0xe0] sm:$0xf]
    %v3969 = vld [vmem:[#allocation10 + $0xe4] sm:$0xf]
    %v3970 = vld [vmem:[#allocation10 + $0xe8] sm:$0xf]
    %v3971 = vld [vmem:[#allocation10 + $0xec] sm:$0xf]
    %v3972 = vld [vmem:[#allocation10 + $0xf0] sm:$0xf]
    %v3973 = vld [vmem:[#allocation10 + $0xf4] sm:$0xf]
    %v3974 = vld [vmem:[#allocation10 + $0xf8] sm:$0xf]
    %v3975 = vld [vmem:[#allocation10 + $0xfc] sm:$0xf]
    %v3976 = vld [vmem:[#allocation10 + $0x100] sm:$0xf]
    %v3977 = vld [vmem:[#allocation10 + $0x104] sm:$0xf]
    %v3978 = vld [vmem:[#allocation10 + $0x108] sm:$0xf]
    %v3979 = vld [vmem:[#allocation10 + $0x10c] sm:$0xf]
    %v3980 = vld [vmem:[#allocation10 + $0x110] sm:$0xf]
    %v3981 = vld [vmem:[#allocation10 + $0x114] sm:$0xf]
    %v3982 = vld [vmem:[#allocation10 + $0x118] sm:$0xf]
    %v3983 = vld [vmem:[#allocation10 + $0x11c] sm:$0xf]
    %v3984 = vld [vmem:[#allocation10 + $0x120] sm:$0xf]
    %v3985 = vld [vmem:[#allocation10 + $0x124] sm:$0xf]
    %v3986 = vld [vmem:[#allocation10 + $0x128] sm:$0xf]
    %v3987 = vld [vmem:[#allocation10 + $0x12c] sm:$0xf]
    %v3988 = vld [vmem:[#allocation10 + $0x130] sm:$0xf]
    %v3989 = vld [vmem:[#allocation10 + $0x134] sm:$0xf]
    %v3990 = vld [vmem:[#allocation10 + $0x138] sm:$0xf]
    %v3991 = vld [vmem:[#allocation10 + $0x13c] sm:$0xf]
    %v3992 = vld [vmem:[#allocation10 + $0x140] sm:$0xf]
    %v3993 = vld [vmem:[#allocation10 + $0x144] sm:$0xf]
    %v3994 = vld [vmem:[#allocation10 + $0x148] sm:$0xf]
    %v3995 = vld [vmem:[#allocation10 + $0x14c] sm:$0xf]
    %v3996 = vld [vmem:[#allocation10 + $0x150] sm:$0xf]
    %v3997 = vld [vmem:[#allocation10 + $0x154] sm:$0xf]
    %v3998 = vld [vmem:[#allocation10 + $0x158] sm:$0xf]
    %v3999 = vld [vmem:[#allocation10 + $0x15c] sm:$0xf]
    %v4000 = vld [vmem:[#allocation10 + $0x160] sm:$0xf]
    %v4001 = vld [vmem:[#allocation10 + $0x164] sm:$0xf]
    %v4002 = vld [vmem:[#allocation10 + $0x168] sm:$0xf]
    %v4003 = vld [vmem:[#allocation10 + $0x16c] sm:$0xf]
    %v4004 = vld [vmem:[#allocation10 + $0x170] sm:$0xf]
    %v4005 = vld [vmem:[#allocation10 + $0x174] sm:$0xf]
    %v4006 = vld [vmem:[#allocation10 + $0x178] sm:$0xf]
    %v4007 = vld [vmem:[#allocation10 + $0x17c] sm:$0xf]
    %v4008 = vld [vmem:[#allocation10 + $0x180] sm:$0xf]
    %v4009 = vld [vmem:[#allocation10 + $0x184] sm:$0xf]
    %v4010 = vld [vmem:[#allocation10 + $0x188] sm:$0xf]
    %v4011 = vld [vmem:[#allocation10 + $0x18c] sm:$0xf]
    %v4012 = vld [vmem:[#allocation10 + $0x190] sm:$0xf]
    %v4013 = vld [vmem:[#allocation10 + $0x194] sm:$0xf]
    %v4014 = vld [vmem:[#allocation10 + $0x198] sm:$0xf]
    %v4015 = vld [vmem:[#allocation10 + $0x19c] sm:$0xf]
    %v4016 = vld [vmem:[#allocation10 + $0x1a0] sm:$0xf]
    %v4017 = vld [vmem:[#allocation10 + $0x1a4] sm:$0xf]
    %v4018 = vld [vmem:[#allocation10 + $0x1a8] sm:$0xf]
    %v4019 = vld [vmem:[#allocation10 + $0x1ac] sm:$0xf]
    %v4020 = vld [vmem:[#allocation10 + $0x1b0] sm:$0xf]
    %v4021 = vld [vmem:[#allocation10 + $0x1b4] sm:$0xf]
    %v4022 = vld [vmem:[#allocation10 + $0x1b8] sm:$0xf]
    %v4023 = vld [vmem:[#allocation10 + $0x1bc] sm:$0xf]
    %v4024 = vld [vmem:[#allocation10 + $0x1c0] sm:$0xf]
    %v4025 = vld [vmem:[#allocation10 + $0x1c4] sm:$0xf]
    %v4026 = vld [vmem:[#allocation10 + $0x1c8] sm:$0xf]
    %v4027 = vld [vmem:[#allocation10 + $0x1cc] sm:$0xf]
    %v4028 = vld [vmem:[#allocation10 + $0x1d0] sm:$0xf]
    %v4029 = vld [vmem:[#allocation10 + $0x1d4] sm:$0xf]
    %v4030 = vld [vmem:[#allocation10 + $0x1d8] sm:$0xf]
    %v4031 = vld [vmem:[#allocation10 + $0x1dc] sm:$0xf]
    %v4032 = vld [vmem:[#allocation10 + $0x1e0] sm:$0xf]
    %v4033 = vld [vmem:[#allocation10 + $0x1e4] sm:$0xf]
    %v4034 = vld [vmem:[#allocation10 + $0x1e8] sm:$0xf]
    %v4035 = vld [vmem:[#allocation10 + $0x1ec] sm:$0xf]
    %v4036 = vld [vmem:[#allocation10 + $0x1f0] sm:$0xf]
    %v4037 = vld [vmem:[#allocation10 + $0x1f4] sm:$0xf]
    %v4038 = vld [vmem:[#allocation10 + $0x1f8] sm:$0xf]
    %v4039 = vld [vmem:[#allocation10 + $0x1fc] sm:$0xf]
    %v4040 = vld [vmem:[#allocation12] sm:$0x1]
    %v4042 = vlaneseq
    %v4043 = vshrl.u32 %v4042, 7
    %v4044 = vsub.s32 0, %v4043
    %v4045 = vrot.slane %v4040, %v4044
    %v4175 = vunpack.c.l.b16 %v3912
    %v4176 = vunpack.c.l.b16 %v3913
    %v4177 = vunpack.c.l.b16 %v3914
    %v4178 = vunpack.c.l.b16 %v3915
    %v4179 = vunpack.c.l.b16 %v3916
    %v4180 = vunpack.c.l.b16 %v3917
    %v4181 = vunpack.c.l.b16 %v3918
    %v4182 = vunpack.c.l.b16 %v3919
    %v4183 = vunpack.c.l.b16 %v3920
    %v4184 = vunpack.c.l.b16 %v3921
    %v4185 = vunpack.c.l.b16 %v3922
    %v4186 = vunpack.c.l.b16 %v3923
    %v4187 = vunpack.c.l.b16 %v3924
    %v4188 = vunpack.c.l.b16 %v3925
    %v4189 = vunpack.c.l.b16 %v3926
    %v4190 = vunpack.c.l.b16 %v3927
    %v4191 = vunpack.c.l.b16 %v3928
    %v4192 = vunpack.c.l.b16 %v3929
    %v4193 = vunpack.c.l.b16 %v3930
    %v4194 = vunpack.c.l.b16 %v3931
    %v4195 = vunpack.c.l.b16 %v3932
    %v4196 = vunpack.c.l.b16 %v3933
    %v4197 = vunpack.c.l.b16 %v3934
    %v4198 = vunpack.c.l.b16 %v3935
    %v4199 = vunpack.c.l.b16 %v3936
    %v4200 = vunpack.c.l.b16 %v3937
    %v4201 = vunpack.c.l.b16 %v3938
    %v4202 = vunpack.c.l.b16 %v3939
    %v4203 = vunpack.c.l.b16 %v3940
    %v4204 = vunpack.c.l.b16 %v3941
    %v4205 = vunpack.c.l.b16 %v3942
    %v4206 = vunpack.c.l.b16 %v3943
    %v4207 = vunpack.c.l.b16 %v3944
    %v4208 = vunpack.c.l.b16 %v3945
    %v4209 = vunpack.c.l.b16 %v3946
    %v4210 = vunpack.c.l.b16 %v3947
    %v4211 = vunpack.c.l.b16 %v3948
    %v4212 = vunpack.c.l.b16 %v3949
    %v4213 = vunpack.c.l.b16 %v3950
    %v4214 = vunpack.c.l.b16 %v3951
    %v4215 = vunpack.c.l.b16 %v3952
    %v4216 = vunpack.c.l.b16 %v3953
    %v4217 = vunpack.c.l.b16 %v3954
    %v4218 = vunpack.c.l.b16 %v3955
    %v4219 = vunpack.c.l.b16 %v3956
    %v4220 = vunpack.c.l.b16 %v3957
    %v4221 = vunpack.c.l.b16 %v3958
    %v4222 = vunpack.c.l.b16 %v3959
    %v4223 = vunpack.c.l.b16 %v3960
    %v4224 = vunpack.c.l.b16 %v3961
    %v4225 = vunpack.c.l.b16 %v3962
    %v4226 = vunpack.c.l.b16 %v3963
    %v4227 = vunpack.c.l.b16 %v3964
    %v4228 = vunpack.c.l.b16 %v3965
    %v4229 = vunpack.c.l.b16 %v3966
    %v4230 = vunpack.c.l.b16 %v3967
    %v4231 = vunpack.c.l.b16 %v3968
    %v4232 = vunpack.c.l.b16 %v3969
    %v4233 = vunpack.c.l.b16 %v3970
    %v4234 = vunpack.c.l.b16 %v3971
    %v4235 = vunpack.c.l.b16 %v3972
    %v4236 = vunpack.c.l.b16 %v3973
    %v4237 = vunpack.c.l.b16 %v3974
    %v4238 = vunpack.c.l.b16 %v3975
    %v4239 = vunpack.c.l.b16 %v3976
    %v4240 = vunpack.c.l.b16 %v3977
    %v4241 = vunpack.c.l.b16 %v3978
    %v4242 = vunpack.c.l.b16 %v3979
    %v4243 = vunpack.c.l.b16 %v3980
    %v4244 = vunpack.c.l.b16 %v3981
    %v4245 = vunpack.c.l.b16 %v3982
    %v4246 = vunpack.c.l.b16 %v3983
    %v4247 = vunpack.c.l.b16 %v3984
    %v4248 = vunpack.c.l.b16 %v3985
    %v4249 = vunpack.c.l.b16 %v3986
    %v4250 = vunpack.c.l.b16 %v3987
    %v4251 = vunpack.c.l.b16 %v3988
    %v4252 = vunpack.c.l.b16 %v3989
    %v4253 = vunpack.c.l.b16 %v3990
    %v4254 = vunpack.c.l.b16 %v3991
    %v4255 = vunpack.c.l.b16 %v3992
    %v4256 = vunpack.c.l.b16 %v3993
    %v4257 = vunpack.c.l.b16 %v3994
    %v4258 = vunpack.c.l.b16 %v3995
    %v4259 = vunpack.c.l.b16 %v3996
    %v4260 = vunpack.c.l.b16 %v3997
    %v4261 = vunpack.c.l.b16 %v3998
    %v4262 = vunpack.c.l.b16 %v3999
    %v4263 = vunpack.c.l.b16 %v4000
    %v4264 = vunpack.c.l.b16 %v4001
    %v4265 = vunpack.c.l.b16 %v4002
    %v4266 = vunpack.c.l.b16 %v4003
    %v4267 = vunpack.c.l.b16 %v4004
    %v4268 = vunpack.c.l.b16 %v4005
    %v4269 = vunpack.c.l.b16 %v4006
    %v4270 = vunpack.c.l.b16 %v4007
    %v4271 = vunpack.c.l.b16 %v4008
    %v4272 = vunpack.c.l.b16 %v4009
    %v4273 = vunpack.c.l.b16 %v4010
    %v4274 = vunpack.c.l.b16 %v4011
    %v4275 = vunpack.c.l.b16 %v4012
    %v4276 = vunpack.c.l.b16 %v4013
    %v4277 = vunpack.c.l.b16 %v4014
    %v4278 = vunpack.c.l.b16 %v4015
    %v4279 = vunpack.c.l.b16 %v4016
    %v4280 = vunpack.c.l.b16 %v4017
    %v4281 = vunpack.c.l.b16 %v4018
    %v4282 = vunpack.c.l.b16 %v4019
    %v4283 = vunpack.c.l.b16 %v4020
    %v4284 = vunpack.c.l.b16 %v4021
    %v4285 = vunpack.c.l.b16 %v4022
    %v4286 = vunpack.c.l.b16 %v4023
    %v4287 = vunpack.c.l.b16 %v4024
    %v4288 = vunpack.c.l.b16 %v4025
    %v4289 = vunpack.c.l.b16 %v4026
    %v4290 = vunpack.c.l.b16 %v4027
    %v4291 = vunpack.c.l.b16 %v4028
    %v4292 = vunpack.c.l.b16 %v4029
    %v4293 = vunpack.c.l.b16 %v4030
    %v4294 = vunpack.c.l.b16 %v4031
    %v4295 = vunpack.c.l.b16 %v4032
    %v4296 = vunpack.c.l.b16 %v4033
    %v4297 = vunpack.c.l.b16 %v4034
    %v4298 = vunpack.c.l.b16 %v4035
    %v4299 = vunpack.c.l.b16 %v4036
    %v4300 = vunpack.c.l.b16 %v4037
    %v4301 = vunpack.c.l.b16 %v4038
    %v4302 = vunpack.c.l.b16 %v4039
    %v4303 = vpack.c.b16 %v4176, %v4175
    %v4304 = vpack.c.b16 %v4178, %v4177
    %v4305 = vpack.c.b16 %v4180, %v4179
    %v4306 = vpack.c.b16 %v4182, %v4181
    %v4307 = vpack.c.b16 %v4184, %v4183
    %v4308 = vpack.c.b16 %v4186, %v4185
    %v4309 = vpack.c.b16 %v4188, %v4187
    %v4310 = vpack.c.b16 %v4190, %v4189
    %v4311 = vpack.c.b16 %v4192, %v4191
    %v4312 = vpack.c.b16 %v4194, %v4193
    %v4313 = vpack.c.b16 %v4196, %v4195
    %v4314 = vpack.c.b16 %v4198, %v4197
    %v4315 = vpack.c.b16 %v4200, %v4199
    %v4316 = vpack.c.b16 %v4202, %v4201
    %v4317 = vpack.c.b16 %v4204, %v4203
    %v4318 = vpack.c.b16 %v4206, %v4205
    %v4319 = vpack.c.b16 %v4208, %v4207
    %v4320 = vpack.c.b16 %v4210, %v4209
    %v4321 = vpack.c.b16 %v4212, %v4211
    %v4322 = vpack.c.b16 %v4214, %v4213
    %v4323 = vpack.c.b16 %v4216, %v4215
    %v4324 = vpack.c.b16 %v4218, %v4217
    %v4325 = vpack.c.b16 %v4220, %v4219
    %v4326 = vpack.c.b16 %v4222, %v4221
    %v4327 = vpack.c.b16 %v4224, %v4223
    %v4328 = vpack.c.b16 %v4226, %v4225
    %v4329 = vpack.c.b16 %v4228, %v4227
    %v4330 = vpack.c.b16 %v4230, %v4229
    %v4331 = vpack.c.b16 %v4232, %v4231
    %v4332 = vpack.c.b16 %v4234, %v4233
    %v4333 = vpack.c.b16 %v4236, %v4235
    %v4334 = vpack.c.b16 %v4238, %v4237
    %v4335 = vpack.c.b16 %v4240, %v4239
    %v4336 = vpack.c.b16 %v4242, %v4241
    %v4337 = vpack.c.b16 %v4244, %v4243
    %v4338 = vpack.c.b16 %v4246, %v4245
    %v4339 = vpack.c.b16 %v4248, %v4247
    %v4340 = vpack.c.b16 %v4250, %v4249
    %v4341 = vpack.c.b16 %v4252, %v4251
    %v4342 = vpack.c.b16 %v4254, %v4253
    %v4343 = vpack.c.b16 %v4256, %v4255
    %v4344 = vpack.c.b16 %v4258, %v4257
    %v4345 = vpack.c.b16 %v4260, %v4259
    %v4346 = vpack.c.b16 %v4262, %v4261
    %v4347 = vpack.c.b16 %v4264, %v4263
    %v4348 = vpack.c.b16 %v4266, %v4265
    %v4349 = vpack.c.b16 %v4268, %v4267
    %v4350 = vpack.c.b16 %v4270, %v4269
    %v4351 = vpack.c.b16 %v4272, %v4271
    %v4352 = vpack.c.b16 %v4274, %v4273
    %v4353 = vpack.c.b16 %v4276, %v4275
    %v4354 = vpack.c.b16 %v4278, %v4277
    %v4355 = vpack.c.b16 %v4280, %v4279
    %v4356 = vpack.c.b16 %v4282, %v4281
    %v4357 = vpack.c.b16 %v4284, %v4283
    %v4358 = vpack.c.b16 %v4286, %v4285
    %v4359 = vpack.c.b16 %v4288, %v4287
    %v4360 = vpack.c.b16 %v4290, %v4289
    %v4361 = vpack.c.b16 %v4292, %v4291
    %v4362 = vpack.c.b16 %v4294, %v4293
    %v4363 = vpack.c.b16 %v4296, %v4295
    %v4364 = vpack.c.b16 %v4298, %v4297
    %v4365 = vpack.c.b16 %v4300, %v4299
    %v4366 = vpack.c.b16 %v4302, %v4301
    %4431 = vmatprep.subr.bf16.mxu0 0
    %4432 = vmatpush1.bf16.msra.mxu0 %v4303
    %4433 = vmatprep.subr.bf16.mxu0 0
    %4434 = vmatpush1.bf16.msra.mxu0 %v4304
    %4435 = vmatprep.subr.bf16.mxu0 0
    %4436 = vmatpush1.bf16.msra.mxu0 %v4305
    %4437 = vmatprep.subr.bf16.mxu0 0
    %4438 = vmatpush1.bf16.msra.mxu0 %v4306
    %4439 = vmatprep.subr.bf16.mxu0 0
    %4440 = vmatpush1.bf16.msra.mxu0 %v4307
    %4441 = vmatprep.subr.bf16.mxu0 0
    %4442 = vmatpush1.bf16.msra.mxu0 %v4308
    %4443 = vmatprep.subr.bf16.mxu0 0
    %4444 = vmatpush1.bf16.msra.mxu0 %v4309
    %4445 = vmatprep.subr.bf16.mxu0 0
    %4446 = vmatpush1.bf16.msra.mxu0 %v4310
    %4447 = vmatprep.subr.bf16.mxu0 0
    %4448 = vmatpush1.bf16.msra.mxu0 %v4311
    %4449 = vmatprep.subr.bf16.mxu0 0
    %4450 = vmatpush1.bf16.msra.mxu0 %v4312
    %4451 = vmatprep.subr.bf16.mxu0 0
    %4452 = vmatpush1.bf16.msra.mxu0 %v4313
    %4453 = vmatprep.subr.bf16.mxu0 0
    %4454 = vmatpush1.bf16.msra.mxu0 %v4314
    %4455 = vmatprep.subr.bf16.mxu0 0
    %4456 = vmatpush1.bf16.msra.mxu0 %v4315
    %4457 = vmatprep.subr.bf16.mxu0 0
    %4458 = vmatpush1.bf16.msra.mxu0 %v4316
    %4459 = vmatprep.subr.bf16.mxu0 0
    %4460 = vmatpush1.bf16.msra.mxu0 %v4317
    %4461 = vmatprep.subr.bf16.mxu0 0
    %4462 = vmatpush1.bf16.msra.mxu0 %v4318
    %4463 = vmatprep.mubr.bf16.mxu0 %v3905
    %4464 = vmatmul.mubr.bf16.gmra.mrb[0].mxu0 %v3904
    %v4465 = vpop.f32.mrb[0].mxu0
    %v4466 = vadd.f32 %v4045, %v4465
    %v4467 = vpop.f32.mrb[0].mxu0
    %v4468 = vpop.f32.mrb[0].mxu0
    %v4469 = vpop.f32.mrb[0].mxu0
    %4470 = vdwg.mxu0
    %4471 = vmatprep.subr.bf16.mxu0 0
    %4472 = vmatpush1.bf16.msra.mxu0 %v4319
    %4473 = vmatprep.subr.bf16.mxu0 0
    %4474 = vmatpush1.bf16.msra.mxu0 %v4320
    %4475 = vmatprep.subr.bf16.mxu0 0
    %4476 = vmatpush1.bf16.msra.mxu0 %v4321
    %4477 = vmatprep.subr.bf16.mxu0 0
    %4478 = vmatpush1.bf16.msra.mxu0 %v4322
    %4479 = vmatprep.subr.bf16.mxu0 0
    %4480 = vmatpush1.bf16.msra.mxu0 %v4323
    %4481 = vmatprep.subr.bf16.mxu0 0
    %4482 = vmatpush1.bf16.msra.mxu0 %v4324
    %4483 = vmatprep.subr.bf16.mxu0 0
    %4484 = vmatpush1.bf16.msra.mxu0 %v4325
    %4485 = vmatprep.subr.bf16.mxu0 0
    %4486 = vmatpush1.bf16.msra.mxu0 %v4326
    %4487 = vmatprep.subr.bf16.mxu0 0
    %4488 = vmatpush1.bf16.msra.mxu0 %v4327
    %4489 = vmatprep.subr.bf16.mxu0 0
    %4490 = vmatpush1.bf16.msra.mxu0 %v4328
    %4491 = vmatprep.subr.bf16.mxu0 0
    %4492 = vmatpush1.bf16.msra.mxu0 %v4329
    %4493 = vmatprep.subr.bf16.mxu0 0
    %4494 = vmatpush1.bf16.msra.mxu0 %v4330
    %4495 = vmatprep.subr.bf16.mxu0 0
    %4496 = vmatpush1.bf16.msra.mxu0 %v4331
    %4497 = vmatprep.subr.bf16.mxu0 0
    %4498 = vmatpush1.bf16.msra.mxu0 %v4332
    %4499 = vmatprep.subr.bf16.mxu0 0
    %4500 = vmatpush1.bf16.msra.mxu0 %v4333
    %4501 = vmatprep.subr.bf16.mxu0 0
    %4502 = vmatpush1.bf16.msra.mxu0 %v4334
    %4503 = vmatprep.mubr.bf16.mxu0 %v3907
    %4504 = vmatmul.mubr.bf16.gmra.mrb[0].mxu0 %v3906
    %v4505 = vpop.f32.mrb[0].mxu0
    %v4506 = vadd.f32 %v4466, %v4505
    %v4507 = vpop.f32.mrb[0].mxu0
    %v4508 = vpop.f32.mrb[0].mxu0
    %v4509 = vpop.f32.mrb[0].mxu0
    %4510 = vdwg.mxu0
    %4511 = vmatprep.subr.bf16.mxu0 0
    %4512 = vmatpush1.bf16.msra.mxu0 %v4335
    %4513 = vmatprep.subr.bf16.mxu0 0
    %4514 = vmatpush1.bf16.msra.mxu0 %v4336
    %4515 = vmatprep.subr.bf16.mxu0 0
    %4516 = vmatpush1.bf16.msra.mxu0 %v4337
    %4517 = vmatprep.subr.bf16.mxu0 0
    %4518 = vmatpush1.bf16.msra.mxu0 %v4338
    %4519 = vmatprep.subr.bf16.mxu0 0
    %4520 = vmatpush1.bf16.msra.mxu0 %v4339
    %4521 = vmatprep.subr.bf16.mxu0 0
    %4522 = vmatpush1.bf16.msra.mxu0 %v4340
    %4523 = vmatprep.subr.bf16.mxu0 0
    %4524 = vmatpush1.bf16.msra.mxu0 %v4341
    %4525 = vmatprep.subr.bf16.mxu0 0
    %4526 = vmatpush1.bf16.msra.mxu0 %v4342
    %4527 = vmatprep.subr.bf16.mxu0 0
    %4528 = vmatpush1.bf16.msra.mxu0 %v4343
    %4529 = vmatprep.subr.bf16.mxu0 0
    %4530 = vmatpush1.bf16.msra.mxu0 %v4344
    %4531 = vmatprep.subr.bf16.mxu0 0
    %4532 = vmatpush1.bf16.msra.mxu0 %v4345
    %4533 = vmatprep.subr.bf16.mxu0 0
    %4534 = vmatpush1.bf16.msra.mxu0 %v4346
    %4535 = vmatprep.subr.bf16.mxu0 0
    %4536 = vmatpush1.bf16.msra.mxu0 %v4347
    %4537 = vmatprep.subr.bf16.mxu0 0
    %4538 = vmatpush1.bf16.msra.mxu0 %v4348
    %4539 = vmatprep.subr.bf16.mxu0 0
    %4540 = vmatpush1.bf16.msra.mxu0 %v4349
    %4541 = vmatprep.subr.bf16.mxu0 0
    %4542 = vmatpush1.bf16.msra.mxu0 %v4350
    %4543 = vmatprep.mubr.bf16.mxu0 %v3909
    %4544 = vmatmul.mubr.bf16.gmra.mrb[0].mxu0 %v3908
    %v4545 = vpop.f32.mrb[0].mxu0
    %v4546 = vadd.f32 %v4506, %v4545
    %v4547 = vpop.f32.mrb[0].mxu0
    %v4548 = vpop.f32.mrb[0].mxu0
    %v4549 = vpop.f32.mrb[0].mxu0
    %4550 = vdwg.mxu0
    %4551 = vmatprep.subr.bf16.mxu0 0
    %4552 = vmatpush1.bf16.msra.mxu0 %v4351
    %4553 = vmatprep.subr.bf16.mxu0 0
    %4554 = vmatpush1.bf16.msra.mxu0 %v4352
    %4555 = vmatprep.subr.bf16.mxu0 0
    %4556 = vmatpush1.bf16.msra.mxu0 %v4353
    %4557 = vmatprep.subr.bf16.mxu0 0
    %4558 = vmatpush1.bf16.msra.mxu0 %v4354
    %4559 = vmatprep.subr.bf16.mxu0 0
    %4560 = vmatpush1.bf16.msra.mxu0 %v4355
    %4561 = vmatprep.subr.bf16.mxu0 0
    %4562 = vmatpush1.bf16.msra.mxu0 %v4356
    %4563 = vmatprep.subr.bf16.mxu0 0
    %4564 = vmatpush1.bf16.msra.mxu0 %v4357
    %4565 = vmatprep.subr.bf16.mxu0 0
    %4566 = vmatpush1.bf16.msra.mxu0 %v4358
    %4567 = vmatprep.subr.bf16.mxu0 0
    %4568 = vmatpush1.bf16.msra.mxu0 %v4359
    %4569 = vmatprep.subr.bf16.mxu0 0
    %4570 = vmatpush1.bf16.msra.mxu0 %v4360
    %4571 = vmatprep.subr.bf16.mxu0 0
    %4572 = vmatpush1.bf16.msra.mxu0 %v4361
    %4573 = vmatprep.subr.bf16.mxu0 0
    %4574 = vmatpush1.bf16.msra.mxu0 %v4362
    %4575 = vmatprep.subr.bf16.mxu0 0
    %4576 = vmatpush1.bf16.msra.mxu0 %v4363
    %4577 = vmatprep.subr.bf16.mxu0 0
    %4578 = vmatpush1.bf16.msra.mxu0 %v4364
    %4579 = vmatprep.subr.bf16.mxu0 0
    %4580 = vmatpush1.bf16.msra.mxu0 %v4365
    %4581 = vmatprep.subr.bf16.mxu0 0
    %4582 = vmatpush1.bf16.msra.mxu0 %v4366
    %4583 = vmatprep.mubr.bf16.mxu0 %v3911
    %4584 = vmatmul.mubr.bf16.gmra.mrb[0].mxu0 %v3910
    %v4585 = vpop.f32.mrb[0].mxu0
    %v4586 = vadd.f32 %v4546, %v4585
    %v4587 = vpop.f32.mrb[0].mxu0
    %v4588 = vpop.f32.mrb[0].mxu0
    %v4589 = vpop.f32.mrb[0].mxu0
    %4590 = vdwg.mxu0
    %4591 = vst [vmem:[#allocation13] sm:$0xff] %v4586
    %4592 = vmax.xlane.f32.xlu0 %v4586
    %v4593 = vpop.xlane.xlu0 %4592
    %v4594 = vsub.f32 %v4586, %v4593
    %v4595 = vmul.f32 %v4594, 1.442695
    %v4596 = vpow.pop %v4595
    %4597 = vadd.xlane.f32.xlu0 %v4596
    %v4598 = vpop.xlane.xlu0 %4597
    %v4599 = vlog2.pop %v4598
    %v4600 = vmul.f32 %v4599, 0.6931472
    %v4601 = vadd.f32 %v4593, %v4600
    %v4602 = vlaneseq
    %v4603 = vand.u32 %v4602, 127
    %v4604 = vld [vmem:[%s6] sm:$0xff]
    %4605 = vset.pattern.permute.xlu0 0
    %4606 = vperm.xlu0 %4605, %v4604
    %v4607 = vpop.permute.xlu0 %4606
    %vm4608 = vcmp.eq.s32.totalorder %v4603, %v4607
    %v4609 = vsel %vm4608, %v4586, 0.0
    %4610 = vadd.xlane.f32.xlu0 %v4609
    %v4611 = vpop.xlane.xlu0 %4610
    %v4612 = vsub.f32 %v4601, %v4611
    %vm4613 = vcmask 7168
    %v4614 = vsel %vm4613, %v4612, 0.0
    %4615 = vadd.xlane.f32.xlu0 %v4614
    %v4616 = vpop.xlane.xlu0 %4615
    %v4617 = vrot.slane %v4616, 4
    %v4618 = vadd.f32 %v4616, %v4617
    %v4619 = vrot.slane %v4618, 2
    %v4620 = vadd.f32 %v4618, %v4619
    %v4621 = vrot.slane %v4620, 1
    %v4622 = vadd.f32 %v4620, %v4621
    %s4623 = vtos %v4622
    %v4624 = vrcp.pop 8.0
    %s4625 = vtos %v4624
    %s4626 = smul.f32 %s4623, %s4625
    %s4627 = scalar_lea.smem [#allocation14], 0
    %4628 = sst [smem:[%s4627]] %s4626
    // Predicated region
    $region50: #{tpu_custom_call.1} parent=1 // pred_check
      _
    $region51: #{tpu_custom_call.1} parent=1 // pred_check_branch
      %4630 = sbr.rel (0) target = $region53
    $region52: #{tpu_custom_call.1} parent=1 // pred_region
      %s4632 = ssub.s32 128, 128
      %4633 = vsyncadd [#allocation5], %s4632
      %s4635 = sshll.u32 [#allocation13], 4
      %s4636 = int_to_ptr.vmem [resolvable:$true] %s4635
      %4638 = dma.vmem_to_hbm [thread:$0]  %s4636, 128, %s7, [#allocation5]
    $region53: #{tpu_custom_call.1} parent=1 // pred_fallthru
      _
    // Predicated region
    $region54: #{tpu_custom_call.1} parent=1 // pred_check
      _
    $region55: #{tpu_custom_call.1} parent=1 // pred_check_branch
      %4640 = sbr.rel (0) target = $region57
    $region56: #{tpu_custom_call.1} parent=1 // pred_region
      %s4642 = ssub.s32 16, 16
      %4643 = vsyncadd [#allocation6], %s4642
      %4646 = dma.smem_to_hbm [#allocation14], 16, %s8, [#allocation6]
    $region57: #{tpu_custom_call.1} parent=1 // pred_fallthru
      _
    // Predicated region
    $region58: #{tpu_custom_call.1} parent=1 // pred_check
      _
    $region59: #{tpu_custom_call.1} parent=1 // pred_check_branch
      %4648 = sbr.rel (0) target = $region61
    $region60: #{tpu_custom_call.1} parent=1 // pred_region
      %4649 = dma.done [#allocation5], 128
    $region61: #{tpu_custom_call.1} parent=1 // pred_fallthru
      _
    // Predicated region
    $region62: #{tpu_custom_call.1} parent=1 // pred_check
      _
    $region63: #{tpu_custom_call.1} parent=1 // pred_check_branch
      %4651 = sbr.rel (0) target = $region65
    $region64: #{tpu_custom_call.1} parent=1 // pred_region
      %4652 = dma.done [#allocation6], 16
    $region65: #{tpu_custom_call.1} parent=1 // pred_fallthru
      _
    %4653 = sfence
    %4654 = vsyncpa [#allocation4], 1
    %4655 = vsyncpa [#allocation8], 1
    %4656 = vsyncpa [#allocation11], 1
    %4657 = vsyncpa [#allocation5], 1
    %4658 = vsyncpa [#allocation6], 1

</llo_original>
